<compile_context>
chip_gen: v6e
topology: v6e:2x2x1
jax: 0.10.0
libtpu: 0.0.40
codegen_flags: <defaults>
</compile_context>

<pallas_src>
import jax
import jax.numpy as jnp
import numpy as np
from jax.experimental import pallas as pl
from jax.experimental.pallas import tpu as pltpu

EPS = 1e-5


def make_bottleneck_kernel(N, D, H, W, Cin, Cmid, Cout, K_PAD):
    P = N * D * H * W
    HW = H * W
    n_slots = 28                      # 27 taps + 1 zero slot -> even number of 8-row blocks

    def bn(h, g, b):
        # fused single-pass batch statistics over the lane (position) axis
        m = jnp.mean(h, axis=1, keepdims=True)
        var = jnp.mean(h * h, axis=1, keepdims=True) - m * m
        return (h - m) * jax.lax.rsqrt(var + EPS) * g + b

    def shifted(v, off):
        # out[:, p] = v[:, (p + off) mod P]; wrapped lanes are zeroed by the tap mask
        if off == 0:
            return v
        k = off % P
        return jnp.concatenate([v[:, k:], v[:, :k]], axis=1)

    def kernel(x_ref, wcat_ref, w2_ref, w3_ref, mask_ref,
               g1_ref, b1_ref, g2_ref, b2_ref, g3_ref, b3_ref, gd_ref, bd_ref,
               o_ref, win_ref):
        x = x_ref[...]                                               # (Cin, P) f32

        # ---- fused conv1 + downsample projection: one matmul over x ----
        hcat = jnp.dot(wcat_ref[...], x, preferred_element_type=jnp.float32)
        h1 = jnp.maximum(bn(hcat[:Cmid, :], g1_ref[...], b1_ref[...]), 0.0)
        res = bn(hcat[Cmid:, :], gd_ref[...], bd_ref[...])           # (Cout, P)

        # ---- conv2 (3x3x3, stride 1, pad 1) as one im2col matmul ----
        # Build the (K_PAD, P) bf16 window buffer: 27 lane-shifted, halo-masked
        # copies of h1, written as 16-row (bf16-tile-aligned) pairs.
        for pair in range(n_slots // 2):
            blocks = []
            for t in (2 * pair, 2 * pair + 1):
                if t < 27:
                    od, oh, ow = t // 9 - 1, (t // 3) % 3 - 1, t % 3 - 1
                    off = od * HW + oh * W + ow
                    blocks.append(shifted(h1, off) * mask_ref[t:t + 1, :])
                else:
                    blocks.append(jnp.zeros((Cmid, P), jnp.float32))
            rows = 2 * pair * Cmid
            win_ref[rows:rows + 2 * Cmid, :] = (
                jnp.concatenate(blocks, axis=0).astype(jnp.bfloat16))
        if K_PAD > n_slots * Cmid:    # zero only the K-padding tail, once
            win_ref[n_slots * Cmid:, :] = jnp.zeros(
                (K_PAD - n_slots * Cmid, P), jnp.bfloat16)

        h2 = jnp.dot(w2_ref[...].astype(jnp.bfloat16), win_ref[...],
                     preferred_element_type=jnp.float32)             # (Cmid, P)
        h2 = jnp.maximum(bn(h2, g2_ref[...], b2_ref[...]), 0.0)

        # ---- conv3 (1x1x1) + bn3, residual add, relu ----
        main = bn(jnp.dot(w3_ref[...], h2, preferred_element_type=jnp.float32),
                  g3_ref[...], b3_ref[...])
        o_ref[...] = jnp.maximum(main + res, 0.0)                    # lane-dense (Cout, P) store

    return kernel


def _tap_masks(N, D, H, W):
    """(27, P) float32 validity masks for each 3x3x3 tap on the flat (n,d,h,w) axis."""
    P = N * D * H * W
    idx = np.arange(P)
    w_i = idx % W
    h_i = (idx // W) % H
    d_i = (idx // (H * W)) % D
    m = np.empty((27, P), np.float32)
    t = 0
    for od in (-1, 0, 1):
        for oh in (-1, 0, 1):
            for ow in (-1, 0, 1):
                ok = ((d_i + od >= 0) & (d_i + od < D) &
                      (h_i + oh >= 0) & (h_i + oh < H) &
                      (w_i + ow >= 0) & (w_i + ow < W))
                m[t] = ok.astype(np.float32)
                t += 1
    return m


def bottleneck_forward(x_ncdhw, params):
    (w1, g1, b1, w2, g2, b2, w3, g3, b3, wd, gd, bd) = params
    N, Cin, D, H, W = x_ncdhw.shape
    Cmid = w1.shape[1]
    Cout = w3.shape[1]
    P = N * D * H * W
    assert Cin % 8 == 0 and Cmid % 8 == 0 and Cout % 8 == 0
    K_PAD = ((28 * Cmid + 127) // 128) * 128      # 27*Cmid tap rows (+ zero slot), padded to 128

    # channels on sublanes, flattened (n,d,h,w) positions on the 128-lane axis
    x_cp = jnp.transpose(x_ncdhw, (1, 0, 2, 3, 4)).reshape(Cin, P)

    # fused conv1 + downsample weight, im2col conv2 weight, conv3 weight
    w_cat = jnp.concatenate([w1.T, wd.T], axis=0)            # (Cmid+Cout, Cin)
    w2_mat = w2.reshape(27 * Cmid, Cmid).T                   # (Cmid, 27*Cmid), tap-major cols
    w2_mat = jnp.pad(w2_mat, ((0, 0), (0, K_PAD - 27 * Cmid)))
    w3_t = w3.T                                              # (Cout, Cmid)

    masks = jnp.asarray(_tap_masks(N, D, H, W))              # (27, P)
    col = lambda v: v.reshape(-1, 1)

    kernel = make_bottleneck_kernel(N, D, H, W, Cin, Cmid, Cout, K_PAD)
    vmem = lambda: pl.BlockSpec(memory_space=pltpu.MemorySpace.VMEM)

    out_cp = pl.pallas_call(
        kernel,
        out_shape=jax.ShapeDtypeStruct((Cout, P), jnp.float32),
        in_specs=[vmem() for _ in range(13)],
        out_specs=vmem(),
        scratch_shapes=[pltpu.VMEM((K_PAD, P), jnp.bfloat16)],   # im2col window buffer
    )(x_cp, w_cat, w2_mat, w3_t, masks,
      col(g1), col(b1), col(g2), col(b2), col(g3), col(b3), col(gd), col(bd))

    # back to PyTorch NCDHW layout
    return out_cp.reshape(Cout, N, D, H, W).transpose(1, 0, 2, 3, 4)


# ----------------------- pure-JAX reference (for verification) -----------------------

def _bn_ref(x, gamma, beta):
    axes = tuple(range(x.ndim - 1))
    mean = jnp.mean(x, axis=axes, keepdims=True)
    var = jnp.mean((x - mean) ** 2, axis=axes, keepdims=True)
    return (x - mean) * jax.lax.rsqrt(var + EPS) * gamma + beta


def bottleneck_ref(x_ncdhw, params):
    (w1, g1, b1, w2, g2, b2, w3, g3, b3, wd, gd, bd) = params
    hi = jax.lax.Precision.HIGHEST
    x = jnp.transpose(x_ncdhw, (0, 2, 3, 4, 1))                    # NDHWC
    h = jnp.einsum('ndhwc,co->ndhwo', x, w1, precision=hi)
    h = jax.nn.relu(_bn_ref(h, g1, b1))
    h = jax.lax.conv_general_dilated(
        h, w2, window_strides=(1, 1, 1), padding=((1, 1), (1, 1), (1, 1)),
        dimension_numbers=('NDHWC', 'DHWIO', 'NDHWC'), precision=hi)
    h = jax.nn.relu(_bn_ref(h, g2, b2))
    h = _bn_ref(jnp.einsum('ndhwc,co->ndhwo', h, w3, precision=hi), g3, b3)
    r = _bn_ref(jnp.einsum('ndhwc,co->ndhwo', x, wd, precision=hi), gd, bd)
    out = jax.nn.relu(h + r)
    return jnp.transpose(out, (0, 4, 1, 2, 3))                     # NCDHW


# ------------------------------------- main -------------------------------------

if __name__ == "__main__":
    # Bottleneck(in_channels=16, channels=8, stride=1, dilation=1) -> out channels 32
    N, Cin, D, H, W = 2, 16, 8, 8, 8
    channels, expansion = 8, 4
    Cout = channels * expansion

    key = jax.random.PRNGKey(0)
    k1, k2, k3, k4, kx = jax.random.split(key, 5)

    # conv weights (channels-last matmul form), deterministic init
    w1 = jax.random.normal(k1, (Cin, channels), jnp.float32) * 0.1          # conv1 1x1x1
    w2 = jax.random.normal(k2, (3, 3, 3, channels, channels), jnp.float32) * 0.1  # conv2 3x3x3 (DHWIO)
    w3 = jax.random.normal(k3, (channels, Cout), jnp.float32) * 0.1         # conv3 1x1x1
    wd = jax.random.normal(k4, (Cin, Cout), jnp.float32) * 0.1              # downsample 1x1x1

    # BatchNorm affine params at PyTorch init: weight=1, bias=0
    g1, b1 = jnp.ones((channels,), jnp.float32), jnp.zeros((channels,), jnp.float32)
    g2, b2 = jnp.ones((channels,), jnp.float32), jnp.zeros((channels,), jnp.float32)
    g3, b3 = jnp.ones((Cout,), jnp.float32), jnp.zeros((Cout,), jnp.float32)
    gd, bd = jnp.ones((Cout,), jnp.float32), jnp.zeros((Cout,), jnp.float32)

    params = (w1, g1, b1, w2, g2, b2, w3, g3, b3, wd, gd, bd)

    x = jax.random.normal(kx, (N, Cin, D, H, W), jnp.float32)      # NCDHW like PyTorch

    out = jax.block_until_ready(bottleneck_forward(x, params))
    ref = jax.block_until_ready(bottleneck_ref(x, params))

    # Tolerance covers the bf16 MXU operands of the im2col conv2 matmul
    # (the reference runs fully in f32 at Precision.HIGHEST).
    np.testing.assert_allclose(np.asarray(out), np.asarray(ref), rtol=4e-2, atol=4e-2)

    print("KERNEL_OK")
</pallas_src>

<mosaic_0001>
module attributes {stable_mosaic.version = 11 : i64} {
  func.func @kernel(%arg0: memref<16x1024xf32, #tpu.memory_space<vmem>>, %arg1: memref<40x16xf32, #tpu.memory_space<vmem>>, %arg2: memref<8x256xf32, #tpu.memory_space<vmem>>, %arg3: memref<32x8xf32, #tpu.memory_space<vmem>>, %arg4: memref<27x1024xf32, #tpu.memory_space<vmem>>, %arg5: memref<8x1xf32, #tpu.memory_space<vmem>>, %arg6: memref<8x1xf32, #tpu.memory_space<vmem>>, %arg7: memref<8x1xf32, #tpu.memory_space<vmem>>, %arg8: memref<8x1xf32, #tpu.memory_space<vmem>>, %arg9: memref<32x1xf32, #tpu.memory_space<vmem>>, %arg10: memref<32x1xf32, #tpu.memory_space<vmem>>, %arg11: memref<32x1xf32, #tpu.memory_space<vmem>>, %arg12: memref<32x1xf32, #tpu.memory_space<vmem>>, %arg13: memref<32x1024xf32, #tpu.memory_space<vmem>>, %arg14: memref<256x1024xbf16, #tpu.memory_space<vmem>>) attributes {dimension_semantics = [], scalar_prefetch = 0 : i64, scratch_operands = 1 : i64, tpu.core_type = #tpu.core_type<tc>} {
    %c0 = arith.constant 0 : index
    %c0_0 = arith.constant 0 : index
    %0 = vector.load %arg0[%c0, %c0_0] : memref<16x1024xf32, #tpu.memory_space<vmem>>, vector<16x1024xf32>
    %c0_1 = arith.constant 0 : index
    %c0_2 = arith.constant 0 : index
    %1 = vector.load %arg1[%c0_1, %c0_2] : memref<40x16xf32, #tpu.memory_space<vmem>>, vector<40x16xf32>
    %cst = arith.constant dense<0.000000e+00> : vector<40x1024xf32>
    %2 = tpu.matmul %1, %0, %cst {dimension_numbers = #tpu.dot_dimension_numbers<[1], [0], [0], [1], [0, 0, 1, 1], [], []>} : vector<40x16xf32>, vector<16x1024xf32>, vector<40x1024xf32> -> vector<40x1024xf32>
    %3 = vector.extract_strided_slice %2 {offsets = [0, 0], sizes = [8, 1024], strides = [1, 1]} : vector<40x1024xf32> to vector<8x1024xf32>
    %c0_3 = arith.constant 0 : index
    %c0_4 = arith.constant 0 : index
    %4 = vector.load %arg5[%c0_3, %c0_4] : memref<8x1xf32, #tpu.memory_space<vmem>>, vector<8x1xf32>
    %c0_5 = arith.constant 0 : index
    %c0_6 = arith.constant 0 : index
    %5 = vector.load %arg6[%c0_5, %c0_6] : memref<8x1xf32, #tpu.memory_space<vmem>>, vector<8x1xf32>
    %cst_7 = arith.constant dense<0.000000e+00> : vector<8xf32>
    %6 = vector.multi_reduction <add>, %3, %cst_7 [1] : vector<8x1024xf32> to vector<8xf32>
    %7 = vector.shape_cast %6 : vector<8xf32> to vector<8x1xf32>
    %cst_8 = arith.constant 1.024000e+03 : f32
    %8 = vector.broadcast %cst_8 : f32 to vector<8x1xf32>
    %9 = arith.divf %7, %8 : vector<8x1xf32>
    %10 = arith.mulf %3, %3 : vector<8x1024xf32>
    %cst_9 = arith.constant dense<0.000000e+00> : vector<8xf32>
    %11 = vector.multi_reduction <add>, %10, %cst_9 [1] : vector<8x1024xf32> to vector<8xf32>
    %12 = vector.shape_cast %11 : vector<8xf32> to vector<8x1xf32>
    %cst_10 = arith.constant 1.024000e+03 : f32
    %13 = vector.broadcast %cst_10 : f32 to vector<8x1xf32>
    %14 = arith.divf %12, %13 : vector<8x1xf32>
    %15 = arith.mulf %9, %9 : vector<8x1xf32>
    %16 = arith.subf %14, %15 : vector<8x1xf32>
    %17 = vector.broadcast %9 : vector<8x1xf32> to vector<8x1024xf32>
    %18 = arith.subf %3, %17 : vector<8x1024xf32>
    %cst_11 = arith.constant 9.99999974E-6 : f32
    %19 = vector.broadcast %cst_11 : f32 to vector<8x1xf32>
    %20 = arith.addf %16, %19 : vector<8x1xf32>
    %21 = math.rsqrt %20 : vector<8x1xf32>
    %22 = vector.broadcast %21 : vector<8x1xf32> to vector<8x1024xf32>
    %23 = arith.mulf %18, %22 : vector<8x1024xf32>
    %24 = vector.broadcast %4 : vector<8x1xf32> to vector<8x1024xf32>
    %25 = arith.mulf %23, %24 : vector<8x1024xf32>
    %26 = vector.broadcast %5 : vector<8x1xf32> to vector<8x1024xf32>
    %27 = arith.addf %25, %26 : vector<8x1024xf32>
    %cst_12 = arith.constant 0.000000e+00 : f32
    %28 = vector.broadcast %cst_12 : f32 to vector<8x1024xf32>
    %29 = arith.maximumf %27, %28 : vector<8x1024xf32>
    %30 = vector.extract_strided_slice %2 {offsets = [8, 0], sizes = [32, 1024], strides = [1, 1]} : vector<40x1024xf32> to vector<32x1024xf32>
    %c0_13 = arith.constant 0 : index
    %c0_14 = arith.constant 0 : index
    %31 = vector.load %arg11[%c0_13, %c0_14] : memref<32x1xf32, #tpu.memory_space<vmem>>, vector<32x1xf32>
    %c0_15 = arith.constant 0 : index
    %c0_16 = arith.constant 0 : index
    %32 = vector.load %arg12[%c0_15, %c0_16] : memref<32x1xf32, #tpu.memory_space<vmem>>, vector<32x1xf32>
    %cst_17 = arith.constant dense<0.000000e+00> : vector<32xf32>
    %33 = vector.multi_reduction <add>, %30, %cst_17 [1] : vector<32x1024xf32> to vector<32xf32>
    %34 = vector.shape_cast %33 : vector<32xf32> to vector<32x1xf32>
    %cst_18 = arith.constant 1.024000e+03 : f32
    %35 = vector.broadcast %cst_18 : f32 to vector<32x1xf32>
    %36 = arith.divf %34, %35 : vector<32x1xf32>
    %37 = arith.mulf %30, %30 : vector<32x1024xf32>
    %cst_19 = arith.constant dense<0.000000e+00> : vector<32xf32>
    %38 = vector.multi_reduction <add>, %37, %cst_19 [1] : vector<32x1024xf32> to vector<32xf32>
    %39 = vector.shape_cast %38 : vector<32xf32> to vector<32x1xf32>
    %cst_20 = arith.constant 1.024000e+03 : f32
    %40 = vector.broadcast %cst_20 : f32 to vector<32x1xf32>
    %41 = arith.divf %39, %40 : vector<32x1xf32>
    %42 = arith.mulf %36, %36 : vector<32x1xf32>
    %43 = arith.subf %41, %42 : vector<32x1xf32>
    %44 = vector.broadcast %36 : vector<32x1xf32> to vector<32x1024xf32>
    %45 = arith.subf %30, %44 : vector<32x1024xf32>
    %cst_21 = arith.constant 9.99999974E-6 : f32
    %46 = vector.broadcast %cst_21 : f32 to vector<32x1xf32>
    %47 = arith.addf %43, %46 : vector<32x1xf32>
    %48 = math.rsqrt %47 : vector<32x1xf32>
    %49 = vector.broadcast %48 : vector<32x1xf32> to vector<32x1024xf32>
    %50 = arith.mulf %45, %49 : vector<32x1024xf32>
    %51 = vector.broadcast %31 : vector<32x1xf32> to vector<32x1024xf32>
    %52 = arith.mulf %50, %51 : vector<32x1024xf32>
    %53 = vector.broadcast %32 : vector<32x1xf32> to vector<32x1024xf32>
    %54 = arith.addf %52, %53 : vector<32x1024xf32>
    %55 = vector.extract_strided_slice %29 {offsets = [0, 951], sizes = [8, 73], strides = [1, 1]} : vector<8x1024xf32> to vector<8x73xf32>
    %56 = vector.extract_strided_slice %29 {offsets = [0, 0], sizes = [8, 951], strides = [1, 1]} : vector<8x1024xf32> to vector<8x951xf32>
    %57 = tpu.concatenate %55, %56 in 1 : vector<8x73xf32>, vector<8x951xf32> -> vector<8x1024xf32>
    %c0_22 = arith.constant 0 : index
    %c0_23 = arith.constant 0 : index
    %58 = vector.load %arg4[%c0_22, %c0_23] : memref<27x1024xf32, #tpu.memory_space<vmem>>, vector<1x1024xf32>
    %59 = vector.broadcast %58 : vector<1x1024xf32> to vector<8x1024xf32>
    %60 = arith.mulf %57, %59 : vector<8x1024xf32>
    %61 = vector.extract_strided_slice %29 {offsets = [0, 952], sizes = [8, 72], strides = [1, 1]} : vector<8x1024xf32> to vector<8x72xf32>
    %62 = vector.extract_strided_slice %29 {offsets = [0, 0], sizes = [8, 952], strides = [1, 1]} : vector<8x1024xf32> to vector<8x952xf32>
    %63 = tpu.concatenate %61, %62 in 1 : vector<8x72xf32>, vector<8x952xf32> -> vector<8x1024xf32>
    %c1 = arith.constant 1 : index
    %c0_24 = arith.constant 0 : index
    %64 = vector.load %arg4[%c1, %c0_24] : memref<27x1024xf32, #tpu.memory_space<vmem>>, vector<1x1024xf32>
    %65 = vector.broadcast %64 : vector<1x1024xf32> to vector<8x1024xf32>
    %66 = arith.mulf %63, %65 : vector<8x1024xf32>
    %67 = tpu.concatenate %60, %66 in 0 : vector<8x1024xf32>, vector<8x1024xf32> -> vector<16x1024xf32>
    %68 = arith.truncf %67 : vector<16x1024xf32> to vector<16x1024xbf16>
    %c0_25 = arith.constant 0 : index
    %c0_26 = arith.constant 0 : index
    %69 = vector.load %arg14[%c0_25, %c0_26] : memref<256x1024xbf16, #tpu.memory_space<vmem>>, vector<16x1024xbf16>
    tpu.vector_store %arg14[%c0_25, %c0_26], %68 {strides = array<i32>} : memref<256x1024xbf16, #tpu.memory_space<vmem>>, vector<16x1024xbf16>,
    %70 = vector.extract_strided_slice %29 {offsets = [0, 953], sizes = [8, 71], strides = [1, 1]} : vector<8x1024xf32> to vector<8x71xf32>
    %71 = vector.extract_strided_slice %29 {offsets = [0, 0], sizes = [8, 953], strides = [1, 1]} : vector<8x1024xf32> to vector<8x953xf32>
    %72 = tpu.concatenate %70, %71 in 1 : vector<8x71xf32>, vector<8x953xf32> -> vector<8x1024xf32>
    %c2 = arith.constant 2 : index
    %c0_27 = arith.constant 0 : index
    %73 = vector.load %arg4[%c2, %c0_27] : memref<27x1024xf32, #tpu.memory_space<vmem>>, vector<1x1024xf32>
    %74 = vector.broadcast %73 : vector<1x1024xf32> to vector<8x1024xf32>
    %75 = arith.mulf %72, %74 : vector<8x1024xf32>
    %76 = vector.extract_strided_slice %29 {offsets = [0, 959], sizes = [8, 65], strides = [1, 1]} : vector<8x1024xf32> to vector<8x65xf32>
    %77 = vector.extract_strided_slice %29 {offsets = [0, 0], sizes = [8, 959], strides = [1, 1]} : vector<8x1024xf32> to vector<8x959xf32>
    %78 = tpu.concatenate %76, %77 in 1 : vector<8x65xf32>, vector<8x959xf32> -> vector<8x1024xf32>
    %c3 = arith.constant 3 : index
    %c0_28 = arith.constant 0 : index
    %79 = vector.load %arg4[%c3, %c0_28] : memref<27x1024xf32, #tpu.memory_space<vmem>>, vector<1x1024xf32>
    %80 = vector.broadcast %79 : vector<1x1024xf32> to vector<8x1024xf32>
    %81 = arith.mulf %78, %80 : vector<8x1024xf32>
    %82 = tpu.concatenate %75, %81 in 0 : vector<8x1024xf32>, vector<8x1024xf32> -> vector<16x1024xf32>
    %83 = arith.truncf %82 : vector<16x1024xf32> to vector<16x1024xbf16>
    %c16 = arith.constant 16 : index
    %c0_29 = arith.constant 0 : index
    %84 = vector.load %arg14[%c16, %c0_29] : memref<256x1024xbf16, #tpu.memory_space<vmem>>, vector<16x1024xbf16>
    tpu.vector_store %arg14[%c16, %c0_29], %83 {strides = array<i32>} : memref<256x1024xbf16, #tpu.memory_space<vmem>>, vector<16x1024xbf16>,
    %85 = vector.extract_strided_slice %29 {offsets = [0, 960], sizes = [8, 64], strides = [1, 1]} : vector<8x1024xf32> to vector<8x64xf32>
    %86 = vector.extract_strided_slice %29 {offsets = [0, 0], sizes = [8, 960], strides = [1, 1]} : vector<8x1024xf32> to vector<8x960xf32>
    %87 = tpu.concatenate %85, %86 in 1 : vector<8x64xf32>, vector<8x960xf32> -> vector<8x1024xf32>
    %c4 = arith.constant 4 : index
    %c0_30 = arith.constant 0 : index
    %88 = vector.load %arg4[%c4, %c0_30] : memref<27x1024xf32, #tpu.memory_space<vmem>>, vector<1x1024xf32>
    %89 = vector.broadcast %88 : vector<1x1024xf32> to vector<8x1024xf32>
    %90 = arith.mulf %87, %89 : vector<8x1024xf32>
    %91 = vector.extract_strided_slice %29 {offsets = [0, 961], sizes = [8, 63], strides = [1, 1]} : vector<8x1024xf32> to vector<8x63xf32>
    %92 = vector.extract_strided_slice %29 {offsets = [0, 0], sizes = [8, 961], strides = [1, 1]} : vector<8x1024xf32> to vector<8x961xf32>
    %93 = tpu.concatenate %91, %92 in 1 : vector<8x63xf32>, vector<8x961xf32> -> vector<8x1024xf32>
    %c5 = arith.constant 5 : index
    %c0_31 = arith.constant 0 : index
    %94 = vector.load %arg4[%c5, %c0_31] : memref<27x1024xf32, #tpu.memory_space<vmem>>, vector<1x1024xf32>
    %95 = vector.broadcast %94 : vector<1x1024xf32> to vector<8x1024xf32>
    %96 = arith.mulf %93, %95 : vector<8x1024xf32>
    %97 = tpu.concatenate %90, %96 in 0 : vector<8x1024xf32>, vector<8x1024xf32> -> vector<16x1024xf32>
    %98 = arith.truncf %97 : vector<16x1024xf32> to vector<16x1024xbf16>
    %c32 = arith.constant 32 : index
    %c0_32 = arith.constant 0 : index
    %99 = vector.load %arg14[%c32, %c0_32] : memref<256x1024xbf16, #tpu.memory_space<vmem>>, vector<16x1024xbf16>
    tpu.vector_store %arg14[%c32, %c0_32], %98 {strides = array<i32>} : memref<256x1024xbf16, #tpu.memory_space<vmem>>, vector<16x1024xbf16>,
    %100 = vector.extract_strided_slice %29 {offsets = [0, 967], sizes = [8, 57], strides = [1, 1]} : vector<8x1024xf32> to vector<8x57xf32>
    %101 = vector.extract_strided_slice %29 {offsets = [0, 0], sizes = [8, 967], strides = [1, 1]} : vector<8x1024xf32> to vector<8x967xf32>
    %102 = tpu.concatenate %100, %101 in 1 : vector<8x57xf32>, vector<8x967xf32> -> vector<8x1024xf32>
    %c6 = arith.constant 6 : index
    %c0_33 = arith.constant 0 : index
    %103 = vector.load %arg4[%c6, %c0_33] : memref<27x1024xf32, #tpu.memory_space<vmem>>, vector<1x1024xf32>
    %104 = vector.broadcast %103 : vector<1x1024xf32> to vector<8x1024xf32>
    %105 = arith.mulf %102, %104 : vector<8x1024xf32>
    %106 = vector.extract_strided_slice %29 {offsets = [0, 968], sizes = [8, 56], strides = [1, 1]} : vector<8x1024xf32> to vector<8x56xf32>
    %107 = vector.extract_strided_slice %29 {offsets = [0, 0], sizes = [8, 968], strides = [1, 1]} : vector<8x1024xf32> to vector<8x968xf32>
    %108 = tpu.concatenate %106, %107 in 1 : vector<8x56xf32>, vector<8x968xf32> -> vector<8x1024xf32>
    %c7 = arith.constant 7 : index
    %c0_34 = arith.constant 0 : index
    %109 = vector.load %arg4[%c7, %c0_34] : memref<27x1024xf32, #tpu.memory_space<vmem>>, vector<1x1024xf32>
    %110 = vector.broadcast %109 : vector<1x1024xf32> to vector<8x1024xf32>
    %111 = arith.mulf %108, %110 : vector<8x1024xf32>
    %112 = tpu.concatenate %105, %111 in 0 : vector<8x1024xf32>, vector<8x1024xf32> -> vector<16x1024xf32>
    %113 = arith.truncf %112 : vector<16x1024xf32> to vector<16x1024xbf16>
    %c48 = arith.constant 48 : index
    %c0_35 = arith.constant 0 : index
    %114 = vector.load %arg14[%c48, %c0_35] : memref<256x1024xbf16, #tpu.memory_space<vmem>>, vector<16x1024xbf16>
    tpu.vector_store %arg14[%c48, %c0_35], %113 {strides = array<i32>} : memref<256x1024xbf16, #tpu.memory_space<vmem>>, vector<16x1024xbf16>,
    %115 = vector.extract_strided_slice %29 {offsets = [0, 969], sizes = [8, 55], strides = [1, 1]} : vector<8x1024xf32> to vector<8x55xf32>
    %116 = vector.extract_strided_slice %29 {offsets = [0, 0], sizes = [8, 969], strides = [1, 1]} : vector<8x1024xf32> to vector<8x969xf32>
    %117 = tpu.concatenate %115, %116 in 1 : vector<8x55xf32>, vector<8x969xf32> -> vector<8x1024xf32>
    %c8 = arith.constant 8 : index
    %c0_36 = arith.constant 0 : index
    %118 = vector.load %arg4[%c8, %c0_36] : memref<27x1024xf32, #tpu.memory_space<vmem>>, vector<1x1024xf32>
    %119 = vector.broadcast %118 : vector<1x1024xf32> to vector<8x1024xf32>
    %120 = arith.mulf %117, %119 : vector<8x1024xf32>
    %121 = vector.extract_strided_slice %29 {offsets = [0, 1015], sizes = [8, 9], strides = [1, 1]} : vector<8x1024xf32> to vector<8x9xf32>
    %122 = vector.extract_strided_slice %29 {offsets = [0, 0], sizes = [8, 1015], strides = [1, 1]} : vector<8x1024xf32> to vector<8x1015xf32>
    %123 = tpu.concatenate %121, %122 in 1 : vector<8x9xf32>, vector<8x1015xf32> -> vector<8x1024xf32>
    %c9 = arith.constant 9 : index
    %c0_37 = arith.constant 0 : index
    %124 = vector.load %arg4[%c9, %c0_37] : memref<27x1024xf32, #tpu.memory_space<vmem>>, vector<1x1024xf32>
    %125 = vector.broadcast %124 : vector<1x1024xf32> to vector<8x1024xf32>
    %126 = arith.mulf %123, %125 : vector<8x1024xf32>
    %127 = tpu.concatenate %120, %126 in 0 : vector<8x1024xf32>, vector<8x1024xf32> -> vector<16x1024xf32>
    %128 = arith.truncf %127 : vector<16x1024xf32> to vector<16x1024xbf16>
    %c64 = arith.constant 64 : index
    %c0_38 = arith.constant 0 : index
    %129 = vector.load %arg14[%c64, %c0_38] : memref<256x1024xbf16, #tpu.memory_space<vmem>>, vector<16x1024xbf16>
    tpu.vector_store %arg14[%c64, %c0_38], %128 {strides = array<i32>} : memref<256x1024xbf16, #tpu.memory_space<vmem>>, vector<16x1024xbf16>,
    %130 = vector.extract_strided_slice %29 {offsets = [0, 1016], sizes = [8, 8], strides = [1, 1]} : vector<8x1024xf32> to vector<8x8xf32>
    %131 = vector.extract_strided_slice %29 {offsets = [0, 0], sizes = [8, 1016], strides = [1, 1]} : vector<8x1024xf32> to vector<8x1016xf32>
    %132 = tpu.concatenate %130, %131 in 1 : vector<8x8xf32>, vector<8x1016xf32> -> vector<8x1024xf32>
    %c10 = arith.constant 10 : index
    %c0_39 = arith.constant 0 : index
    %133 = vector.load %arg4[%c10, %c0_39] : memref<27x1024xf32, #tpu.memory_space<vmem>>, vector<1x1024xf32>
    %134 = vector.broadcast %133 : vector<1x1024xf32> to vector<8x1024xf32>
    %135 = arith.mulf %132, %134 : vector<8x1024xf32>
    %136 = vector.extract_strided_slice %29 {offsets = [0, 1017], sizes = [8, 7], strides = [1, 1]} : vector<8x1024xf32> to vector<8x7xf32>
    %137 = vector.extract_strided_slice %29 {offsets = [0, 0], sizes = [8, 1017], strides = [1, 1]} : vector<8x1024xf32> to vector<8x1017xf32>
    %138 = tpu.concatenate %136, %137 in 1 : vector<8x7xf32>, vector<8x1017xf32> -> vector<8x1024xf32>
    %c11 = arith.constant 11 : index
    %c0_40 = arith.constant 0 : index
    %139 = vector.load %arg4[%c11, %c0_40] : memref<27x1024xf32, #tpu.memory_space<vmem>>, vector<1x1024xf32>
    %140 = vector.broadcast %139 : vector<1x1024xf32> to vector<8x1024xf32>
    %141 = arith.mulf %138, %140 : vector<8x1024xf32>
    %142 = tpu.concatenate %135, %141 in 0 : vector<8x1024xf32>, vector<8x1024xf32> -> vector<16x1024xf32>
    %143 = arith.truncf %142 : vector<16x1024xf32> to vector<16x1024xbf16>
    %c80 = arith.constant 80 : index
    %c0_41 = arith.constant 0 : index
    %144 = vector.load %arg14[%c80, %c0_41] : memref<256x1024xbf16, #tpu.memory_space<vmem>>, vector<16x1024xbf16>
    tpu.vector_store %arg14[%c80, %c0_41], %143 {strides = array<i32>} : memref<256x1024xbf16, #tpu.memory_space<vmem>>, vector<16x1024xbf16>,
    %145 = vector.extract_strided_slice %29 {offsets = [0, 1023], sizes = [8, 1], strides = [1, 1]} : vector<8x1024xf32> to vector<8x1xf32>
    %146 = vector.extract_strided_slice %29 {offsets = [0, 0], sizes = [8, 1023], strides = [1, 1]} : vector<8x1024xf32> to vector<8x1023xf32>
    %147 = tpu.concatenate %145, %146 in 1 : vector<8x1xf32>, vector<8x1023xf32> -> vector<8x1024xf32>
    %c12 = arith.constant 12 : index
    %c0_42 = arith.constant 0 : index
    %148 = vector.load %arg4[%c12, %c0_42] : memref<27x1024xf32, #tpu.memory_space<vmem>>, vector<1x1024xf32>
    %149 = vector.broadcast %148 : vector<1x1024xf32> to vector<8x1024xf32>
    %150 = arith.mulf %147, %149 : vector<8x1024xf32>
    %c13 = arith.constant 13 : index
    %c0_43 = arith.constant 0 : index
    %151 = vector.load %arg4[%c13, %c0_43] : memref<27x1024xf32, #tpu.memory_space<vmem>>, vector<1x1024xf32>
    %152 = vector.broadcast %151 : vector<1x1024xf32> to vector<8x1024xf32>
    %153 = arith.mulf %29, %152 : vector<8x1024xf32>
    %154 = tpu.concatenate %150, %153 in 0 : vector<8x1024xf32>, vector<8x1024xf32> -> vector<16x1024xf32>
    %155 = arith.truncf %154 : vector<16x1024xf32> to vector<16x1024xbf16>
    %c96 = arith.constant 96 : index
    %c0_44 = arith.constant 0 : index
    %156 = vector.load %arg14[%c96, %c0_44] : memref<256x1024xbf16, #tpu.memory_space<vmem>>, vector<16x1024xbf16>
    tpu.vector_store %arg14[%c96, %c0_44], %155 {strides = array<i32>} : memref<256x1024xbf16, #tpu.memory_space<vmem>>, vector<16x1024xbf16>,
    %157 = vector.extract_strided_slice %29 {offsets = [0, 1], sizes = [8, 1023], strides = [1, 1]} : vector<8x1024xf32> to vector<8x1023xf32>
    %158 = vector.extract_strided_slice %29 {offsets = [0, 0], sizes = [8, 1], strides = [1, 1]} : vector<8x1024xf32> to vector<8x1xf32>
    %159 = tpu.concatenate %157, %158 in 1 : vector<8x1023xf32>, vector<8x1xf32> -> vector<8x1024xf32>
    %c14 = arith.constant 14 : index
    %c0_45 = arith.constant 0 : index
    %160 = vector.load %arg4[%c14, %c0_45] : memref<27x1024xf32, #tpu.memory_space<vmem>>, vector<1x1024xf32>
    %161 = vector.broadcast %160 : vector<1x1024xf32> to vector<8x1024xf32>
    %162 = arith.mulf %159, %161 : vector<8x1024xf32>
    %163 = vector.extract_strided_slice %29 {offsets = [0, 7], sizes = [8, 1017], strides = [1, 1]} : vector<8x1024xf32> to vector<8x1017xf32>
    %164 = vector.extract_strided_slice %29 {offsets = [0, 0], sizes = [8, 7], strides = [1, 1]} : vector<8x1024xf32> to vector<8x7xf32>
    %165 = tpu.concatenate %163, %164 in 1 : vector<8x1017xf32>, vector<8x7xf32> -> vector<8x1024xf32>
    %c15 = arith.constant 15 : index
    %c0_46 = arith.constant 0 : index
    %166 = vector.load %arg4[%c15, %c0_46] : memref<27x1024xf32, #tpu.memory_space<vmem>>, vector<1x1024xf32>
    %167 = vector.broadcast %166 : vector<1x1024xf32> to vector<8x1024xf32>
    %168 = arith.mulf %165, %167 : vector<8x1024xf32>
    %169 = tpu.concatenate %162, %168 in 0 : vector<8x1024xf32>, vector<8x1024xf32> -> vector<16x1024xf32>
    %170 = arith.truncf %169 : vector<16x1024xf32> to vector<16x1024xbf16>
    %c112 = arith.constant 112 : index
    %c0_47 = arith.constant 0 : index
    %171 = vector.load %arg14[%c112, %c0_47] : memref<256x1024xbf16, #tpu.memory_space<vmem>>, vector<16x1024xbf16>
    tpu.vector_store %arg14[%c112, %c0_47], %170 {strides = array<i32>} : memref<256x1024xbf16, #tpu.memory_space<vmem>>, vector<16x1024xbf16>,
    %172 = vector.extract_strided_slice %29 {offsets = [0, 8], sizes = [8, 1016], strides = [1, 1]} : vector<8x1024xf32> to vector<8x1016xf32>
    %173 = vector.extract_strided_slice %29 {offsets = [0, 0], sizes = [8, 8], strides = [1, 1]} : vector<8x1024xf32> to vector<8x8xf32>
    %174 = tpu.concatenate %172, %173 in 1 : vector<8x1016xf32>, vector<8x8xf32> -> vector<8x1024xf32>
    %c16_48 = arith.constant 16 : index
    %c0_49 = arith.constant 0 : index
    %175 = vector.load %arg4[%c16_48, %c0_49] : memref<27x1024xf32, #tpu.memory_space<vmem>>, vector<1x1024xf32>
    %176 = vector.broadcast %175 : vector<1x1024xf32> to vector<8x1024xf32>
    %177 = arith.mulf %174, %176 : vector<8x1024xf32>
    %178 = vector.extract_strided_slice %29 {offsets = [0, 9], sizes = [8, 1015], strides = [1, 1]} : vector<8x1024xf32> to vector<8x1015xf32>
    %179 = vector.extract_strided_slice %29 {offsets = [0, 0], sizes = [8, 9], strides = [1, 1]} : vector<8x1024xf32> to vector<8x9xf32>
    %180 = tpu.concatenate %178, %179 in 1 : vector<8x1015xf32>, vector<8x9xf32> -> vector<8x1024xf32>
    %c17 = arith.constant 17 : index
    %c0_50 = arith.constant 0 : index
    %181 = vector.load %arg4[%c17, %c0_50] : memref<27x1024xf32, #tpu.memory_space<vmem>>, vector<1x1024xf32>
    %182 = vector.broadcast %181 : vector<1x1024xf32> to vector<8x1024xf32>
    %183 = arith.mulf %180, %182 : vector<8x1024xf32>
    %184 = tpu.concatenate %177, %183 in 0 : vector<8x1024xf32>, vector<8x1024xf32> -> vector<16x1024xf32>
    %185 = arith.truncf %184 : vector<16x1024xf32> to vector<16x1024xbf16>
    %c128 = arith.constant 128 : index
    %c0_51 = arith.constant 0 : index
    %186 = vector.load %arg14[%c128, %c0_51] : memref<256x1024xbf16, #tpu.memory_space<vmem>>, vector<16x1024xbf16>
    tpu.vector_store %arg14[%c128, %c0_51], %185 {strides = array<i32>} : memref<256x1024xbf16, #tpu.memory_space<vmem>>, vector<16x1024xbf16>,
    %187 = vector.extract_strided_slice %29 {offsets = [0, 55], sizes = [8, 969], strides = [1, 1]} : vector<8x1024xf32> to vector<8x969xf32>
    %188 = vector.extract_strided_slice %29 {offsets = [0, 0], sizes = [8, 55], strides = [1, 1]} : vector<8x1024xf32> to vector<8x55xf32>
    %189 = tpu.concatenate %187, %188 in 1 : vector<8x969xf32>, vector<8x55xf32> -> vector<8x1024xf32>
    %c18 = arith.constant 18 : index
    %c0_52 = arith.constant 0 : index
    %190 = vector.load %arg4[%c18, %c0_52] : memref<27x1024xf32, #tpu.memory_space<vmem>>, vector<1x1024xf32>
    %191 = vector.broadcast %190 : vector<1x1024xf32> to vector<8x1024xf32>
    %192 = arith.mulf %189, %191 : vector<8x1024xf32>
    %193 = vector.extract_strided_slice %29 {offsets = [0, 56], sizes = [8, 968], strides = [1, 1]} : vector<8x1024xf32> to vector<8x968xf32>
    %194 = vector.extract_strided_slice %29 {offsets = [0, 0], sizes = [8, 56], strides = [1, 1]} : vector<8x1024xf32> to vector<8x56xf32>
    %195 = tpu.concatenate %193, %194 in 1 : vector<8x968xf32>, vector<8x56xf32> -> vector<8x1024xf32>
    %c19 = arith.constant 19 : index
    %c0_53 = arith.constant 0 : index
    %196 = vector.load %arg4[%c19, %c0_53] : memref<27x1024xf32, #tpu.memory_space<vmem>>, vector<1x1024xf32>
    %197 = vector.broadcast %196 : vector<1x1024xf32> to vector<8x1024xf32>
    %198 = arith.mulf %195, %197 : vector<8x1024xf32>
    %199 = tpu.concatenate %192, %198 in 0 : vector<8x1024xf32>, vector<8x1024xf32> -> vector<16x1024xf32>
    %200 = arith.truncf %199 : vector<16x1024xf32> to vector<16x1024xbf16>
    %c144 = arith.constant 144 : index
    %c0_54 = arith.constant 0 : index
    %201 = vector.load %arg14[%c144, %c0_54] : memref<256x1024xbf16, #tpu.memory_space<vmem>>, vector<16x1024xbf16>
    tpu.vector_store %arg14[%c144, %c0_54], %200 {strides = array<i32>} : memref<256x1024xbf16, #tpu.memory_space<vmem>>, vector<16x1024xbf16>,
    %202 = vector.extract_strided_slice %29 {offsets = [0, 57], sizes = [8, 967], strides = [1, 1]} : vector<8x1024xf32> to vector<8x967xf32>
    %203 = vector.extract_strided_slice %29 {offsets = [0, 0], sizes = [8, 57], strides = [1, 1]} : vector<8x1024xf32> to vector<8x57xf32>
    %204 = tpu.concatenate %202, %203 in 1 : vector<8x967xf32>, vector<8x57xf32> -> vector<8x1024xf32>
    %c20 = arith.constant 20 : index
    %c0_55 = arith.constant 0 : index
    %205 = vector.load %arg4[%c20, %c0_55] : memref<27x1024xf32, #tpu.memory_space<vmem>>, vector<1x1024xf32>
    %206 = vector.broadcast %205 : vector<1x1024xf32> to vector<8x1024xf32>
    %207 = arith.mulf %204, %206 : vector<8x1024xf32>
    %208 = vector.extract_strided_slice %29 {offsets = [0, 63], sizes = [8, 961], strides = [1, 1]} : vector<8x1024xf32> to vector<8x961xf32>
    %209 = vector.extract_strided_slice %29 {offsets = [0, 0], sizes = [8, 63], strides = [1, 1]} : vector<8x1024xf32> to vector<8x63xf32>
    %210 = tpu.concatenate %208, %209 in 1 : vector<8x961xf32>, vector<8x63xf32> -> vector<8x1024xf32>
    %c21 = arith.constant 21 : index
    %c0_56 = arith.constant 0 : index
    %211 = vector.load %arg4[%c21, %c0_56] : memref<27x1024xf32, #tpu.memory_space<vmem>>, vector<1x1024xf32>
    %212 = vector.broadcast %211 : vector<1x1024xf32> to vector<8x1024xf32>
    %213 = arith.mulf %210, %212 : vector<8x1024xf32>
    %214 = tpu.concatenate %207, %213 in 0 : vector<8x1024xf32>, vector<8x1024xf32> -> vector<16x1024xf32>
    %215 = arith.truncf %214 : vector<16x1024xf32> to vector<16x1024xbf16>
    %c160 = arith.constant 160 : index
    %c0_57 = arith.constant 0 : index
    %216 = vector.load %arg14[%c160, %c0_57] : memref<256x1024xbf16, #tpu.memory_space<vmem>>, vector<16x1024xbf16>
    tpu.vector_store %arg14[%c160, %c0_57], %215 {strides = array<i32>} : memref<256x1024xbf16, #tpu.memory_space<vmem>>, vector<16x1024xbf16>,
    %217 = vector.extract_strided_slice %29 {offsets = [0, 64], sizes = [8, 960], strides = [1, 1]} : vector<8x1024xf32> to vector<8x960xf32>
    %218 = vector.extract_strided_slice %29 {offsets = [0, 0], sizes = [8, 64], strides = [1, 1]} : vector<8x1024xf32> to vector<8x64xf32>
    %219 = tpu.concatenate %217, %218 in 1 : vector<8x960xf32>, vector<8x64xf32> -> vector<8x1024xf32>
    %c22 = arith.constant 22 : index
    %c0_58 = arith.constant 0 : index
    %220 = vector.load %arg4[%c22, %c0_58] : memref<27x1024xf32, #tpu.memory_space<vmem>>, vector<1x1024xf32>
    %221 = vector.broadcast %220 : vector<1x1024xf32> to vector<8x1024xf32>
    %222 = arith.mulf %219, %221 : vector<8x1024xf32>
    %223 = vector.extract_strided_slice %29 {offsets = [0, 65], sizes = [8, 959], strides = [1, 1]} : vector<8x1024xf32> to vector<8x959xf32>
    %224 = vector.extract_strided_slice %29 {offsets = [0, 0], sizes = [8, 65], strides = [1, 1]} : vector<8x1024xf32> to vector<8x65xf32>
    %225 = tpu.concatenate %223, %224 in 1 : vector<8x959xf32>, vector<8x65xf32> -> vector<8x1024xf32>
    %c23 = arith.constant 23 : index
    %c0_59 = arith.constant 0 : index
    %226 = vector.load %arg4[%c23, %c0_59] : memref<27x1024xf32, #tpu.memory_space<vmem>>, vector<1x1024xf32>
    %227 = vector.broadcast %226 : vector<1x1024xf32> to vector<8x1024xf32>
    %228 = arith.mulf %225, %227 : vector<8x1024xf32>
    %229 = tpu.concatenate %222, %228 in 0 : vector<8x1024xf32>, vector<8x1024xf32> -> vector<16x1024xf32>
    %230 = arith.truncf %229 : vector<16x1024xf32> to vector<16x1024xbf16>
    %c176 = arith.constant 176 : index
    %c0_60 = arith.constant 0 : index
    %231 = vector.load %arg14[%c176, %c0_60] : memref<256x1024xbf16, #tpu.memory_space<vmem>>, vector<16x1024xbf16>
    tpu.vector_store %arg14[%c176, %c0_60], %230 {strides = array<i32>} : memref<256x1024xbf16, #tpu.memory_space<vmem>>, vector<16x1024xbf16>,
    %232 = vector.extract_strided_slice %29 {offsets = [0, 71], sizes = [8, 953], strides = [1, 1]} : vector<8x1024xf32> to vector<8x953xf32>
    %233 = vector.extract_strided_slice %29 {offsets = [0, 0], sizes = [8, 71], strides = [1, 1]} : vector<8x1024xf32> to vector<8x71xf32>
    %234 = tpu.concatenate %232, %233 in 1 : vector<8x953xf32>, vector<8x71xf32> -> vector<8x1024xf32>
    %c24 = arith.constant 24 : index
    %c0_61 = arith.constant 0 : index
    %235 = vector.load %arg4[%c24, %c0_61] : memref<27x1024xf32, #tpu.memory_space<vmem>>, vector<1x1024xf32>
    %236 = vector.broadcast %235 : vector<1x1024xf32> to vector<8x1024xf32>
    %237 = arith.mulf %234, %236 : vector<8x1024xf32>
    %238 = vector.extract_strided_slice %29 {offsets = [0, 72], sizes = [8, 952], strides = [1, 1]} : vector<8x1024xf32> to vector<8x952xf32>
    %239 = vector.extract_strided_slice %29 {offsets = [0, 0], sizes = [8, 72], strides = [1, 1]} : vector<8x1024xf32> to vector<8x72xf32>
    %240 = tpu.concatenate %238, %239 in 1 : vector<8x952xf32>, vector<8x72xf32> -> vector<8x1024xf32>
    %c25 = arith.constant 25 : index
    %c0_62 = arith.constant 0 : index
    %241 = vector.load %arg4[%c25, %c0_62] : memref<27x1024xf32, #tpu.memory_space<vmem>>, vector<1x1024xf32>
    %242 = vector.broadcast %241 : vector<1x1024xf32> to vector<8x1024xf32>
    %243 = arith.mulf %240, %242 : vector<8x1024xf32>
    %244 = tpu.concatenate %237, %243 in 0 : vector<8x1024xf32>, vector<8x1024xf32> -> vector<16x1024xf32>
    %245 = arith.truncf %244 : vector<16x1024xf32> to vector<16x1024xbf16>
    %c192 = arith.constant 192 : index
    %c0_63 = arith.constant 0 : index
    %246 = vector.load %arg14[%c192, %c0_63] : memref<256x1024xbf16, #tpu.memory_space<vmem>>, vector<16x1024xbf16>
    tpu.vector_store %arg14[%c192, %c0_63], %245 {strides = array<i32>} : memref<256x1024xbf16, #tpu.memory_space<vmem>>, vector<16x1024xbf16>,
    %247 = vector.extract_strided_slice %29 {offsets = [0, 73], sizes = [8, 951], strides = [1, 1]} : vector<8x1024xf32> to vector<8x951xf32>
    %248 = vector.extract_strided_slice %29 {offsets = [0, 0], sizes = [8, 73], strides = [1, 1]} : vector<8x1024xf32> to vector<8x73xf32>
    %249 = tpu.concatenate %247, %248 in 1 : vector<8x951xf32>, vector<8x73xf32> -> vector<8x1024xf32>
    %c26 = arith.constant 26 : index
    %c0_64 = arith.constant 0 : index
    %250 = vector.load %arg4[%c26, %c0_64] : memref<27x1024xf32, #tpu.memory_space<vmem>>, vector<1x1024xf32>
    %251 = vector.broadcast %250 : vector<1x1024xf32> to vector<8x1024xf32>
    %252 = arith.mulf %249, %251 : vector<8x1024xf32>
    %cst_65 = arith.constant 0.000000e+00 : f32
    %253 = vector.broadcast %cst_65 : f32 to vector<8x1024xf32>
    %254 = tpu.concatenate %252, %253 in 0 : vector<8x1024xf32>, vector<8x1024xf32> -> vector<16x1024xf32>
    %255 = arith.truncf %254 : vector<16x1024xf32> to vector<16x1024xbf16>
    %c208 = arith.constant 208 : index
    %c0_66 = arith.constant 0 : index
    %256 = vector.load %arg14[%c208, %c0_66] : memref<256x1024xbf16, #tpu.memory_space<vmem>>, vector<16x1024xbf16>
    tpu.vector_store %arg14[%c208, %c0_66], %255 {strides = array<i32>} : memref<256x1024xbf16, #tpu.memory_space<vmem>>, vector<16x1024xbf16>,
    %cst_67 = arith.constant 0.000000e+00 : bf16
    %257 = vector.broadcast %cst_67 : bf16 to vector<32x1024xbf16>
    %c224 = arith.constant 224 : index
    %c0_68 = arith.constant 0 : index
    %258 = vector.load %arg14[%c224, %c0_68] : memref<256x1024xbf16, #tpu.memory_space<vmem>>, vector<32x1024xbf16>
    tpu.vector_store %arg14[%c224, %c0_68], %257 {strides = array<i32>} : memref<256x1024xbf16, #tpu.memory_space<vmem>>, vector<32x1024xbf16>,
    %c0_69 = arith.constant 0 : index
    %c0_70 = arith.constant 0 : index
    %259 = vector.load %arg2[%c0_69, %c0_70] : memref<8x256xf32, #tpu.memory_space<vmem>>, vector<8x256xf32>
    %260 = arith.truncf %259 : vector<8x256xf32> to vector<8x256xbf16>
    %c0_71 = arith.constant 0 : index
    %c0_72 = arith.constant 0 : index
    %261 = vector.load %arg14[%c0_71, %c0_72] : memref<256x1024xbf16, #tpu.memory_space<vmem>>, vector<256x1024xbf16>
    %cst_73 = arith.constant dense<0.000000e+00> : vector<8x1024xf32>
    %262 = tpu.matmul %260, %261, %cst_73 {dimension_numbers = #tpu.dot_dimension_numbers<[1], [0], [0], [1], [0, 0, 1, 1], [], []>} : vector<8x256xbf16>, vector<256x1024xbf16>, vector<8x1024xf32> -> vector<8x1024xf32>
    %c0_74 = arith.constant 0 : index
    %c0_75 = arith.constant 0 : index
    %263 = vector.load %arg7[%c0_74, %c0_75] : memref<8x1xf32, #tpu.memory_space<vmem>>, vector<8x1xf32>
    %c0_76 = arith.constant 0 : index
    %c0_77 = arith.constant 0 : index
    %264 = vector.load %arg8[%c0_76, %c0_77] : memref<8x1xf32, #tpu.memory_space<vmem>>, vector<8x1xf32>
    %cst_78 = arith.constant dense<0.000000e+00> : vector<8xf32>
    %265 = vector.multi_reduction <add>, %262, %cst_78 [1] : vector<8x1024xf32> to vector<8xf32>
    %266 = vector.shape_cast %265 : vector<8xf32> to vector<8x1xf32>
    %cst_79 = arith.constant 1.024000e+03 : f32
    %267 = vector.broadcast %cst_79 : f32 to vector<8x1xf32>
    %268 = arith.divf %266, %267 : vector<8x1xf32>
    %269 = arith.mulf %262, %262 : vector<8x1024xf32>
    %cst_80 = arith.constant dense<0.000000e+00> : vector<8xf32>
    %270 = vector.multi_reduction <add>, %269, %cst_80 [1] : vector<8x1024xf32> to vector<8xf32>
    %271 = vector.shape_cast %270 : vector<8xf32> to vector<8x1xf32>
    %cst_81 = arith.constant 1.024000e+03 : f32
    %272 = vector.broadcast %cst_81 : f32 to vector<8x1xf32>
    %273 = arith.divf %271, %272 : vector<8x1xf32>
    %274 = arith.mulf %268, %268 : vector<8x1xf32>
    %275 = arith.subf %273, %274 : vector<8x1xf32>
    %276 = vector.broadcast %268 : vector<8x1xf32> to vector<8x1024xf32>
    %277 = arith.subf %262, %276 : vector<8x1024xf32>
    %cst_82 = arith.constant 9.99999974E-6 : f32
    %278 = vector.broadcast %cst_82 : f32 to vector<8x1xf32>
    %279 = arith.addf %275, %278 : vector<8x1xf32>
    %280 = math.rsqrt %279 : vector<8x1xf32>
    %281 = vector.broadcast %280 : vector<8x1xf32> to vector<8x1024xf32>
    %282 = arith.mulf %277, %281 : vector<8x1024xf32>
    %283 = vector.broadcast %263 : vector<8x1xf32> to vector<8x1024xf32>
    %284 = arith.mulf %282, %283 : vector<8x1024xf32>
    %285 = vector.broadcast %264 : vector<8x1xf32> to vector<8x1024xf32>
    %286 = arith.addf %284, %285 : vector<8x1024xf32>
    %cst_83 = arith.constant 0.000000e+00 : f32
    %287 = vector.broadcast %cst_83 : f32 to vector<8x1024xf32>
    %288 = arith.maximumf %286, %287 : vector<8x1024xf32>
    %c0_84 = arith.constant 0 : index
    %c0_85 = arith.constant 0 : index
    %289 = vector.load %arg3[%c0_84, %c0_85] : memref<32x8xf32, #tpu.memory_space<vmem>>, vector<32x8xf32>
    %cst_86 = arith.constant dense<0.000000e+00> : vector<32x1024xf32>
    %290 = tpu.matmul %289, %288, %cst_86 {dimension_numbers = #tpu.dot_dimension_numbers<[1], [0], [0], [1], [0, 0, 1, 1], [], []>} : vector<32x8xf32>, vector<8x1024xf32>, vector<32x1024xf32> -> vector<32x1024xf32>
    %c0_87 = arith.constant 0 : index
    %c0_88 = arith.constant 0 : index
    %291 = vector.load %arg9[%c0_87, %c0_88] : memref<32x1xf32, #tpu.memory_space<vmem>>, vector<32x1xf32>
    %c0_89 = arith.constant 0 : index
    %c0_90 = arith.constant 0 : index
    %292 = vector.load %arg10[%c0_89, %c0_90] : memref<32x1xf32, #tpu.memory_space<vmem>>, vector<32x1xf32>
    %cst_91 = arith.constant dense<0.000000e+00> : vector<32xf32>
    %293 = vector.multi_reduction <add>, %290, %cst_91 [1] : vector<32x1024xf32> to vector<32xf32>
    %294 = vector.shape_cast %293 : vector<32xf32> to vector<32x1xf32>
    %cst_92 = arith.constant 1.024000e+03 : f32
    %295 = vector.broadcast %cst_92 : f32 to vector<32x1xf32>
    %296 = arith.divf %294, %295 : vector<32x1xf32>
    %297 = arith.mulf %290, %290 : vector<32x1024xf32>
    %cst_93 = arith.constant dense<0.000000e+00> : vector<32xf32>
    %298 = vector.multi_reduction <add>, %297, %cst_93 [1] : vector<32x1024xf32> to vector<32xf32>
    %299 = vector.shape_cast %298 : vector<32xf32> to vector<32x1xf32>
    %cst_94 = arith.constant 1.024000e+03 : f32
    %300 = vector.broadcast %cst_94 : f32 to vector<32x1xf32>
    %301 = arith.divf %299, %300 : vector<32x1xf32>
    %302 = arith.mulf %296, %296 : vector<32x1xf32>
    %303 = arith.subf %301, %302 : vector<32x1xf32>
    %304 = vector.broadcast %296 : vector<32x1xf32> to vector<32x1024xf32>
    %305 = arith.subf %290, %304 : vector<32x1024xf32>
    %cst_95 = arith.constant 9.99999974E-6 : f32
    %306 = vector.broadcast %cst_95 : f32 to vector<32x1xf32>
    %307 = arith.addf %303, %306 : vector<32x1xf32>
    %308 = math.rsqrt %307 : vector<32x1xf32>
    %309 = vector.broadcast %308 : vector<32x1xf32> to vector<32x1024xf32>
    %310 = arith.mulf %305, %309 : vector<32x1024xf32>
    %311 = vector.broadcast %291 : vector<32x1xf32> to vector<32x1024xf32>
    %312 = arith.mulf %310, %311 : vector<32x1024xf32>
    %313 = vector.broadcast %292 : vector<32x1xf32> to vector<32x1024xf32>
    %314 = arith.addf %312, %313 : vector<32x1024xf32>
    %315 = arith.addf %314, %54 : vector<32x1024xf32>
    %cst_96 = arith.constant 0.000000e+00 : f32
    %316 = vector.broadcast %cst_96 : f32 to vector<32x1024xf32>
    %317 = arith.maximumf %315, %316 : vector<32x1024xf32>
    %c0_97 = arith.constant 0 : index
    %c0_98 = arith.constant 0 : index
    %318 = vector.load %arg13[%c0_97, %c0_98] : memref<32x1024xf32, #tpu.memory_space<vmem>>, vector<32x1024xf32>
    tpu.vector_store %arg13[%c0_97, %c0_98], %317 {strides = array<i32>} : memref<32x1024xf32, #tpu.memory_space<vmem>>, vector<32x1024xf32>,
    return
  }
}

</mosaic_0001>

<llo_original>
// kernel: tpu_custom_call.1
$region0: #{tpu_custom_call.1}
  #allocation0 [shape = 'u32[]', space=smem, size = 0x4, offset = 0x4, fixed_abs, tag = 'smem constant byte address 0x4 - core index']
  #allocation1 [shape = 'u32[144,128]{1,0:T(1,128)}', space=vmem, size = 0x12000, scoped, tag = 'internal scratch']
  #allocation2 [shape = 'bf16[256,1024]{1,0:T(8,128)(2,1)}', space=vmem, size = 0x80000, scoped, tag = 'scratch operand']
  %s0 = inlined_call_operand.hbm [shape: f32[16,1024], index: 0, kind: input, shape index: {}]
  %s1 = inlined_call_operand.vmem [shape: f32[40,16], index: 1, kind: input, shape index: {}]
  %s2 = inlined_call_operand.hbm [shape: f32[8,256], index: 2, kind: input, shape index: {}]
  %s3 = inlined_call_operand.vmem [shape: f32[32,8], index: 3, kind: input, shape index: {}]
  %s4 = inlined_call_operand.vmem [shape: f32[27,1024], index: 4, kind: input, shape index: {}]
  %s5 = inlined_call_operand.vmem [shape: f32[8,1], index: 5, kind: input, shape index: {}]
  %s6 = inlined_call_operand.vmem [shape: f32[8,1], index: 6, kind: input, shape index: {}]
  %s7 = inlined_call_operand.vmem [shape: f32[8,1], index: 7, kind: input, shape index: {}]
  %s8 = inlined_call_operand.vmem [shape: f32[8,1], index: 8, kind: input, shape index: {}]
  %s9 = inlined_call_operand.vmem [shape: f32[32,1], index: 9, kind: input, shape index: {}]
  %s10 = inlined_call_operand.vmem [shape: f32[32,1], index: 10, kind: input, shape index: {}]
  %s11 = inlined_call_operand.vmem [shape: f32[32,1], index: 11, kind: input, shape index: {}]
  %s12 = inlined_call_operand.vmem [shape: f32[32,1], index: 12, kind: input, shape index: {}]
  %s13 = inlined_call_operand.hbm [shape: f32[32,1024], index: 13, kind: output, shape index: {}]
  %s14 = sld [smem:[#allocation0]]
  $region70: #{tpu_custom_call.1} parent=0
    _
  %s16 = ssub.s32 1, %s14
  %s17 = scalar_select 0, %s16, %s14
  $region1: #{tpu_custom_call.1} parent=0
    #allocation3 [shape = 'u8[65536]{0}', space=vmem, size = 0x10000, scoped, tag = 'input window, operand 0, single buffered']
    #allocation4 [shape = 's32[1]{0}', space=sflag, size = 0x4, scoped, tag = 'scoped memory for tpu_custom_call.1']
    #allocation5 [shape = 's32[1]{0}', space=sflag, size = 0x4, scoped, tag = 'scoped memory for tpu_custom_call.1']
    #allocation6 [shape = 'u8[8192]{0}', space=vmem, size = 0x2000, scoped, tag = 'input window, operand 2, single buffered']
    #allocation7 [shape = 's32[1]{0}', space=sflag, size = 0x4, scoped, tag = 'scoped memory for tpu_custom_call.1']
    #allocation8 [shape = 'u8[131072]{0}', space=vmem, size = 0x20000, scoped, tag = 'output window, operand 0, single buffered']
    %18 = vsyncpa [#allocation4], 0
    %19 = vsyncpa [#allocation7], 0
    %20 = vsyncpa [#allocation5], 0
    // Predicated region
    $region2: #{tpu_custom_call.1} parent=1 // pred_check
      _
    $region3: #{tpu_custom_call.1} parent=1 // pred_check_branch
      %22 = sbr.rel (0) target = $region5
    $region4: #{tpu_custom_call.1} parent=1 // pred_region
      %s24 = ssub.s32 2048, 2048
      %25 = vsyncadd [#allocation4], %s24
      %s26 = sshll.u32 [#allocation3], 4
      %s27 = int_to_ptr.vmem [resolvable:$true] %s26
      %32 = dma.hbm_to_vmem [thread:$0]  %s0, 2048, %s27, [#allocation4], 1024, 1024, 64
    $region5: #{tpu_custom_call.1} parent=1 // pred_fallthru
      _
    // Predicated region
    $region6: #{tpu_custom_call.1} parent=1 // pred_check
      _
    $region7: #{tpu_custom_call.1} parent=1 // pred_check_branch
      %34 = sbr.rel (0) target = $region9
    $region8: #{tpu_custom_call.1} parent=1 // pred_region
      _
    $region9: #{tpu_custom_call.1} parent=1 // pred_fallthru
      _
    // Predicated region
    $region10: #{tpu_custom_call.1} parent=1 // pred_check
      _
    $region11: #{tpu_custom_call.1} parent=1 // pred_check_branch
      %36 = sbr.rel (0) target = $region13
    $region12: #{tpu_custom_call.1} parent=1 // pred_region
      %s38 = ssub.s32 256, 256
      %39 = vsyncadd [#allocation7], %s38
      %s41 = sshll.u32 [#allocation6], 4
      %s42 = int_to_ptr.vmem [resolvable:$true] %s41
      %44 = dma.hbm_to_vmem [thread:$0]  %s2, 256, %s42, [#allocation7]
    $region13: #{tpu_custom_call.1} parent=1 // pred_fallthru
      _
    // Predicated region
    $region14: #{tpu_custom_call.1} parent=1 // pred_check
      _
    $region15: #{tpu_custom_call.1} parent=1 // pred_check_branch
      %46 = sbr.rel (0) target = $region17
    $region16: #{tpu_custom_call.1} parent=1 // pred_region
      _
    $region17: #{tpu_custom_call.1} parent=1 // pred_fallthru
      _
    // Predicated region
    $region18: #{tpu_custom_call.1} parent=1 // pred_check
      _
    $region19: #{tpu_custom_call.1} parent=1 // pred_check_branch
      %48 = sbr.rel (0) target = $region21
    $region20: #{tpu_custom_call.1} parent=1 // pred_region
      _
    $region21: #{tpu_custom_call.1} parent=1 // pred_fallthru
      _
    // Predicated region
    $region22: #{tpu_custom_call.1} parent=1 // pred_check
      _
    $region23: #{tpu_custom_call.1} parent=1 // pred_check_branch
      %50 = sbr.rel (0) target = $region25
    $region24: #{tpu_custom_call.1} parent=1 // pred_region
      _
    $region25: #{tpu_custom_call.1} parent=1 // pred_fallthru
      _
    // Predicated region
    $region26: #{tpu_custom_call.1} parent=1 // pred_check
      _
    $region27: #{tpu_custom_call.1} parent=1 // pred_check_branch
      %52 = sbr.rel (0) target = $region29
    $region28: #{tpu_custom_call.1} parent=1 // pred_region
      _
    $region29: #{tpu_custom_call.1} parent=1 // pred_fallthru
      _
    // Predicated region
    $region30: #{tpu_custom_call.1} parent=1 // pred_check
      _
    $region31: #{tpu_custom_call.1} parent=1 // pred_check_branch
      %54 = sbr.rel (0) target = $region33
    $region32: #{tpu_custom_call.1} parent=1 // pred_region
      _
    $region33: #{tpu_custom_call.1} parent=1 // pred_fallthru
      _
    // Predicated region
    $region34: #{tpu_custom_call.1} parent=1 // pred_check
      _
    $region35: #{tpu_custom_call.1} parent=1 // pred_check_branch
      %56 = sbr.rel (0) target = $region37
    $region36: #{tpu_custom_call.1} parent=1 // pred_region
      _
    $region37: #{tpu_custom_call.1} parent=1 // pred_fallthru
      _
    // Predicated region
    $region38: #{tpu_custom_call.1} parent=1 // pred_check
      _
    $region39: #{tpu_custom_call.1} parent=1 // pred_check_branch
      %58 = sbr.rel (0) target = $region41
    $region40: #{tpu_custom_call.1} parent=1 // pred_region
      _
    $region41: #{tpu_custom_call.1} parent=1 // pred_fallthru
      _
    // Predicated region
    $region42: #{tpu_custom_call.1} parent=1 // pred_check
      _
    $region43: #{tpu_custom_call.1} parent=1 // pred_check_branch
      %60 = sbr.rel (0) target = $region45
    $region44: #{tpu_custom_call.1} parent=1 // pred_region
      _
    $region45: #{tpu_custom_call.1} parent=1 // pred_fallthru
      _
    // Predicated region
    $region46: #{tpu_custom_call.1} parent=1 // pred_check
      _
    $region47: #{tpu_custom_call.1} parent=1 // pred_check_branch
      %62 = sbr.rel (0) target = $region49
    $region48: #{tpu_custom_call.1} parent=1 // pred_region
      _
    $region49: #{tpu_custom_call.1} parent=1 // pred_fallthru
      _
    // Predicated region
    $region50: #{tpu_custom_call.1} parent=1 // pred_check
      _
    $region51: #{tpu_custom_call.1} parent=1 // pred_check_branch
      %64 = sbr.rel (0) target = $region53
    $region52: #{tpu_custom_call.1} parent=1 // pred_region
      _
    $region53: #{tpu_custom_call.1} parent=1 // pred_fallthru
      _
    // Predicated region
    $region54: #{tpu_custom_call.1} parent=1 // pred_check
      _
    $region55: #{tpu_custom_call.1} parent=1 // pred_check_branch
      %66 = sbr.rel (0) target = $region57
    $region56: #{tpu_custom_call.1} parent=1 // pred_region
      %67 = dma.done [#allocation4], 2048
    $region57: #{tpu_custom_call.1} parent=1 // pred_fallthru
      _
    // Predicated region
    $region58: #{tpu_custom_call.1} parent=1 // pred_check
      _
    $region59: #{tpu_custom_call.1} parent=1 // pred_check_branch
      %69 = sbr.rel (0) target = $region61
    $region60: #{tpu_custom_call.1} parent=1 // pred_region
      %70 = dma.done [#allocation7], 256
    $region61: #{tpu_custom_call.1} parent=1 // pred_fallthru
      _
    %v72 = vld [vmem:[#allocation3] sm:$0xff]
    %v73 = vld [vmem:[#allocation3 + $0x8] sm:$0xff]
    %v74 = vld [vmem:[#allocation3 + $0x10] sm:$0xff]
    %v75 = vld [vmem:[#allocation3 + $0x18] sm:$0xff]
    %v76 = vld [vmem:[#allocation3 + $0x20] sm:$0xff]
    %v77 = vld [vmem:[#allocation3 + $0x28] sm:$0xff]
    %v78 = vld [vmem:[#allocation3 + $0x30] sm:$0xff]
    %v79 = vld [vmem:[#allocation3 + $0x38] sm:$0xff]
    %v80 = vld [vmem:[#allocation3 + $0x40] sm:$0xff]
    %v81 = vld [vmem:[#allocation3 + $0x48] sm:$0xff]
    %v82 = vld [vmem:[#allocation3 + $0x50] sm:$0xff]
    %v83 = vld [vmem:[#allocation3 + $0x58] sm:$0xff]
    %v84 = vld [vmem:[#allocation3 + $0x60] sm:$0xff]
    %v85 = vld [vmem:[#allocation3 + $0x68] sm:$0xff]
    %v86 = vld [vmem:[#allocation3 + $0x70] sm:$0xff]
    %v87 = vld [vmem:[#allocation3 + $0x78] sm:$0xff]
    %v88 = vld [vmem:[%s1] sm:$0xff]
    %v89 = vld [vmem:[%s1 + $0x8] sm:$0xff]
    %v90 = vld [vmem:[%s1 + $0x10] sm:$0xff]
    %v91 = vld [vmem:[%s1 + $0x18] sm:$0xff]
    %v92 = vld [vmem:[%s1 + $0x20] sm:$0xff]
    %vm93 = vcmask 130048
    %v95 = vsel %vm93, %v88, 0
    %v98 = vsel %vm93, %v89, 0
    %v101 = vsel %vm93, %v90, 0
    %v104 = vsel %vm93, %v91, 0
    %v107 = vsel %vm93, %v92, 0
    %109 = vmatprep.subr.mxu0 0.0
    %110 = vmatpush1.msra.mxu0 0.0
    %111 = vmatprep.subr.mxu0 0.0
    %112 = vmatpush1.msra.mxu0 0.0
    %113 = vmatprep.subr.mxu0 0.0
    %114 = vmatpush1.msra.mxu0 0.0
    %115 = vmatprep.subr.mxu0 0.0
    %116 = vmatpush1.msra.mxu0 0.0
    %117 = vmatprep.subr.mxu0 0.0
    %118 = vmatpush1.msra.mxu0 0.0
    %119 = vmatprep.subr.mxu0 0.0
    %120 = vmatpush1.msra.mxu0 0.0
    %121 = vmatprep.subr.mxu0 0.0
    %122 = vmatpush1.msra.mxu0 0.0
    %123 = vmatprep.subr.mxu0 0.0
    %124 = vmatpush1.msra.mxu0 0.0
    %125 = vmatprep.subr.mxu0 0.0
    %126 = vmatpush1.msra.mxu0 0.0
    %127 = vmatprep.subr.mxu0 0.0
    %128 = vmatpush1.msra.mxu0 0.0
    %129 = vmatprep.subr.mxu0 0.0
    %130 = vmatpush1.msra.mxu0 0.0
    %131 = vmatprep.subr.mxu0 0.0
    %132 = vmatpush1.msra.mxu0 0.0
    %133 = vmatprep.subr.mxu0 0.0
    %134 = vmatpush1.msra.mxu0 0.0
    %135 = vmatprep.subr.mxu0 0.0
    %136 = vmatpush1.msra.mxu0 0.0
    %137 = vmatprep.subr.mxu0 %v81
    %138 = vmatpush1.msra.mxu0 %v80
    %139 = vmatprep.subr.mxu0 %v73
    %140 = vmatpush1.msra.mxu0 %v72
    %141 = vmatprep.subr.mxu0 0.0
    %142 = vmatpush2.msra.mxu0 0.0
    %143 = vmatprep.subr.mxu0 0.0
    %144 = vmatpush2.msra.mxu0 0.0
    %145 = vmatprep.subr.mxu0 0.0
    %146 = vmatpush2.msra.mxu0 0.0
    %147 = vmatprep.subr.mxu0 0.0
    %148 = vmatpush2.msra.mxu0 0.0
    %149 = vmatprep.subr.mxu0 0.0
    %150 = vmatpush2.msra.mxu0 0.0
    %151 = vmatprep.subr.mxu0 0.0
    %152 = vmatpush2.msra.mxu0 0.0
    %153 = vmatprep.subr.mxu0 0.0
    %154 = vmatpush2.msra.mxu0 0.0
    %155 = vmatprep.subr.mxu0 0.0
    %156 = vmatpush2.msra.mxu0 0.0
    %157 = vmatprep.subr.mxu0 0.0
    %158 = vmatpush2.msra.mxu0 0.0
    %159 = vmatprep.subr.mxu0 0.0
    %160 = vmatpush2.msra.mxu0 0.0
    %161 = vmatprep.subr.mxu0 0.0
    %162 = vmatpush2.msra.mxu0 0.0
    %163 = vmatprep.subr.mxu0 0.0
    %164 = vmatpush2.msra.mxu0 0.0
    %165 = vmatprep.subr.mxu0 0.0
    %166 = vmatpush2.msra.mxu0 0.0
    %167 = vmatprep.subr.mxu0 0.0
    %168 = vmatpush2.msra.mxu0 0.0
    %169 = vmatprep.subr.mxu0 0.0
    %170 = vmatpush2.msra.mxu0 0.0
    %171 = vmatprep.subr.mxu0 0.0
    %172 = vmatpush2.msra.mxu0 0.0
    %173 = vmatprep.mubr.f32.mxu0 0.0
    %174 = vmatmul.mubr.f32.gmra.mxu0 %v95
    %v175 = vpop.f32.mrf.mxu0
    %v176 = vadd.f32 0.0, %v175
    %v177 = vpop.f32.mrf.mxu0
    %v178 = vadd.f32 0.0, %v177
    %179 = vmatprep.mubr.f32.mxu0 0.0
    %180 = vmatmul.mubr.f32.gmra.mxu0 %v98
    %v181 = vpop.f32.mrf.mxu0
    %v182 = vadd.f32 0.0, %v181
    %v183 = vpop.f32.mrf.mxu0
    %v184 = vadd.f32 0.0, %v183
    %185 = vmatprep.mubr.f32.mxu0 0.0
    %186 = vmatmul.mubr.f32.gmra.mxu0 %v101
    %v187 = vpop.f32.mrf.mxu0
    %v188 = vadd.f32 0.0, %v187
    %v189 = vpop.f32.mrf.mxu0
    %v190 = vadd.f32 0.0, %v189
    %191 = vmatprep.mubr.f32.mxu0 0.0
    %192 = vmatmul.mubr.f32.gmra.mxu0 %v104
    %v193 = vpop.f32.mrf.mxu0
    %v194 = vadd.f32 0.0, %v193
    %v195 = vpop.f32.mrf.mxu0
    %v196 = vadd.f32 0.0, %v195
    %197 = vmatprep.mubr.f32.mxu0 0.0
    %198 = vmatmul.mubr.f32.gmra.mxu0 %v107
    %v199 = vpop.f32.mrf.mxu0
    %v200 = vadd.f32 0.0, %v199
    %v201 = vpop.f32.mrf.mxu0
    %v202 = vadd.f32 0.0, %v201
    %203 = vdwg.mxu0
    %204 = vmatprep.subr.mxu0 0.0
    %205 = vmatpush1.msra.mxu0 0.0
    %206 = vmatprep.subr.mxu0 0.0
    %207 = vmatpush1.msra.mxu0 0.0
    %208 = vmatprep.subr.mxu0 0.0
    %209 = vmatpush1.msra.mxu0 0.0
    %210 = vmatprep.subr.mxu0 0.0
    %211 = vmatpush1.msra.mxu0 0.0
    %212 = vmatprep.subr.mxu0 0.0
    %213 = vmatpush1.msra.mxu0 0.0
    %214 = vmatprep.subr.mxu0 0.0
    %215 = vmatpush1.msra.mxu0 0.0
    %216 = vmatprep.subr.mxu0 0.0
    %217 = vmatpush1.msra.mxu0 0.0
    %218 = vmatprep.subr.mxu0 0.0
    %219 = vmatpush1.msra.mxu0 0.0
    %220 = vmatprep.subr.mxu0 0.0
    %221 = vmatpush1.msra.mxu0 0.0
    %222 = vmatprep.subr.mxu0 0.0
    %223 = vmatpush1.msra.mxu0 0.0
    %224 = vmatprep.subr.mxu0 0.0
    %225 = vmatpush1.msra.mxu0 0.0
    %226 = vmatprep.subr.mxu0 0.0
    %227 = vmatpush1.msra.mxu0 0.0
    %228 = vmatprep.subr.mxu0 0.0
    %229 = vmatpush1.msra.mxu0 0.0
    %230 = vmatprep.subr.mxu0 0.0
    %231 = vmatpush1.msra.mxu0 0.0
    %232 = vmatprep.subr.mxu0 %v83
    %233 = vmatpush1.msra.mxu0 %v82
    %234 = vmatprep.subr.mxu0 %v75
    %235 = vmatpush1.msra.mxu0 %v74
    %236 = vmatprep.subr.mxu0 0.0
    %237 = vmatpush2.msra.mxu0 0.0
    %238 = vmatprep.subr.mxu0 0.0
    %239 = vmatpush2.msra.mxu0 0.0
    %240 = vmatprep.subr.mxu0 0.0
    %241 = vmatpush2.msra.mxu0 0.0
    %242 = vmatprep.subr.mxu0 0.0
    %243 = vmatpush2.msra.mxu0 0.0
    %244 = vmatprep.subr.mxu0 0.0
    %245 = vmatpush2.msra.mxu0 0.0
    %246 = vmatprep.subr.mxu0 0.0
    %247 = vmatpush2.msra.mxu0 0.0
    %248 = vmatprep.subr.mxu0 0.0
    %249 = vmatpush2.msra.mxu0 0.0
    %250 = vmatprep.subr.mxu0 0.0
    %251 = vmatpush2.msra.mxu0 0.0
    %252 = vmatprep.subr.mxu0 0.0
    %253 = vmatpush2.msra.mxu0 0.0
    %254 = vmatprep.subr.mxu0 0.0
    %255 = vmatpush2.msra.mxu0 0.0
    %256 = vmatprep.subr.mxu0 0.0
    %257 = vmatpush2.msra.mxu0 0.0
    %258 = vmatprep.subr.mxu0 0.0
    %259 = vmatpush2.msra.mxu0 0.0
    %260 = vmatprep.subr.mxu0 0.0
    %261 = vmatpush2.msra.mxu0 0.0
    %262 = vmatprep.subr.mxu0 0.0
    %263 = vmatpush2.msra.mxu0 0.0
    %264 = vmatprep.subr.mxu0 0.0
    %265 = vmatpush2.msra.mxu0 0.0
    %266 = vmatprep.subr.mxu0 0.0
    %267 = vmatpush2.msra.mxu0 0.0
    %268 = vmatprep.mubr.f32.mxu0 0.0
    %269 = vmatmul.mubr.f32.gmra.mxu0 %v95
    %v270 = vpop.f32.mrf.mxu0
    %v271 = vadd.f32 0.0, %v270
    %v272 = vpop.f32.mrf.mxu0
    %v273 = vadd.f32 0.0, %v272
    %274 = vmatprep.mubr.f32.mxu0 0.0
    %275 = vmatmul.mubr.f32.gmra.mxu0 %v98
    %v276 = vpop.f32.mrf.mxu0
    %v277 = vadd.f32 0.0, %v276
    %v278 = vpop.f32.mrf.mxu0
    %v279 = vadd.f32 0.0, %v278
    %280 = vmatprep.mubr.f32.mxu0 0.0
    %281 = vmatmul.mubr.f32.gmra.mxu0 %v101
    %v282 = vpop.f32.mrf.mxu0
    %v283 = vadd.f32 0.0, %v282
    %v284 = vpop.f32.mrf.mxu0
    %v285 = vadd.f32 0.0, %v284
    %286 = vmatprep.mubr.f32.mxu0 0.0
    %287 = vmatmul.mubr.f32.gmra.mxu0 %v104
    %v288 = vpop.f32.mrf.mxu0
    %v289 = vadd.f32 0.0, %v288
    %v290 = vpop.f32.mrf.mxu0
    %v291 = vadd.f32 0.0, %v290
    %292 = vmatprep.mubr.f32.mxu0 0.0
    %293 = vmatmul.mubr.f32.gmra.mxu0 %v107
    %v294 = vpop.f32.mrf.mxu0
    %v295 = vadd.f32 0.0, %v294
    %v296 = vpop.f32.mrf.mxu0
    %v297 = vadd.f32 0.0, %v296
    %298 = vdwg.mxu0
    %299 = vmatprep.subr.mxu0 0.0
    %300 = vmatpush1.msra.mxu0 0.0
    %301 = vmatprep.subr.mxu0 0.0
    %302 = vmatpush1.msra.mxu0 0.0
    %303 = vmatprep.subr.mxu0 0.0
    %304 = vmatpush1.msra.mxu0 0.0
    %305 = vmatprep.subr.mxu0 0.0
    %306 = vmatpush1.msra.mxu0 0.0
    %307 = vmatprep.subr.mxu0 0.0
    %308 = vmatpush1.msra.mxu0 0.0
    %309 = vmatprep.subr.mxu0 0.0
    %310 = vmatpush1.msra.mxu0 0.0
    %311 = vmatprep.subr.mxu0 0.0
    %312 = vmatpush1.msra.mxu0 0.0
    %313 = vmatprep.subr.mxu0 0.0
    %314 = vmatpush1.msra.mxu0 0.0
    %315 = vmatprep.subr.mxu0 0.0
    %316 = vmatpush1.msra.mxu0 0.0
    %317 = vmatprep.subr.mxu0 0.0
    %318 = vmatpush1.msra.mxu0 0.0
    %319 = vmatprep.subr.mxu0 0.0
    %320 = vmatpush1.msra.mxu0 0.0
    %321 = vmatprep.subr.mxu0 0.0
    %322 = vmatpush1.msra.mxu0 0.0
    %323 = vmatprep.subr.mxu0 0.0
    %324 = vmatpush1.msra.mxu0 0.0
    %325 = vmatprep.subr.mxu0 0.0
    %326 = vmatpush1.msra.mxu0 0.0
    %327 = vmatprep.subr.mxu0 %v85
    %328 = vmatpush1.msra.mxu0 %v84
    %329 = vmatprep.subr.mxu0 %v77
    %330 = vmatpush1.msra.mxu0 %v76
    %331 = vmatprep.subr.mxu0 0.0
    %332 = vmatpush2.msra.mxu0 0.0
    %333 = vmatprep.subr.mxu0 0.0
    %334 = vmatpush2.msra.mxu0 0.0
    %335 = vmatprep.subr.mxu0 0.0
    %336 = vmatpush2.msra.mxu0 0.0
    %337 = vmatprep.subr.mxu0 0.0
    %338 = vmatpush2.msra.mxu0 0.0
    %339 = vmatprep.subr.mxu0 0.0
    %340 = vmatpush2.msra.mxu0 0.0
    %341 = vmatprep.subr.mxu0 0.0
    %342 = vmatpush2.msra.mxu0 0.0
    %343 = vmatprep.subr.mxu0 0.0
    %344 = vmatpush2.msra.mxu0 0.0
    %345 = vmatprep.subr.mxu0 0.0
    %346 = vmatpush2.msra.mxu0 0.0
    %347 = vmatprep.subr.mxu0 0.0
    %348 = vmatpush2.msra.mxu0 0.0
    %349 = vmatprep.subr.mxu0 0.0
    %350 = vmatpush2.msra.mxu0 0.0
    %351 = vmatprep.subr.mxu0 0.0
    %352 = vmatpush2.msra.mxu0 0.0
    %353 = vmatprep.subr.mxu0 0.0
    %354 = vmatpush2.msra.mxu0 0.0
    %355 = vmatprep.subr.mxu0 0.0
    %356 = vmatpush2.msra.mxu0 0.0
    %357 = vmatprep.subr.mxu0 0.0
    %358 = vmatpush2.msra.mxu0 0.0
    %359 = vmatprep.subr.mxu0 0.0
    %360 = vmatpush2.msra.mxu0 0.0
    %361 = vmatprep.subr.mxu0 0.0
    %362 = vmatpush2.msra.mxu0 0.0
    %363 = vmatprep.mubr.f32.mxu0 0.0
    %364 = vmatmul.mubr.f32.gmra.mxu0 %v95
    %v365 = vpop.f32.mrf.mxu0
    %v366 = vadd.f32 0.0, %v365
    %v367 = vpop.f32.mrf.mxu0
    %v368 = vadd.f32 0.0, %v367
    %369 = vmatprep.mubr.f32.mxu0 0.0
    %370 = vmatmul.mubr.f32.gmra.mxu0 %v98
    %v371 = vpop.f32.mrf.mxu0
    %v372 = vadd.f32 0.0, %v371
    %v373 = vpop.f32.mrf.mxu0
    %v374 = vadd.f32 0.0, %v373
    %375 = vmatprep.mubr.f32.mxu0 0.0
    %376 = vmatmul.mubr.f32.gmra.mxu0 %v101
    %v377 = vpop.f32.mrf.mxu0
    %v378 = vadd.f32 0.0, %v377
    %v379 = vpop.f32.mrf.mxu0
    %v380 = vadd.f32 0.0, %v379
    %381 = vmatprep.mubr.f32.mxu0 0.0
    %382 = vmatmul.mubr.f32.gmra.mxu0 %v104
    %v383 = vpop.f32.mrf.mxu0
    %v384 = vadd.f32 0.0, %v383
    %v385 = vpop.f32.mrf.mxu0
    %v386 = vadd.f32 0.0, %v385
    %387 = vmatprep.mubr.f32.mxu0 0.0
    %388 = vmatmul.mubr.f32.gmra.mxu0 %v107
    %v389 = vpop.f32.mrf.mxu0
    %v390 = vadd.f32 0.0, %v389
    %v391 = vpop.f32.mrf.mxu0
    %v392 = vadd.f32 0.0, %v391
    %393 = vdwg.mxu0
    %394 = vmatprep.subr.mxu0 0.0
    %395 = vmatpush1.msra.mxu0 0.0
    %396 = vmatprep.subr.mxu0 0.0
    %397 = vmatpush1.msra.mxu0 0.0
    %398 = vmatprep.subr.mxu0 0.0
    %399 = vmatpush1.msra.mxu0 0.0
    %400 = vmatprep.subr.mxu0 0.0
    %401 = vmatpush1.msra.mxu0 0.0
    %402 = vmatprep.subr.mxu0 0.0
    %403 = vmatpush1.msra.mxu0 0.0
    %404 = vmatprep.subr.mxu0 0.0
    %405 = vmatpush1.msra.mxu0 0.0
    %406 = vmatprep.subr.mxu0 0.0
    %407 = vmatpush1.msra.mxu0 0.0
    %408 = vmatprep.subr.mxu0 0.0
    %409 = vmatpush1.msra.mxu0 0.0
    %410 = vmatprep.subr.mxu0 0.0
    %411 = vmatpush1.msra.mxu0 0.0
    %412 = vmatprep.subr.mxu0 0.0
    %413 = vmatpush1.msra.mxu0 0.0
    %414 = vmatprep.subr.mxu0 0.0
    %415 = vmatpush1.msra.mxu0 0.0
    %416 = vmatprep.subr.mxu0 0.0
    %417 = vmatpush1.msra.mxu0 0.0
    %418 = vmatprep.subr.mxu0 0.0
    %419 = vmatpush1.msra.mxu0 0.0
    %420 = vmatprep.subr.mxu0 0.0
    %421 = vmatpush1.msra.mxu0 0.0
    %422 = vmatprep.subr.mxu0 %v87
    %423 = vmatpush1.msra.mxu0 %v86
    %424 = vmatprep.subr.mxu0 %v79
    %425 = vmatpush1.msra.mxu0 %v78
    %426 = vmatprep.subr.mxu0 0.0
    %427 = vmatpush2.msra.mxu0 0.0
    %428 = vmatprep.subr.mxu0 0.0
    %429 = vmatpush2.msra.mxu0 0.0
    %430 = vmatprep.subr.mxu0 0.0
    %431 = vmatpush2.msra.mxu0 0.0
    %432 = vmatprep.subr.mxu0 0.0
    %433 = vmatpush2.msra.mxu0 0.0
    %434 = vmatprep.subr.mxu0 0.0
    %435 = vmatpush2.msra.mxu0 0.0
    %436 = vmatprep.subr.mxu0 0.0
    %437 = vmatpush2.msra.mxu0 0.0
    %438 = vmatprep.subr.mxu0 0.0
    %439 = vmatpush2.msra.mxu0 0.0
    %440 = vmatprep.subr.mxu0 0.0
    %441 = vmatpush2.msra.mxu0 0.0
    %442 = vmatprep.subr.mxu0 0.0
    %443 = vmatpush2.msra.mxu0 0.0
    %444 = vmatprep.subr.mxu0 0.0
    %445 = vmatpush2.msra.mxu0 0.0
    %446 = vmatprep.subr.mxu0 0.0
    %447 = vmatpush2.msra.mxu0 0.0
    %448 = vmatprep.subr.mxu0 0.0
    %449 = vmatpush2.msra.mxu0 0.0
    %450 = vmatprep.subr.mxu0 0.0
    %451 = vmatpush2.msra.mxu0 0.0
    %452 = vmatprep.subr.mxu0 0.0
    %453 = vmatpush2.msra.mxu0 0.0
    %454 = vmatprep.subr.mxu0 0.0
    %455 = vmatpush2.msra.mxu0 0.0
    %456 = vmatprep.subr.mxu0 0.0
    %457 = vmatpush2.msra.mxu0 0.0
    %458 = vmatprep.mubr.f32.mxu0 0.0
    %459 = vmatmul.mubr.f32.gmra.mxu0 %v95
    %v460 = vpop.f32.mrf.mxu0
    %v461 = vadd.f32 0.0, %v460
    %v462 = vpop.f32.mrf.mxu0
    %v463 = vadd.f32 0.0, %v462
    %464 = vmatprep.mubr.f32.mxu0 0.0
    %465 = vmatmul.mubr.f32.gmra.mxu0 %v98
    %v466 = vpop.f32.mrf.mxu0
    %v467 = vadd.f32 0.0, %v466
    %v468 = vpop.f32.mrf.mxu0
    %v469 = vadd.f32 0.0, %v468
    %470 = vmatprep.mubr.f32.mxu0 0.0
    %471 = vmatmul.mubr.f32.gmra.mxu0 %v101
    %v472 = vpop.f32.mrf.mxu0
    %v473 = vadd.f32 0.0, %v472
    %v474 = vpop.f32.mrf.mxu0
    %v475 = vadd.f32 0.0, %v474
    %476 = vmatprep.mubr.f32.mxu0 0.0
    %477 = vmatmul.mubr.f32.gmra.mxu0 %v104
    %v478 = vpop.f32.mrf.mxu0
    %v479 = vadd.f32 0.0, %v478
    %v480 = vpop.f32.mrf.mxu0
    %v481 = vadd.f32 0.0, %v480
    %482 = vmatprep.mubr.f32.mxu0 0.0
    %483 = vmatmul.mubr.f32.gmra.mxu0 %v107
    %v484 = vpop.f32.mrf.mxu0
    %v485 = vadd.f32 0.0, %v484
    %v486 = vpop.f32.mrf.mxu0
    %v487 = vadd.f32 0.0, %v486
    %488 = vdwg.mxu0
    %v489 = vld [vmem:[%s5] sm:$0xff]
    %v490 = vld [vmem:[%s6] sm:$0xff]
    %v491 = vadd.f32 %v176, %v178
    %v492 = vadd.f32 %v491, %v271
    %v493 = vadd.f32 %v492, %v273
    %v494 = vadd.f32 %v493, %v366
    %v495 = vadd.f32 %v494, %v368
    %v496 = vadd.f32 %v495, %v461
    %v497 = vadd.f32 %v496, %v463
    %498 = vadd.xlane.f32.xlu0 %v497
    %v499 = vpop.xlane.xlu0 %498
    %v500 = vrcp.pop 1024.0
    %v501 = vmul.f32 %v499, %v500
    %v502 = vmul.f32 %v176, %v176
    %v503 = vmul.f32 %v178, %v178
    %v504 = vmul.f32 %v271, %v271
    %v505 = vmul.f32 %v273, %v273
    %v506 = vmul.f32 %v366, %v366
    %v507 = vmul.f32 %v368, %v368
    %v508 = vmul.f32 %v461, %v461
    %v509 = vmul.f32 %v463, %v463
    %v510 = vadd.f32 %v502, %v503
    %v511 = vadd.f32 %v510, %v504
    %v512 = vadd.f32 %v511, %v505
    %v513 = vadd.f32 %v512, %v506
    %v514 = vadd.f32 %v513, %v507
    %v515 = vadd.f32 %v514, %v508
    %v516 = vadd.f32 %v515, %v509
    %517 = vadd.xlane.f32.xlu0 %v516
    %v518 = vpop.xlane.xlu0 %517
    %v519 = vmul.f32 %v518, %v500
    %v520 = vmul.f32 %v501, %v501
    %v521 = vsub.f32 %v519, %v520
    %v522 = vsub.f32 %v176, %v501
    %v523 = vsub.f32 %v178, %v501
    %v524 = vsub.f32 %v271, %v501
    %v525 = vsub.f32 %v273, %v501
    %v526 = vsub.f32 %v366, %v501
    %v527 = vsub.f32 %v368, %v501
    %v528 = vsub.f32 %v461, %v501
    %v529 = vsub.f32 %v463, %v501
    %v530 = vadd.f32 %v521, 1e-05
    %v531 = vrsqrt.pop %v530
    %v532 = vmul.f32 %v522, %v531
    %v533 = vmul.f32 %v523, %v531
    %v534 = vmul.f32 %v524, %v531
    %v535 = vmul.f32 %v525, %v531
    %v536 = vmul.f32 %v526, %v531
    %v537 = vmul.f32 %v527, %v531
    %v538 = vmul.f32 %v528, %v531
    %v539 = vmul.f32 %v529, %v531
    %541 = vset.pattern.permute.xlu0 0
    %542 = vperm.xlu0 %541, %v489
    %v543 = vpop.permute.xlu0 %542
    %v545 = vmul.f32 %v532, %v543
    %v546 = vmul.f32 %v533, %v543
    %v547 = vmul.f32 %v534, %v543
    %v548 = vmul.f32 %v535, %v543
    %v549 = vmul.f32 %v536, %v543
    %v550 = vmul.f32 %v537, %v543
    %v551 = vmul.f32 %v538, %v543
    %v552 = vmul.f32 %v539, %v543
    %554 = vset.pattern.permute.xlu0 0
    %555 = vperm.xlu0 %554, %v490
    %v556 = vpop.permute.xlu0 %555
    %v558 = vadd.f32 %v545, %v556
    %v559 = vadd.f32 %v546, %v556
    %v560 = vadd.f32 %v547, %v556
    %v561 = vadd.f32 %v548, %v556
    %v562 = vadd.f32 %v549, %v556
    %v563 = vadd.f32 %v550, %v556
    %v564 = vadd.f32 %v551, %v556
    %v565 = vadd.f32 %v552, %v556
    %v566 = vmax.f32 %v558, 0.0
    %v567 = vmax.f32 %v559, 0.0
    %v568 = vmax.f32 %v560, 0.0
    %v569 = vmax.f32 %v561, 0.0
    %v570 = vmax.f32 %v562, 0.0
    %v571 = vmax.f32 %v563, 0.0
    %v572 = vmax.f32 %v564, 0.0
    %v573 = vmax.f32 %v565, 0.0
    %v574 = vld [vmem:[%s11] sm:$0xff]
    %v575 = vld [vmem:[%s11 + $0x8] sm:$0xff]
    %v576 = vld [vmem:[%s11 + $0x10] sm:$0xff]
    %v577 = vld [vmem:[%s11 + $0x18] sm:$0xff]
    %v578 = vld [vmem:[%s12] sm:$0xff]
    %v579 = vld [vmem:[%s12 + $0x8] sm:$0xff]
    %v580 = vld [vmem:[%s12 + $0x10] sm:$0xff]
    %v581 = vld [vmem:[%s12 + $0x18] sm:$0xff]
    %v582 = vadd.f32 %v182, %v184
    %v583 = vadd.f32 %v582, %v277
    %v584 = vadd.f32 %v583, %v279
    %v585 = vadd.f32 %v584, %v372
    %v586 = vadd.f32 %v585, %v374
    %v587 = vadd.f32 %v586, %v467
    %v588 = vadd.f32 %v587, %v469
    %589 = vadd.xlane.f32.xlu0 %v588
    %v590 = vpop.xlane.xlu0 %589
    %v591 = vadd.f32 %v188, %v190
    %v592 = vadd.f32 %v591, %v283
    %v593 = vadd.f32 %v592, %v285
    %v594 = vadd.f32 %v593, %v378
    %v595 = vadd.f32 %v594, %v380
    %v596 = vadd.f32 %v595, %v473
    %v597 = vadd.f32 %v596, %v475
    %598 = vadd.xlane.f32.xlu0 %v597
    %v599 = vpop.xlane.xlu0 %598
    %v600 = vadd.f32 %v194, %v196
    %v601 = vadd.f32 %v600, %v289
    %v602 = vadd.f32 %v601, %v291
    %v603 = vadd.f32 %v602, %v384
    %v604 = vadd.f32 %v603, %v386
    %v605 = vadd.f32 %v604, %v479
    %v606 = vadd.f32 %v605, %v481
    %607 = vadd.xlane.f32.xlu0 %v606
    %v608 = vpop.xlane.xlu0 %607
    %v609 = vadd.f32 %v200, %v202
    %v610 = vadd.f32 %v609, %v295
    %v611 = vadd.f32 %v610, %v297
    %v612 = vadd.f32 %v611, %v390
    %v613 = vadd.f32 %v612, %v392
    %v614 = vadd.f32 %v613, %v485
    %v615 = vadd.f32 %v614, %v487
    %616 = vadd.xlane.f32.xlu0 %v615
    %v617 = vpop.xlane.xlu0 %616
    %v618 = vmul.f32 %v590, %v500
    %v619 = vmul.f32 %v599, %v500
    %v620 = vmul.f32 %v608, %v500
    %v621 = vmul.f32 %v617, %v500
    %v622 = vmul.f32 %v182, %v182
    %v623 = vmul.f32 %v184, %v184
    %v624 = vmul.f32 %v277, %v277
    %v625 = vmul.f32 %v279, %v279
    %v626 = vmul.f32 %v372, %v372
    %v627 = vmul.f32 %v374, %v374
    %v628 = vmul.f32 %v467, %v467
    %v629 = vmul.f32 %v469, %v469
    %v630 = vmul.f32 %v188, %v188
    %v631 = vmul.f32 %v190, %v190
    %v632 = vmul.f32 %v283, %v283
    %v633 = vmul.f32 %v285, %v285
    %v634 = vmul.f32 %v378, %v378
    %v635 = vmul.f32 %v380, %v380
    %v636 = vmul.f32 %v473, %v473
    %v637 = vmul.f32 %v475, %v475
    %v638 = vmul.f32 %v194, %v194
    %v639 = vmul.f32 %v196, %v196
    %v640 = vmul.f32 %v289, %v289
    %v641 = vmul.f32 %v291, %v291
    %v642 = vmul.f32 %v384, %v384
    %v643 = vmul.f32 %v386, %v386
    %v644 = vmul.f32 %v479, %v479
    %v645 = vmul.f32 %v481, %v481
    %v646 = vmul.f32 %v200, %v200
    %v647 = vmul.f32 %v202, %v202
    %v648 = vmul.f32 %v295, %v295
    %v649 = vmul.f32 %v297, %v297
    %v650 = vmul.f32 %v390, %v390
    %v651 = vmul.f32 %v392, %v392
    %v652 = vmul.f32 %v485, %v485
    %v653 = vmul.f32 %v487, %v487
    %v654 = vadd.f32 %v622, %v623
    %v655 = vadd.f32 %v654, %v624
    %v656 = vadd.f32 %v655, %v625
    %v657 = vadd.f32 %v656, %v626
    %v658 = vadd.f32 %v657, %v627
    %v659 = vadd.f32 %v658, %v628
    %v660 = vadd.f32 %v659, %v629
    %661 = vadd.xlane.f32.xlu0 %v660
    %v662 = vpop.xlane.xlu0 %661
    %v663 = vadd.f32 %v630, %v631
    %v664 = vadd.f32 %v663, %v632
    %v665 = vadd.f32 %v664, %v633
    %v666 = vadd.f32 %v665, %v634
    %v667 = vadd.f32 %v666, %v635
    %v668 = vadd.f32 %v667, %v636
    %v669 = vadd.f32 %v668, %v637
    %670 = vadd.xlane.f32.xlu0 %v669
    %v671 = vpop.xlane.xlu0 %670
    %v672 = vadd.f32 %v638, %v639
    %v673 = vadd.f32 %v672, %v640
    %v674 = vadd.f32 %v673, %v641
    %v675 = vadd.f32 %v674, %v642
    %v676 = vadd.f32 %v675, %v643
    %v677 = vadd.f32 %v676, %v644
    %v678 = vadd.f32 %v677, %v645
    %679 = vadd.xlane.f32.xlu0 %v678
    %v680 = vpop.xlane.xlu0 %679
    %v681 = vadd.f32 %v646, %v647
    %v682 = vadd.f32 %v681, %v648
    %v683 = vadd.f32 %v682, %v649
    %v684 = vadd.f32 %v683, %v650
    %v685 = vadd.f32 %v684, %v651
    %v686 = vadd.f32 %v685, %v652
    %v687 = vadd.f32 %v686, %v653
    %688 = vadd.xlane.f32.xlu0 %v687
    %v689 = vpop.xlane.xlu0 %688
    %v690 = vmul.f32 %v662, %v500
    %v691 = vmul.f32 %v671, %v500
    %v692 = vmul.f32 %v680, %v500
    %v693 = vmul.f32 %v689, %v500
    %v694 = vmul.f32 %v618, %v618
    %v695 = vmul.f32 %v619, %v619
    %v696 = vmul.f32 %v620, %v620
    %v697 = vmul.f32 %v621, %v621
    %v698 = vsub.f32 %v690, %v694
    %v699 = vsub.f32 %v691, %v695
    %v700 = vsub.f32 %v692, %v696
    %v701 = vsub.f32 %v693, %v697
    %v702 = vsub.f32 %v182, %v618
    %v703 = vsub.f32 %v184, %v618
    %v704 = vsub.f32 %v277, %v618
    %v705 = vsub.f32 %v279, %v618
    %v706 = vsub.f32 %v372, %v618
    %v707 = vsub.f32 %v374, %v618
    %v708 = vsub.f32 %v467, %v618
    %v709 = vsub.f32 %v469, %v618
    %v710 = vsub.f32 %v188, %v619
    %v711 = vsub.f32 %v190, %v619
    %v712 = vsub.f32 %v283, %v619
    %v713 = vsub.f32 %v285, %v619
    %v714 = vsub.f32 %v378, %v619
    %v715 = vsub.f32 %v380, %v619
    %v716 = vsub.f32 %v473, %v619
    %v717 = vsub.f32 %v475, %v619
    %v718 = vsub.f32 %v194, %v620
    %v719 = vsub.f32 %v196, %v620
    %v720 = vsub.f32 %v289, %v620
    %v721 = vsub.f32 %v291, %v620
    %v722 = vsub.f32 %v384, %v620
    %v723 = vsub.f32 %v386, %v620
    %v724 = vsub.f32 %v479, %v620
    %v725 = vsub.f32 %v481, %v620
    %v726 = vsub.f32 %v200, %v621
    %v727 = vsub.f32 %v202, %v621
    %v728 = vsub.f32 %v295, %v621
    %v729 = vsub.f32 %v297, %v621
    %v730 = vsub.f32 %v390, %v621
    %v731 = vsub.f32 %v392, %v621
    %v732 = vsub.f32 %v485, %v621
    %v733 = vsub.f32 %v487, %v621
    %v734 = vadd.f32 %v698, 1e-05
    %v735 = vadd.f32 %v699, 1e-05
    %v736 = vadd.f32 %v700, 1e-05
    %v737 = vadd.f32 %v701, 1e-05
    %v738 = vrsqrt.pop %v734
    %v739 = vrsqrt.pop %v735
    %v740 = vrsqrt.pop %v736
    %v741 = vrsqrt.pop %v737
    %v742 = vmul.f32 %v702, %v738
    %v743 = vmul.f32 %v703, %v738
    %v744 = vmul.f32 %v704, %v738
    %v745 = vmul.f32 %v705, %v738
    %v746 = vmul.f32 %v706, %v738
    %v747 = vmul.f32 %v707, %v738
    %v748 = vmul.f32 %v708, %v738
    %v749 = vmul.f32 %v709, %v738
    %v750 = vmul.f32 %v710, %v739
    %v751 = vmul.f32 %v711, %v739
    %v752 = vmul.f32 %v712, %v739
    %v753 = vmul.f32 %v713, %v739
    %v754 = vmul.f32 %v714, %v739
    %v755 = vmul.f32 %v715, %v739
    %v756 = vmul.f32 %v716, %v739
    %v757 = vmul.f32 %v717, %v739
    %v758 = vmul.f32 %v718, %v740
    %v759 = vmul.f32 %v719, %v740
    %v760 = vmul.f32 %v720, %v740
    %v761 = vmul.f32 %v721, %v740
    %v762 = vmul.f32 %v722, %v740
    %v763 = vmul.f32 %v723, %v740
    %v764 = vmul.f32 %v724, %v740
    %v765 = vmul.f32 %v725, %v740
    %v766 = vmul.f32 %v726, %v741
    %v767 = vmul.f32 %v727, %v741
    %v768 = vmul.f32 %v728, %v741
    %v769 = vmul.f32 %v729, %v741
    %v770 = vmul.f32 %v730, %v741
    %v771 = vmul.f32 %v731, %v741
    %v772 = vmul.f32 %v732, %v741
    %v773 = vmul.f32 %v733, %v741
    %775 = vset.pattern.permute.xlu0 0
    %776 = vperm.xlu0 %775, %v574
    %v777 = vpop.permute.xlu0 %776
    %780 = vset.pattern.permute.xlu0 0
    %781 = vperm.xlu0 %780, %v575
    %v782 = vpop.permute.xlu0 %781
    %785 = vset.pattern.permute.xlu0 0
    %786 = vperm.xlu0 %785, %v576
    %v787 = vpop.permute.xlu0 %786
    %790 = vset.pattern.permute.xlu0 0
    %791 = vperm.xlu0 %790, %v577
    %v792 = vpop.permute.xlu0 %791
    %v794 = vmul.f32 %v742, %v777
    %v795 = vmul.f32 %v743, %v777
    %v796 = vmul.f32 %v744, %v777
    %v797 = vmul.f32 %v745, %v777
    %v798 = vmul.f32 %v746, %v777
    %v799 = vmul.f32 %v747, %v777
    %v800 = vmul.f32 %v748, %v777
    %v801 = vmul.f32 %v749, %v777
    %v802 = vmul.f32 %v750, %v782
    %v803 = vmul.f32 %v751, %v782
    %v804 = vmul.f32 %v752, %v782
    %v805 = vmul.f32 %v753, %v782
    %v806 = vmul.f32 %v754, %v782
    %v807 = vmul.f32 %v755, %v782
    %v808 = vmul.f32 %v756, %v782
    %v809 = vmul.f32 %v757, %v782
    %v810 = vmul.f32 %v758, %v787
    %v811 = vmul.f32 %v759, %v787
    %v812 = vmul.f32 %v760, %v787
    %v813 = vmul.f32 %v761, %v787
    %v814 = vmul.f32 %v762, %v787
    %v815 = vmul.f32 %v763, %v787
    %v816 = vmul.f32 %v764, %v787
    %v817 = vmul.f32 %v765, %v787
    %v818 = vmul.f32 %v766, %v792
    %v819 = vmul.f32 %v767, %v792
    %v820 = vmul.f32 %v768, %v792
    %v821 = vmul.f32 %v769, %v792
    %v822 = vmul.f32 %v770, %v792
    %v823 = vmul.f32 %v771, %v792
    %v824 = vmul.f32 %v772, %v792
    %v825 = vmul.f32 %v773, %v792
    %827 = vset.pattern.permute.xlu0 0
    %828 = vperm.xlu0 %827, %v578
    %v829 = vpop.permute.xlu0 %828
    %832 = vset.pattern.permute.xlu0 0
    %833 = vperm.xlu0 %832, %v579
    %v834 = vpop.permute.xlu0 %833
    %837 = vset.pattern.permute.xlu0 0
    %838 = vperm.xlu0 %837, %v580
    %v839 = vpop.permute.xlu0 %838
    %842 = vset.pattern.permute.xlu0 0
    %843 = vperm.xlu0 %842, %v581
    %v844 = vpop.permute.xlu0 %843
    %v846 = vadd.f32 %v794, %v829
    %v847 = vadd.f32 %v795, %v829
    %v848 = vadd.f32 %v796, %v829
    %v849 = vadd.f32 %v797, %v829
    %v850 = vadd.f32 %v798, %v829
    %v851 = vadd.f32 %v799, %v829
    %v852 = vadd.f32 %v800, %v829
    %v853 = vadd.f32 %v801, %v829
    %v854 = vadd.f32 %v802, %v834
    %v855 = vadd.f32 %v803, %v834
    %v856 = vadd.f32 %v804, %v834
    %v857 = vadd.f32 %v805, %v834
    %v858 = vadd.f32 %v806, %v834
    %v859 = vadd.f32 %v807, %v834
    %v860 = vadd.f32 %v808, %v834
    %v861 = vadd.f32 %v809, %v834
    %v862 = vadd.f32 %v810, %v839
    %v863 = vadd.f32 %v811, %v839
    %v864 = vadd.f32 %v812, %v839
    %v865 = vadd.f32 %v813, %v839
    %v866 = vadd.f32 %v814, %v839
    %v867 = vadd.f32 %v815, %v839
    %v868 = vadd.f32 %v816, %v839
    %v869 = vadd.f32 %v817, %v839
    %v870 = vadd.f32 %v818, %v844
    %v871 = vadd.f32 %v819, %v844
    %v872 = vadd.f32 %v820, %v844
    %v873 = vadd.f32 %v821, %v844
    %v874 = vadd.f32 %v822, %v844
    %v875 = vadd.f32 %v823, %v844
    %v876 = vadd.f32 %v824, %v844
    %v877 = vadd.f32 %v825, %v844
    %879 = vrot.lane.b32.xlu0 %v573, 73
    %v880 = vpop.permute.xlu0 %879
    %889 = vrot.lane.b32.xlu0 %v566, 73
    %v890 = vpop.permute.xlu0 %889
    %891 = vrot.lane.b32.xlu0 %v567, 73
    %v892 = vpop.permute.xlu0 %891
    %893 = vrot.lane.b32.xlu0 %v568, 73
    %v894 = vpop.permute.xlu0 %893
    %895 = vrot.lane.b32.xlu0 %v569, 73
    %v896 = vpop.permute.xlu0 %895
    %897 = vrot.lane.b32.xlu0 %v570, 73
    %v898 = vpop.permute.xlu0 %897
    %899 = vrot.lane.b32.xlu0 %v571, 73
    %v900 = vpop.permute.xlu0 %899
    %901 = vrot.lane.b32.xlu0 %v572, 73
    %v902 = vpop.permute.xlu0 %901
    %vm903 = vcmask 596992
    %v904 = vsel %vm903, %v890, %v892
    %v905 = vsel %vm903, %v892, %v894
    %v906 = vsel %vm903, %v894, %v896
    %v907 = vsel %vm903, %v896, %v898
    %v908 = vsel %vm903, %v898, %v900
    %v909 = vsel %vm903, %v900, %v902
    %v910 = vsel %vm903, %v902, %v880
    %v919 = vsel %vm903, %v880, %v890
    %v920 = vld [vmem:[%s4] ss:$8 sm:$0xf]
    %v921 = vld [vmem:[%s4] ss:$8 sm:$0xf0]
    %v922 = vor.u32 %v920, %v921
    %v924 = vlaneseq
    %v925 = vshrl.u32 %v924, 7
    %v926 = vsub.s32 0, %v925
    %v927 = vrot.slane %v922, %v926
    %v928 = vlaneseq
    %v929 = vshrl.u32 %v928, 7
    %v930 = vsub.s32 1, %v929
    %v931 = vrot.slane %v922, %v930
    %v932 = vlaneseq
    %v933 = vshrl.u32 %v932, 7
    %v934 = vsub.s32 2, %v933
    %v935 = vrot.slane %v922, %v934
    %v936 = vlaneseq
    %v937 = vshrl.u32 %v936, 7
    %v938 = vsub.s32 3, %v937
    %v939 = vrot.slane %v922, %v938
    %v940 = vlaneseq
    %v941 = vshrl.u32 %v940, 7
    %v942 = vsub.s32 4, %v941
    %v943 = vrot.slane %v922, %v942
    %v944 = vlaneseq
    %v945 = vshrl.u32 %v944, 7
    %v946 = vsub.s32 5, %v945
    %v947 = vrot.slane %v922, %v946
    %v948 = vlaneseq
    %v949 = vshrl.u32 %v948, 7
    %v950 = vsub.s32 6, %v949
    %v951 = vrot.slane %v922, %v950
    %v952 = vlaneseq
    %v953 = vshrl.u32 %v952, 7
    %v954 = vsub.s32 7, %v953
    %v955 = vrot.slane %v922, %v954
    %v964 = vmul.f32 %v919, %v927
    %v965 = vmul.f32 %v904, %v931
    %v966 = vmul.f32 %v905, %v935
    %v967 = vmul.f32 %v906, %v939
    %v968 = vmul.f32 %v907, %v943
    %v969 = vmul.f32 %v908, %v947
    %v970 = vmul.f32 %v909, %v951
    %v971 = vmul.f32 %v910, %v955
    %972 = vrot.lane.b32.xlu0 %v573, 72
    %v973 = vpop.permute.xlu0 %972
    %975 = vrot.lane.b32.xlu0 %v566, 72
    %v976 = vpop.permute.xlu0 %975
    %977 = vrot.lane.b32.xlu0 %v567, 72
    %v978 = vpop.permute.xlu0 %977
    %979 = vrot.lane.b32.xlu0 %v568, 72
    %v980 = vpop.permute.xlu0 %979
    %981 = vrot.lane.b32.xlu0 %v569, 72
    %v982 = vpop.permute.xlu0 %981
    %983 = vrot.lane.b32.xlu0 %v570, 72
    %v984 = vpop.permute.xlu0 %983
    %985 = vrot.lane.b32.xlu0 %v571, 72
    %v986 = vpop.permute.xlu0 %985
    %987 = vrot.lane.b32.xlu0 %v572, 72
    %v988 = vpop.permute.xlu0 %987
    %vm989 = vcmask 588800
    %v990 = vsel %vm989, %v976, %v978
    %v991 = vsel %vm989, %v978, %v980
    %v992 = vsel %vm989, %v980, %v982
    %v993 = vsel %vm989, %v982, %v984
    %v994 = vsel %vm989, %v984, %v986
    %v995 = vsel %vm989, %v986, %v988
    %v996 = vsel %vm989, %v988, %v973
    %v1005 = vsel %vm989, %v973, %v976
    %s1006 = scalar_lea.vmem %s4, 1
    %v1007 = vld [vmem:[%s1006] ss:$8 sm:$0xf]
    %v1008 = vld [vmem:[%s1006] ss:$8 sm:$0xf0]
    %v1009 = vor.u32 %v1007, %v1008
    %v1011 = vlaneseq
    %v1012 = vshrl.u32 %v1011, 7
    %v1013 = vsub.s32 0, %v1012
    %v1014 = vrot.slane %v1009, %v1013
    %v1015 = vlaneseq
    %v1016 = vshrl.u32 %v1015, 7
    %v1017 = vsub.s32 1, %v1016
    %v1018 = vrot.slane %v1009, %v1017
    %v1019 = vlaneseq
    %v1020 = vshrl.u32 %v1019, 7
    %v1021 = vsub.s32 2, %v1020
    %v1022 = vrot.slane %v1009, %v1021
    %v1023 = vlaneseq
    %v1024 = vshrl.u32 %v1023, 7
    %v1025 = vsub.s32 3, %v1024
    %v1026 = vrot.slane %v1009, %v1025
    %v1027 = vlaneseq
    %v1028 = vshrl.u32 %v1027, 7
    %v1029 = vsub.s32 4, %v1028
    %v1030 = vrot.slane %v1009, %v1029
    %v1031 = vlaneseq
    %v1032 = vshrl.u32 %v1031, 7
    %v1033 = vsub.s32 5, %v1032
    %v1034 = vrot.slane %v1009, %v1033
    %v1035 = vlaneseq
    %v1036 = vshrl.u32 %v1035, 7
    %v1037 = vsub.s32 6, %v1036
    %v1038 = vrot.slane %v1009, %v1037
    %v1039 = vlaneseq
    %v1040 = vshrl.u32 %v1039, 7
    %v1041 = vsub.s32 7, %v1040
    %v1042 = vrot.slane %v1009, %v1041
    %v1051 = vmul.f32 %v1005, %v1014
    %v1052 = vmul.f32 %v990, %v1018
    %v1053 = vmul.f32 %v991, %v1022
    %v1054 = vmul.f32 %v992, %v1026
    %v1055 = vmul.f32 %v993, %v1030
    %v1056 = vmul.f32 %v994, %v1034
    %v1057 = vmul.f32 %v995, %v1038
    %v1058 = vmul.f32 %v996, %v1042
    %v1059 = vpack.c.bf16 %v1051, %v964
    %v1060 = vpack.c.bf16 %v1052, %v965
    %v1061 = vpack.c.bf16 %v1053, %v966
    %v1062 = vpack.c.bf16 %v1054, %v967
    %v1063 = vpack.c.bf16 %v1055, %v968
    %v1064 = vpack.c.bf16 %v1056, %v969
    %v1065 = vpack.c.bf16 %v1057, %v970
    %v1066 = vpack.c.bf16 %v1058, %v971
    %v1075 = vunpack.c.l.b16 %v1059
    %v1076 = vunpack.c.l.b16 %v1060
    %v1077 = vunpack.c.l.b16 %v1061
    %v1078 = vunpack.c.l.b16 %v1062
    %v1079 = vunpack.c.l.b16 %v1063
    %v1080 = vunpack.c.l.b16 %v1064
    %v1081 = vunpack.c.l.b16 %v1065
    %v1082 = vunpack.c.l.b16 %v1066
    %v1083 = vunpack.c.h.b16 %v1059
    %v1084 = vunpack.c.h.b16 %v1060
    %v1085 = vunpack.c.h.b16 %v1061
    %v1086 = vunpack.c.h.b16 %v1062
    %v1087 = vunpack.c.h.b16 %v1063
    %v1088 = vunpack.c.h.b16 %v1064
    %v1089 = vunpack.c.h.b16 %v1065
    %v1090 = vunpack.c.h.b16 %v1066
    %v1091 = vpack.c.b16 %v1076, %v1075
    %v1092 = vpack.c.b16 %v1078, %v1077
    %v1093 = vpack.c.b16 %v1080, %v1079
    %v1094 = vpack.c.b16 %v1082, %v1081
    %v1095 = vpack.c.b16 %v1084, %v1083
    %v1096 = vpack.c.b16 %v1086, %v1085
    %v1097 = vpack.c.b16 %v1088, %v1087
    %v1098 = vpack.c.b16 %v1090, %v1089
    %1107 = vst [vmem:[#allocation2] sm:$0xff] %v1091
    %1108 = vst [vmem:[#allocation2 + $0x8] sm:$0xff] %v1092
    %1109 = vst [vmem:[#allocation2 + $0x10] sm:$0xff] %v1093
    %1110 = vst [vmem:[#allocation2 + $0x18] sm:$0xff] %v1094
    %1111 = vst [vmem:[#allocation2 + $0x20] sm:$0xff] %v1095
    %1112 = vst [vmem:[#allocation2 + $0x28] sm:$0xff] %v1096
    %1113 = vst [vmem:[#allocation2 + $0x30] sm:$0xff] %v1097
    %1114 = vst [vmem:[#allocation2 + $0x38] sm:$0xff] %v1098
    %1115 = vrot.lane.b32.xlu0 %v573, 71
    %v1116 = vpop.permute.xlu0 %1115
    %1118 = vrot.lane.b32.xlu0 %v566, 71
    %v1119 = vpop.permute.xlu0 %1118
    %1120 = vrot.lane.b32.xlu0 %v567, 71
    %v1121 = vpop.permute.xlu0 %1120
    %1122 = vrot.lane.b32.xlu0 %v568, 71
    %v1123 = vpop.permute.xlu0 %1122
    %1124 = vrot.lane.b32.xlu0 %v569, 71
    %v1125 = vpop.permute.xlu0 %1124
    %1126 = vrot.lane.b32.xlu0 %v570, 71
    %v1127 = vpop.permute.xlu0 %1126
    %1128 = vrot.lane.b32.xlu0 %v571, 71
    %v1129 = vpop.permute.xlu0 %1128
    %1130 = vrot.lane.b32.xlu0 %v572, 71
    %v1131 = vpop.permute.xlu0 %1130
    %vm1132 = vcmask 580608
    %v1133 = vsel %vm1132, %v1119, %v1121
    %v1134 = vsel %vm1132, %v1121, %v1123
    %v1135 = vsel %vm1132, %v1123, %v1125
    %v1136 = vsel %vm1132, %v1125, %v1127
    %v1137 = vsel %vm1132, %v1127, %v1129
    %v1138 = vsel %vm1132, %v1129, %v1131
    %v1139 = vsel %vm1132, %v1131, %v1116
    %v1148 = vsel %vm1132, %v1116, %v1119
    %s1149 = scalar_lea.vmem %s4, 2
    %v1150 = vld [vmem:[%s1149] ss:$8 sm:$0xf]
    %v1151 = vld [vmem:[%s1149] ss:$8 sm:$0xf0]
    %v1152 = vor.u32 %v1150, %v1151
    %v1154 = vlaneseq
    %v1155 = vshrl.u32 %v1154, 7
    %v1156 = vsub.s32 0, %v1155
    %v1157 = vrot.slane %v1152, %v1156
    %v1158 = vlaneseq
    %v1159 = vshrl.u32 %v1158, 7
    %v1160 = vsub.s32 1, %v1159
    %v1161 = vrot.slane %v1152, %v1160
    %v1162 = vlaneseq
    %v1163 = vshrl.u32 %v1162, 7
    %v1164 = vsub.s32 2, %v1163
    %v1165 = vrot.slane %v1152, %v1164
    %v1166 = vlaneseq
    %v1167 = vshrl.u32 %v1166, 7
    %v1168 = vsub.s32 3, %v1167
    %v1169 = vrot.slane %v1152, %v1168
    %v1170 = vlaneseq
    %v1171 = vshrl.u32 %v1170, 7
    %v1172 = vsub.s32 4, %v1171
    %v1173 = vrot.slane %v1152, %v1172
    %v1174 = vlaneseq
    %v1175 = vshrl.u32 %v1174, 7
    %v1176 = vsub.s32 5, %v1175
    %v1177 = vrot.slane %v1152, %v1176
    %v1178 = vlaneseq
    %v1179 = vshrl.u32 %v1178, 7
    %v1180 = vsub.s32 6, %v1179
    %v1181 = vrot.slane %v1152, %v1180
    %v1182 = vlaneseq
    %v1183 = vshrl.u32 %v1182, 7
    %v1184 = vsub.s32 7, %v1183
    %v1185 = vrot.slane %v1152, %v1184
    %v1194 = vmul.f32 %v1148, %v1157
    %v1195 = vmul.f32 %v1133, %v1161
    %v1196 = vmul.f32 %v1134, %v1165
    %v1197 = vmul.f32 %v1135, %v1169
    %v1198 = vmul.f32 %v1136, %v1173
    %v1199 = vmul.f32 %v1137, %v1177
    %v1200 = vmul.f32 %v1138, %v1181
    %v1201 = vmul.f32 %v1139, %v1185
    %1202 = vrot.lane.b32.xlu0 %v573, 65
    %v1203 = vpop.permute.xlu0 %1202
    %1205 = vrot.lane.b32.xlu0 %v566, 65
    %v1206 = vpop.permute.xlu0 %1205
    %1207 = vrot.lane.b32.xlu0 %v567, 65
    %v1208 = vpop.permute.xlu0 %1207
    %1209 = vrot.lane.b32.xlu0 %v568, 65
    %v1210 = vpop.permute.xlu0 %1209
    %1211 = vrot.lane.b32.xlu0 %v569, 65
    %v1212 = vpop.permute.xlu0 %1211
    %1213 = vrot.lane.b32.xlu0 %v570, 65
    %v1214 = vpop.permute.xlu0 %1213
    %1215 = vrot.lane.b32.xlu0 %v571, 65
    %v1216 = vpop.permute.xlu0 %1215
    %1217 = vrot.lane.b32.xlu0 %v572, 65
    %v1218 = vpop.permute.xlu0 %1217
    %vm1219 = vcmask 531456
    %v1220 = vsel %vm1219, %v1206, %v1208
    %v1221 = vsel %vm1219, %v1208, %v1210
    %v1222 = vsel %vm1219, %v1210, %v1212
    %v1223 = vsel %vm1219, %v1212, %v1214
    %v1224 = vsel %vm1219, %v1214, %v1216
    %v1225 = vsel %vm1219, %v1216, %v1218
    %v1226 = vsel %vm1219, %v1218, %v1203
    %v1235 = vsel %vm1219, %v1203, %v1206
    %s1236 = scalar_lea.vmem %s4, 3
    %v1237 = vld [vmem:[%s1236] ss:$8 sm:$0xf]
    %v1238 = vld [vmem:[%s1236] ss:$8 sm:$0xf0]
    %v1239 = vor.u32 %v1237, %v1238
    %v1241 = vlaneseq
    %v1242 = vshrl.u32 %v1241, 7
    %v1243 = vsub.s32 0, %v1242
    %v1244 = vrot.slane %v1239, %v1243
    %v1245 = vlaneseq
    %v1246 = vshrl.u32 %v1245, 7
    %v1247 = vsub.s32 1, %v1246
    %v1248 = vrot.slane %v1239, %v1247
    %v1249 = vlaneseq
    %v1250 = vshrl.u32 %v1249, 7
    %v1251 = vsub.s32 2, %v1250
    %v1252 = vrot.slane %v1239, %v1251
    %v1253 = vlaneseq
    %v1254 = vshrl.u32 %v1253, 7
    %v1255 = vsub.s32 3, %v1254
    %v1256 = vrot.slane %v1239, %v1255
    %v1257 = vlaneseq
    %v1258 = vshrl.u32 %v1257, 7
    %v1259 = vsub.s32 4, %v1258
    %v1260 = vrot.slane %v1239, %v1259
    %v1261 = vlaneseq
    %v1262 = vshrl.u32 %v1261, 7
    %v1263 = vsub.s32 5, %v1262
    %v1264 = vrot.slane %v1239, %v1263
    %v1265 = vlaneseq
    %v1266 = vshrl.u32 %v1265, 7
    %v1267 = vsub.s32 6, %v1266
    %v1268 = vrot.slane %v1239, %v1267
    %v1269 = vlaneseq
    %v1270 = vshrl.u32 %v1269, 7
    %v1271 = vsub.s32 7, %v1270
    %v1272 = vrot.slane %v1239, %v1271
    %v1281 = vmul.f32 %v1235, %v1244
    %v1282 = vmul.f32 %v1220, %v1248
    %v1283 = vmul.f32 %v1221, %v1252
    %v1284 = vmul.f32 %v1222, %v1256
    %v1285 = vmul.f32 %v1223, %v1260
    %v1286 = vmul.f32 %v1224, %v1264
    %v1287 = vmul.f32 %v1225, %v1268
    %v1288 = vmul.f32 %v1226, %v1272
    %v1289 = vpack.c.bf16 %v1281, %v1194
    %v1290 = vpack.c.bf16 %v1282, %v1195
    %v1291 = vpack.c.bf16 %v1283, %v1196
    %v1292 = vpack.c.bf16 %v1284, %v1197
    %v1293 = vpack.c.bf16 %v1285, %v1198
    %v1294 = vpack.c.bf16 %v1286, %v1199
    %v1295 = vpack.c.bf16 %v1287, %v1200
    %v1296 = vpack.c.bf16 %v1288, %v1201
    %v1305 = vunpack.c.l.b16 %v1289
    %v1306 = vunpack.c.l.b16 %v1290
    %v1307 = vunpack.c.l.b16 %v1291
    %v1308 = vunpack.c.l.b16 %v1292
    %v1309 = vunpack.c.l.b16 %v1293
    %v1310 = vunpack.c.l.b16 %v1294
    %v1311 = vunpack.c.l.b16 %v1295
    %v1312 = vunpack.c.l.b16 %v1296
    %v1313 = vunpack.c.h.b16 %v1289
    %v1314 = vunpack.c.h.b16 %v1290
    %v1315 = vunpack.c.h.b16 %v1291
    %v1316 = vunpack.c.h.b16 %v1292
    %v1317 = vunpack.c.h.b16 %v1293
    %v1318 = vunpack.c.h.b16 %v1294
    %v1319 = vunpack.c.h.b16 %v1295
    %v1320 = vunpack.c.h.b16 %v1296
    %v1321 = vpack.c.b16 %v1306, %v1305
    %v1322 = vpack.c.b16 %v1308, %v1307
    %v1323 = vpack.c.b16 %v1310, %v1309
    %v1324 = vpack.c.b16 %v1312, %v1311
    %v1325 = vpack.c.b16 %v1314, %v1313
    %v1326 = vpack.c.b16 %v1316, %v1315
    %v1327 = vpack.c.b16 %v1318, %v1317
    %v1328 = vpack.c.b16 %v1320, %v1319
    %1337 = vst [vmem:[#allocation2 + $0x40] sm:$0xff] %v1321
    %1338 = vst [vmem:[#allocation2 + $0x48] sm:$0xff] %v1322
    %1339 = vst [vmem:[#allocation2 + $0x50] sm:$0xff] %v1323
    %1340 = vst [vmem:[#allocation2 + $0x58] sm:$0xff] %v1324
    %1341 = vst [vmem:[#allocation2 + $0x60] sm:$0xff] %v1325
    %1342 = vst [vmem:[#allocation2 + $0x68] sm:$0xff] %v1326
    %1343 = vst [vmem:[#allocation2 + $0x70] sm:$0xff] %v1327
    %1344 = vst [vmem:[#allocation2 + $0x78] sm:$0xff] %v1328
    %1345 = vrot.lane.b32.xlu0 %v573, 64
    %v1346 = vpop.permute.xlu0 %1345
    %1348 = vrot.lane.b32.xlu0 %v566, 64
    %v1349 = vpop.permute.xlu0 %1348
    %1350 = vrot.lane.b32.xlu0 %v567, 64
    %v1351 = vpop.permute.xlu0 %1350
    %1352 = vrot.lane.b32.xlu0 %v568, 64
    %v1353 = vpop.permute.xlu0 %1352
    %1354 = vrot.lane.b32.xlu0 %v569, 64
    %v1355 = vpop.permute.xlu0 %1354
    %1356 = vrot.lane.b32.xlu0 %v570, 64
    %v1357 = vpop.permute.xlu0 %1356
    %1358 = vrot.lane.b32.xlu0 %v571, 64
    %v1359 = vpop.permute.xlu0 %1358
    %1360 = vrot.lane.b32.xlu0 %v572, 64
    %v1361 = vpop.permute.xlu0 %1360
    %vm1362 = vcmask 523264
    %v1363 = vsel %vm1362, %v1349, %v1351
    %v1364 = vsel %vm1362, %v1351, %v1353
    %v1365 = vsel %vm1362, %v1353, %v1355
    %v1366 = vsel %vm1362, %v1355, %v1357
    %v1367 = vsel %vm1362, %v1357, %v1359
    %v1368 = vsel %vm1362, %v1359, %v1361
    %v1369 = vsel %vm1362, %v1361, %v1346
    %v1378 = vsel %vm1362, %v1346, %v1349
    %s1379 = scalar_lea.vmem %s4, 4
    %v1380 = vld [vmem:[%s1379] ss:$8 sm:$0xf]
    %v1381 = vld [vmem:[%s1379] ss:$8 sm:$0xf0]
    %v1382 = vor.u32 %v1380, %v1381
    %v1384 = vlaneseq
    %v1385 = vshrl.u32 %v1384, 7
    %v1386 = vsub.s32 0, %v1385
    %v1387 = vrot.slane %v1382, %v1386
    %v1388 = vlaneseq
    %v1389 = vshrl.u32 %v1388, 7
    %v1390 = vsub.s32 1, %v1389
    %v1391 = vrot.slane %v1382, %v1390
    %v1392 = vlaneseq
    %v1393 = vshrl.u32 %v1392, 7
    %v1394 = vsub.s32 2, %v1393
    %v1395 = vrot.slane %v1382, %v1394
    %v1396 = vlaneseq
    %v1397 = vshrl.u32 %v1396, 7
    %v1398 = vsub.s32 3, %v1397
    %v1399 = vrot.slane %v1382, %v1398
    %v1400 = vlaneseq
    %v1401 = vshrl.u32 %v1400, 7
    %v1402 = vsub.s32 4, %v1401
    %v1403 = vrot.slane %v1382, %v1402
    %v1404 = vlaneseq
    %v1405 = vshrl.u32 %v1404, 7
    %v1406 = vsub.s32 5, %v1405
    %v1407 = vrot.slane %v1382, %v1406
    %v1408 = vlaneseq
    %v1409 = vshrl.u32 %v1408, 7
    %v1410 = vsub.s32 6, %v1409
    %v1411 = vrot.slane %v1382, %v1410
    %v1412 = vlaneseq
    %v1413 = vshrl.u32 %v1412, 7
    %v1414 = vsub.s32 7, %v1413
    %v1415 = vrot.slane %v1382, %v1414
    %v1424 = vmul.f32 %v1378, %v1387
    %v1425 = vmul.f32 %v1363, %v1391
    %v1426 = vmul.f32 %v1364, %v1395
    %v1427 = vmul.f32 %v1365, %v1399
    %v1428 = vmul.f32 %v1366, %v1403
    %v1429 = vmul.f32 %v1367, %v1407
    %v1430 = vmul.f32 %v1368, %v1411
    %v1431 = vmul.f32 %v1369, %v1415
    %1432 = vrot.lane.b32.xlu0 %v573, 63
    %v1433 = vpop.permute.xlu0 %1432
    %1435 = vrot.lane.b32.xlu0 %v566, 63
    %v1436 = vpop.permute.xlu0 %1435
    %1437 = vrot.lane.b32.xlu0 %v567, 63
    %v1438 = vpop.permute.xlu0 %1437
    %1439 = vrot.lane.b32.xlu0 %v568, 63
    %v1440 = vpop.permute.xlu0 %1439
    %1441 = vrot.lane.b32.xlu0 %v569, 63
    %v1442 = vpop.permute.xlu0 %1441
    %1443 = vrot.lane.b32.xlu0 %v570, 63
    %v1444 = vpop.permute.xlu0 %1443
    %1445 = vrot.lane.b32.xlu0 %v571, 63
    %v1446 = vpop.permute.xlu0 %1445
    %1447 = vrot.lane.b32.xlu0 %v572, 63
    %v1448 = vpop.permute.xlu0 %1447
    %vm1449 = vcmask 515072
    %v1450 = vsel %vm1449, %v1436, %v1438
    %v1451 = vsel %vm1449, %v1438, %v1440
    %v1452 = vsel %vm1449, %v1440, %v1442
    %v1453 = vsel %vm1449, %v1442, %v1444
    %v1454 = vsel %vm1449, %v1444, %v1446
    %v1455 = vsel %vm1449, %v1446, %v1448
    %v1456 = vsel %vm1449, %v1448, %v1433
    %v1465 = vsel %vm1449, %v1433, %v1436
    %s1466 = scalar_lea.vmem %s4, 5
    %v1467 = vld [vmem:[%s1466] ss:$8 sm:$0xf]
    %v1468 = vld [vmem:[%s1466] ss:$8 sm:$0xf0]
    %v1469 = vor.u32 %v1467, %v1468
    %v1471 = vlaneseq
    %v1472 = vshrl.u32 %v1471, 7
    %v1473 = vsub.s32 0, %v1472
    %v1474 = vrot.slane %v1469, %v1473
    %v1475 = vlaneseq
    %v1476 = vshrl.u32 %v1475, 7
    %v1477 = vsub.s32 1, %v1476
    %v1478 = vrot.slane %v1469, %v1477
    %v1479 = vlaneseq
    %v1480 = vshrl.u32 %v1479, 7
    %v1481 = vsub.s32 2, %v1480
    %v1482 = vrot.slane %v1469, %v1481
    %v1483 = vlaneseq
    %v1484 = vshrl.u32 %v1483, 7
    %v1485 = vsub.s32 3, %v1484
    %v1486 = vrot.slane %v1469, %v1485
    %v1487 = vlaneseq
    %v1488 = vshrl.u32 %v1487, 7
    %v1489 = vsub.s32 4, %v1488
    %v1490 = vrot.slane %v1469, %v1489
    %v1491 = vlaneseq
    %v1492 = vshrl.u32 %v1491, 7
    %v1493 = vsub.s32 5, %v1492
    %v1494 = vrot.slane %v1469, %v1493
    %v1495 = vlaneseq
    %v1496 = vshrl.u32 %v1495, 7
    %v1497 = vsub.s32 6, %v1496
    %v1498 = vrot.slane %v1469, %v1497
    %v1499 = vlaneseq
    %v1500 = vshrl.u32 %v1499, 7
    %v1501 = vsub.s32 7, %v1500
    %v1502 = vrot.slane %v1469, %v1501
    %v1511 = vmul.f32 %v1465, %v1474
    %v1512 = vmul.f32 %v1450, %v1478
    %v1513 = vmul.f32 %v1451, %v1482
    %v1514 = vmul.f32 %v1452, %v1486
    %v1515 = vmul.f32 %v1453, %v1490
    %v1516 = vmul.f32 %v1454, %v1494
    %v1517 = vmul.f32 %v1455, %v1498
    %v1518 = vmul.f32 %v1456, %v1502
    %v1519 = vpack.c.bf16 %v1511, %v1424
    %v1520 = vpack.c.bf16 %v1512, %v1425
    %v1521 = vpack.c.bf16 %v1513, %v1426
    %v1522 = vpack.c.bf16 %v1514, %v1427
    %v1523 = vpack.c.bf16 %v1515, %v1428
    %v1524 = vpack.c.bf16 %v1516, %v1429
    %v1525 = vpack.c.bf16 %v1517, %v1430
    %v1526 = vpack.c.bf16 %v1518, %v1431
    %v1535 = vunpack.c.l.b16 %v1519
    %v1536 = vunpack.c.l.b16 %v1520
    %v1537 = vunpack.c.l.b16 %v1521
    %v1538 = vunpack.c.l.b16 %v1522
    %v1539 = vunpack.c.l.b16 %v1523
    %v1540 = vunpack.c.l.b16 %v1524
    %v1541 = vunpack.c.l.b16 %v1525
    %v1542 = vunpack.c.l.b16 %v1526
    %v1543 = vunpack.c.h.b16 %v1519
    %v1544 = vunpack.c.h.b16 %v1520
    %v1545 = vunpack.c.h.b16 %v1521
    %v1546 = vunpack.c.h.b16 %v1522
    %v1547 = vunpack.c.h.b16 %v1523
    %v1548 = vunpack.c.h.b16 %v1524
    %v1549 = vunpack.c.h.b16 %v1525
    %v1550 = vunpack.c.h.b16 %v1526
    %v1551 = vpack.c.b16 %v1536, %v1535
    %v1552 = vpack.c.b16 %v1538, %v1537
    %v1553 = vpack.c.b16 %v1540, %v1539
    %v1554 = vpack.c.b16 %v1542, %v1541
    %v1555 = vpack.c.b16 %v1544, %v1543
    %v1556 = vpack.c.b16 %v1546, %v1545
    %v1557 = vpack.c.b16 %v1548, %v1547
    %v1558 = vpack.c.b16 %v1550, %v1549
    %1567 = vst [vmem:[#allocation2 + $0x80] sm:$0xff] %v1551
    %1568 = vst [vmem:[#allocation2 + $0x88] sm:$0xff] %v1552
    %1569 = vst [vmem:[#allocation2 + $0x90] sm:$0xff] %v1553
    %1570 = vst [vmem:[#allocation2 + $0x98] sm:$0xff] %v1554
    %1571 = vst [vmem:[#allocation2 + $0xa0] sm:$0xff] %v1555
    %1572 = vst [vmem:[#allocation2 + $0xa8] sm:$0xff] %v1556
    %1573 = vst [vmem:[#allocation2 + $0xb0] sm:$0xff] %v1557
    %1574 = vst [vmem:[#allocation2 + $0xb8] sm:$0xff] %v1558
    %1575 = vrot.lane.b32.xlu0 %v573, 57
    %v1576 = vpop.permute.xlu0 %1575
    %1578 = vrot.lane.b32.xlu0 %v566, 57
    %v1579 = vpop.permute.xlu0 %1578
    %1580 = vrot.lane.b32.xlu0 %v567, 57
    %v1581 = vpop.permute.xlu0 %1580
    %1582 = vrot.lane.b32.xlu0 %v568, 57
    %v1583 = vpop.permute.xlu0 %1582
    %1584 = vrot.lane.b32.xlu0 %v569, 57
    %v1585 = vpop.permute.xlu0 %1584
    %1586 = vrot.lane.b32.xlu0 %v570, 57
    %v1587 = vpop.permute.xlu0 %1586
    %1588 = vrot.lane.b32.xlu0 %v571, 57
    %v1589 = vpop.permute.xlu0 %1588
    %1590 = vrot.lane.b32.xlu0 %v572, 57
    %v1591 = vpop.permute.xlu0 %1590
    %vm1592 = vcmask 465920
    %v1593 = vsel %vm1592, %v1579, %v1581
    %v1594 = vsel %vm1592, %v1581, %v1583
    %v1595 = vsel %vm1592, %v1583, %v1585
    %v1596 = vsel %vm1592, %v1585, %v1587
    %v1597 = vsel %vm1592, %v1587, %v1589
    %v1598 = vsel %vm1592, %v1589, %v1591
    %v1599 = vsel %vm1592, %v1591, %v1576
    %v1608 = vsel %vm1592, %v1576, %v1579
    %s1609 = scalar_lea.vmem %s4, 6
    %v1610 = vld [vmem:[%s1609] ss:$8 sm:$0xf]
    %v1611 = vld [vmem:[%s1609] ss:$8 sm:$0xf0]
    %v1612 = vor.u32 %v1610, %v1611
    %v1614 = vlaneseq
    %v1615 = vshrl.u32 %v1614, 7
    %v1616 = vsub.s32 0, %v1615
    %v1617 = vrot.slane %v1612, %v1616
    %v1618 = vlaneseq
    %v1619 = vshrl.u32 %v1618, 7
    %v1620 = vsub.s32 1, %v1619
    %v1621 = vrot.slane %v1612, %v1620
    %v1622 = vlaneseq
    %v1623 = vshrl.u32 %v1622, 7
    %v1624 = vsub.s32 2, %v1623
    %v1625 = vrot.slane %v1612, %v1624
    %v1626 = vlaneseq
    %v1627 = vshrl.u32 %v1626, 7
    %v1628 = vsub.s32 3, %v1627
    %v1629 = vrot.slane %v1612, %v1628
    %v1630 = vlaneseq
    %v1631 = vshrl.u32 %v1630, 7
    %v1632 = vsub.s32 4, %v1631
    %v1633 = vrot.slane %v1612, %v1632
    %v1634 = vlaneseq
    %v1635 = vshrl.u32 %v1634, 7
    %v1636 = vsub.s32 5, %v1635
    %v1637 = vrot.slane %v1612, %v1636
    %v1638 = vlaneseq
    %v1639 = vshrl.u32 %v1638, 7
    %v1640 = vsub.s32 6, %v1639
    %v1641 = vrot.slane %v1612, %v1640
    %v1642 = vlaneseq
    %v1643 = vshrl.u32 %v1642, 7
    %v1644 = vsub.s32 7, %v1643
    %v1645 = vrot.slane %v1612, %v1644
    %v1654 = vmul.f32 %v1608, %v1617
    %v1655 = vmul.f32 %v1593, %v1621
    %v1656 = vmul.f32 %v1594, %v1625
    %v1657 = vmul.f32 %v1595, %v1629
    %v1658 = vmul.f32 %v1596, %v1633
    %v1659 = vmul.f32 %v1597, %v1637
    %v1660 = vmul.f32 %v1598, %v1641
    %v1661 = vmul.f32 %v1599, %v1645
    %1662 = vrot.lane.b32.xlu0 %v573, 56
    %v1663 = vpop.permute.xlu0 %1662
    %1665 = vrot.lane.b32.xlu0 %v566, 56
    %v1666 = vpop.permute.xlu0 %1665
    %1667 = vrot.lane.b32.xlu0 %v567, 56
    %v1668 = vpop.permute.xlu0 %1667
    %1669 = vrot.lane.b32.xlu0 %v568, 56
    %v1670 = vpop.permute.xlu0 %1669
    %1671 = vrot.lane.b32.xlu0 %v569, 56
    %v1672 = vpop.permute.xlu0 %1671
    %1673 = vrot.lane.b32.xlu0 %v570, 56
    %v1674 = vpop.permute.xlu0 %1673
    %1675 = vrot.lane.b32.xlu0 %v571, 56
    %v1676 = vpop.permute.xlu0 %1675
    %1677 = vrot.lane.b32.xlu0 %v572, 56
    %v1678 = vpop.permute.xlu0 %1677
    %vm1679 = vcmask 457728
    %v1680 = vsel %vm1679, %v1666, %v1668
    %v1681 = vsel %vm1679, %v1668, %v1670
    %v1682 = vsel %vm1679, %v1670, %v1672
    %v1683 = vsel %vm1679, %v1672, %v1674
    %v1684 = vsel %vm1679, %v1674, %v1676
    %v1685 = vsel %vm1679, %v1676, %v1678
    %v1686 = vsel %vm1679, %v1678, %v1663
    %v1695 = vsel %vm1679, %v1663, %v1666
    %s1696 = scalar_lea.vmem %s4, 7
    %v1697 = vld [vmem:[%s1696] ss:$8 sm:$0xf]
    %v1698 = vld [vmem:[%s1696] ss:$8 sm:$0xf0]
    %v1699 = vor.u32 %v1697, %v1698
    %v1701 = vlaneseq
    %v1702 = vshrl.u32 %v1701, 7
    %v1703 = vsub.s32 0, %v1702
    %v1704 = vrot.slane %v1699, %v1703
    %v1705 = vlaneseq
    %v1706 = vshrl.u32 %v1705, 7
    %v1707 = vsub.s32 1, %v1706
    %v1708 = vrot.slane %v1699, %v1707
    %v1709 = vlaneseq
    %v1710 = vshrl.u32 %v1709, 7
    %v1711 = vsub.s32 2, %v1710
    %v1712 = vrot.slane %v1699, %v1711
    %v1713 = vlaneseq
    %v1714 = vshrl.u32 %v1713, 7
    %v1715 = vsub.s32 3, %v1714
    %v1716 = vrot.slane %v1699, %v1715
    %v1717 = vlaneseq
    %v1718 = vshrl.u32 %v1717, 7
    %v1719 = vsub.s32 4, %v1718
    %v1720 = vrot.slane %v1699, %v1719
    %v1721 = vlaneseq
    %v1722 = vshrl.u32 %v1721, 7
    %v1723 = vsub.s32 5, %v1722
    %v1724 = vrot.slane %v1699, %v1723
    %v1725 = vlaneseq
    %v1726 = vshrl.u32 %v1725, 7
    %v1727 = vsub.s32 6, %v1726
    %v1728 = vrot.slane %v1699, %v1727
    %v1729 = vlaneseq
    %v1730 = vshrl.u32 %v1729, 7
    %v1731 = vsub.s32 7, %v1730
    %v1732 = vrot.slane %v1699, %v1731
    %v1741 = vmul.f32 %v1695, %v1704
    %v1742 = vmul.f32 %v1680, %v1708
    %v1743 = vmul.f32 %v1681, %v1712
    %v1744 = vmul.f32 %v1682, %v1716
    %v1745 = vmul.f32 %v1683, %v1720
    %v1746 = vmul.f32 %v1684, %v1724
    %v1747 = vmul.f32 %v1685, %v1728
    %v1748 = vmul.f32 %v1686, %v1732
    %v1749 = vpack.c.bf16 %v1741, %v1654
    %v1750 = vpack.c.bf16 %v1742, %v1655
    %v1751 = vpack.c.bf16 %v1743, %v1656
    %v1752 = vpack.c.bf16 %v1744, %v1657
    %v1753 = vpack.c.bf16 %v1745, %v1658
    %v1754 = vpack.c.bf16 %v1746, %v1659
    %v1755 = vpack.c.bf16 %v1747, %v1660
    %v1756 = vpack.c.bf16 %v1748, %v1661
    %v1765 = vunpack.c.l.b16 %v1749
    %v1766 = vunpack.c.l.b16 %v1750
    %v1767 = vunpack.c.l.b16 %v1751
    %v1768 = vunpack.c.l.b16 %v1752
    %v1769 = vunpack.c.l.b16 %v1753
    %v1770 = vunpack.c.l.b16 %v1754
    %v1771 = vunpack.c.l.b16 %v1755
    %v1772 = vunpack.c.l.b16 %v1756
    %v1773 = vunpack.c.h.b16 %v1749
    %v1774 = vunpack.c.h.b16 %v1750
    %v1775 = vunpack.c.h.b16 %v1751
    %v1776 = vunpack.c.h.b16 %v1752
    %v1777 = vunpack.c.h.b16 %v1753
    %v1778 = vunpack.c.h.b16 %v1754
    %v1779 = vunpack.c.h.b16 %v1755
    %v1780 = vunpack.c.h.b16 %v1756
    %v1781 = vpack.c.b16 %v1766, %v1765
    %v1782 = vpack.c.b16 %v1768, %v1767
    %v1783 = vpack.c.b16 %v1770, %v1769
    %v1784 = vpack.c.b16 %v1772, %v1771
    %v1785 = vpack.c.b16 %v1774, %v1773
    %v1786 = vpack.c.b16 %v1776, %v1775
    %v1787 = vpack.c.b16 %v1778, %v1777
    %v1788 = vpack.c.b16 %v1780, %v1779
    %1797 = vst [vmem:[#allocation2 + $0xc0] sm:$0xff] %v1781
    %1798 = vst [vmem:[#allocation2 + $0xc8] sm:$0xff] %v1782
    %1799 = vst [vmem:[#allocation2 + $0xd0] sm:$0xff] %v1783
    %1800 = vst [vmem:[#allocation2 + $0xd8] sm:$0xff] %v1784
    %1801 = vst [vmem:[#allocation2 + $0xe0] sm:$0xff] %v1785
    %1802 = vst [vmem:[#allocation2 + $0xe8] sm:$0xff] %v1786
    %1803 = vst [vmem:[#allocation2 + $0xf0] sm:$0xff] %v1787
    %1804 = vst [vmem:[#allocation2 + $0xf8] sm:$0xff] %v1788
    %1805 = vrot.lane.b32.xlu0 %v573, 55
    %v1806 = vpop.permute.xlu0 %1805
    %1808 = vrot.lane.b32.xlu0 %v566, 55
    %v1809 = vpop.permute.xlu0 %1808
    %1810 = vrot.lane.b32.xlu0 %v567, 55
    %v1811 = vpop.permute.xlu0 %1810
    %1812 = vrot.lane.b32.xlu0 %v568, 55
    %v1813 = vpop.permute.xlu0 %1812
    %1814 = vrot.lane.b32.xlu0 %v569, 55
    %v1815 = vpop.permute.xlu0 %1814
    %1816 = vrot.lane.b32.xlu0 %v570, 55
    %v1817 = vpop.permute.xlu0 %1816
    %1818 = vrot.lane.b32.xlu0 %v571, 55
    %v1819 = vpop.permute.xlu0 %1818
    %1820 = vrot.lane.b32.xlu0 %v572, 55
    %v1821 = vpop.permute.xlu0 %1820
    %vm1822 = vcmask 449536
    %v1823 = vsel %vm1822, %v1809, %v1811
    %v1824 = vsel %vm1822, %v1811, %v1813
    %v1825 = vsel %vm1822, %v1813, %v1815
    %v1826 = vsel %vm1822, %v1815, %v1817
    %v1827 = vsel %vm1822, %v1817, %v1819
    %v1828 = vsel %vm1822, %v1819, %v1821
    %v1829 = vsel %vm1822, %v1821, %v1806
    %v1838 = vsel %vm1822, %v1806, %v1809
    %s1839 = scalar_lea.vmem %s4, 64
    %v1840 = vld [vmem:[%s1839] ss:$8 sm:$0xf]
    %v1841 = vld [vmem:[%s1839] ss:$8 sm:$0xf0]
    %v1842 = vor.u32 %v1840, %v1841
    %v1844 = vlaneseq
    %v1845 = vshrl.u32 %v1844, 7
    %v1846 = vsub.s32 0, %v1845
    %v1847 = vrot.slane %v1842, %v1846
    %v1848 = vlaneseq
    %v1849 = vshrl.u32 %v1848, 7
    %v1850 = vsub.s32 1, %v1849
    %v1851 = vrot.slane %v1842, %v1850
    %v1852 = vlaneseq
    %v1853 = vshrl.u32 %v1852, 7
    %v1854 = vsub.s32 2, %v1853
    %v1855 = vrot.slane %v1842, %v1854
    %v1856 = vlaneseq
    %v1857 = vshrl.u32 %v1856, 7
    %v1858 = vsub.s32 3, %v1857
    %v1859 = vrot.slane %v1842, %v1858
    %v1860 = vlaneseq
    %v1861 = vshrl.u32 %v1860, 7
    %v1862 = vsub.s32 4, %v1861
    %v1863 = vrot.slane %v1842, %v1862
    %v1864 = vlaneseq
    %v1865 = vshrl.u32 %v1864, 7
    %v1866 = vsub.s32 5, %v1865
    %v1867 = vrot.slane %v1842, %v1866
    %v1868 = vlaneseq
    %v1869 = vshrl.u32 %v1868, 7
    %v1870 = vsub.s32 6, %v1869
    %v1871 = vrot.slane %v1842, %v1870
    %v1872 = vlaneseq
    %v1873 = vshrl.u32 %v1872, 7
    %v1874 = vsub.s32 7, %v1873
    %v1875 = vrot.slane %v1842, %v1874
    %v1884 = vmul.f32 %v1838, %v1847
    %v1885 = vmul.f32 %v1823, %v1851
    %v1886 = vmul.f32 %v1824, %v1855
    %v1887 = vmul.f32 %v1825, %v1859
    %v1888 = vmul.f32 %v1826, %v1863
    %v1889 = vmul.f32 %v1827, %v1867
    %v1890 = vmul.f32 %v1828, %v1871
    %v1891 = vmul.f32 %v1829, %v1875
    %1892 = vrot.lane.b32.xlu0 %v573, 9
    %v1893 = vpop.permute.xlu0 %1892
    %1895 = vrot.lane.b32.xlu0 %v566, 9
    %v1896 = vpop.permute.xlu0 %1895
    %1897 = vrot.lane.b32.xlu0 %v567, 9
    %v1898 = vpop.permute.xlu0 %1897
    %1899 = vrot.lane.b32.xlu0 %v568, 9
    %v1900 = vpop.permute.xlu0 %1899
    %1901 = vrot.lane.b32.xlu0 %v569, 9
    %v1902 = vpop.permute.xlu0 %1901
    %1903 = vrot.lane.b32.xlu0 %v570, 9
    %v1904 = vpop.permute.xlu0 %1903
    %1905 = vrot.lane.b32.xlu0 %v571, 9
    %v1906 = vpop.permute.xlu0 %1905
    %1907 = vrot.lane.b32.xlu0 %v572, 9
    %v1908 = vpop.permute.xlu0 %1907
    %vm1909 = vcmask 72704
    %v1910 = vsel %vm1909, %v1896, %v1898
    %v1911 = vsel %vm1909, %v1898, %v1900
    %v1912 = vsel %vm1909, %v1900, %v1902
    %v1913 = vsel %vm1909, %v1902, %v1904
    %v1914 = vsel %vm1909, %v1904, %v1906
    %v1915 = vsel %vm1909, %v1906, %v1908
    %v1916 = vsel %vm1909, %v1908, %v1893
    %v1925 = vsel %vm1909, %v1893, %v1896
    %s1926 = scalar_lea.vmem %s4, 65
    %v1927 = vld [vmem:[%s1926] ss:$8 sm:$0xf]
    %v1928 = vld [vmem:[%s1926] ss:$8 sm:$0xf0]
    %v1929 = vor.u32 %v1927, %v1928
    %v1931 = vlaneseq
    %v1932 = vshrl.u32 %v1931, 7
    %v1933 = vsub.s32 0, %v1932
    %v1934 = vrot.slane %v1929, %v1933
    %v1935 = vlaneseq
    %v1936 = vshrl.u32 %v1935, 7
    %v1937 = vsub.s32 1, %v1936
    %v1938 = vrot.slane %v1929, %v1937
    %v1939 = vlaneseq
    %v1940 = vshrl.u32 %v1939, 7
    %v1941 = vsub.s32 2, %v1940
    %v1942 = vrot.slane %v1929, %v1941
    %v1943 = vlaneseq
    %v1944 = vshrl.u32 %v1943, 7
    %v1945 = vsub.s32 3, %v1944
    %v1946 = vrot.slane %v1929, %v1945
    %v1947 = vlaneseq
    %v1948 = vshrl.u32 %v1947, 7
    %v1949 = vsub.s32 4, %v1948
    %v1950 = vrot.slane %v1929, %v1949
    %v1951 = vlaneseq
    %v1952 = vshrl.u32 %v1951, 7
    %v1953 = vsub.s32 5, %v1952
    %v1954 = vrot.slane %v1929, %v1953
    %v1955 = vlaneseq
    %v1956 = vshrl.u32 %v1955, 7
    %v1957 = vsub.s32 6, %v1956
    %v1958 = vrot.slane %v1929, %v1957
    %v1959 = vlaneseq
    %v1960 = vshrl.u32 %v1959, 7
    %v1961 = vsub.s32 7, %v1960
    %v1962 = vrot.slane %v1929, %v1961
    %v1971 = vmul.f32 %v1925, %v1934
    %v1972 = vmul.f32 %v1910, %v1938
    %v1973 = vmul.f32 %v1911, %v1942
    %v1974 = vmul.f32 %v1912, %v1946
    %v1975 = vmul.f32 %v1913, %v1950
    %v1976 = vmul.f32 %v1914, %v1954
    %v1977 = vmul.f32 %v1915, %v1958
    %v1978 = vmul.f32 %v1916, %v1962
    %v1979 = vpack.c.bf16 %v1971, %v1884
    %v1980 = vpack.c.bf16 %v1972, %v1885
    %v1981 = vpack.c.bf16 %v1973, %v1886
    %v1982 = vpack.c.bf16 %v1974, %v1887
    %v1983 = vpack.c.bf16 %v1975, %v1888
    %v1984 = vpack.c.bf16 %v1976, %v1889
    %v1985 = vpack.c.bf16 %v1977, %v1890
    %v1986 = vpack.c.bf16 %v1978, %v1891
    %v1995 = vunpack.c.l.b16 %v1979
    %v1996 = vunpack.c.l.b16 %v1980
    %v1997 = vunpack.c.l.b16 %v1981
    %v1998 = vunpack.c.l.b16 %v1982
    %v1999 = vunpack.c.l.b16 %v1983
    %v2000 = vunpack.c.l.b16 %v1984
    %v2001 = vunpack.c.l.b16 %v1985
    %v2002 = vunpack.c.l.b16 %v1986
    %v2003 = vunpack.c.h.b16 %v1979
    %v2004 = vunpack.c.h.b16 %v1980
    %v2005 = vunpack.c.h.b16 %v1981
    %v2006 = vunpack.c.h.b16 %v1982
    %v2007 = vunpack.c.h.b16 %v1983
    %v2008 = vunpack.c.h.b16 %v1984
    %v2009 = vunpack.c.h.b16 %v1985
    %v2010 = vunpack.c.h.b16 %v1986
    %v2011 = vpack.c.b16 %v1996, %v1995
    %v2012 = vpack.c.b16 %v1998, %v1997
    %v2013 = vpack.c.b16 %v2000, %v1999
    %v2014 = vpack.c.b16 %v2002, %v2001
    %v2015 = vpack.c.b16 %v2004, %v2003
    %v2016 = vpack.c.b16 %v2006, %v2005
    %v2017 = vpack.c.b16 %v2008, %v2007
    %v2018 = vpack.c.b16 %v2010, %v2009
    %2027 = vst [vmem:[#allocation2 + $0x100] sm:$0xff] %v2011
    %2028 = vst [vmem:[#allocation2 + $0x108] sm:$0xff] %v2012
    %2029 = vst [vmem:[#allocation2 + $0x110] sm:$0xff] %v2013
    %2030 = vst [vmem:[#allocation2 + $0x118] sm:$0xff] %v2014
    %2031 = vst [vmem:[#allocation2 + $0x120] sm:$0xff] %v2015
    %2032 = vst [vmem:[#allocation2 + $0x128] sm:$0xff] %v2016
    %2033 = vst [vmem:[#allocation2 + $0x130] sm:$0xff] %v2017
    %2034 = vst [vmem:[#allocation2 + $0x138] sm:$0xff] %v2018
    %2035 = vrot.lane.b32.xlu0 %v573, 8
    %v2036 = vpop.permute.xlu0 %2035
    %2038 = vrot.lane.b32.xlu0 %v566, 8
    %v2039 = vpop.permute.xlu0 %2038
    %2040 = vrot.lane.b32.xlu0 %v567, 8
    %v2041 = vpop.permute.xlu0 %2040
    %2042 = vrot.lane.b32.xlu0 %v568, 8
    %v2043 = vpop.permute.xlu0 %2042
    %2044 = vrot.lane.b32.xlu0 %v569, 8
    %v2045 = vpop.permute.xlu0 %2044
    %2046 = vrot.lane.b32.xlu0 %v570, 8
    %v2047 = vpop.permute.xlu0 %2046
    %2048 = vrot.lane.b32.xlu0 %v571, 8
    %v2049 = vpop.permute.xlu0 %2048
    %2050 = vrot.lane.b32.xlu0 %v572, 8
    %v2051 = vpop.permute.xlu0 %2050
    %vm2052 = vcmask 64512
    %v2053 = vsel %vm2052, %v2039, %v2041
    %v2054 = vsel %vm2052, %v2041, %v2043
    %v2055 = vsel %vm2052, %v2043, %v2045
    %v2056 = vsel %vm2052, %v2045, %v2047
    %v2057 = vsel %vm2052, %v2047, %v2049
    %v2058 = vsel %vm2052, %v2049, %v2051
    %v2059 = vsel %vm2052, %v2051, %v2036
    %v2068 = vsel %vm2052, %v2036, %v2039
    %s2069 = scalar_lea.vmem %s4, 66
    %v2070 = vld [vmem:[%s2069] ss:$8 sm:$0xf]
    %v2071 = vld [vmem:[%s2069] ss:$8 sm:$0xf0]
    %v2072 = vor.u32 %v2070, %v2071
    %v2074 = vlaneseq
    %v2075 = vshrl.u32 %v2074, 7
    %v2076 = vsub.s32 0, %v2075
    %v2077 = vrot.slane %v2072, %v2076
    %v2078 = vlaneseq
    %v2079 = vshrl.u32 %v2078, 7
    %v2080 = vsub.s32 1, %v2079
    %v2081 = vrot.slane %v2072, %v2080
    %v2082 = vlaneseq
    %v2083 = vshrl.u32 %v2082, 7
    %v2084 = vsub.s32 2, %v2083
    %v2085 = vrot.slane %v2072, %v2084
    %v2086 = vlaneseq
    %v2087 = vshrl.u32 %v2086, 7
    %v2088 = vsub.s32 3, %v2087
    %v2089 = vrot.slane %v2072, %v2088
    %v2090 = vlaneseq
    %v2091 = vshrl.u32 %v2090, 7
    %v2092 = vsub.s32 4, %v2091
    %v2093 = vrot.slane %v2072, %v2092
    %v2094 = vlaneseq
    %v2095 = vshrl.u32 %v2094, 7
    %v2096 = vsub.s32 5, %v2095
    %v2097 = vrot.slane %v2072, %v2096
    %v2098 = vlaneseq
    %v2099 = vshrl.u32 %v2098, 7
    %v2100 = vsub.s32 6, %v2099
    %v2101 = vrot.slane %v2072, %v2100
    %v2102 = vlaneseq
    %v2103 = vshrl.u32 %v2102, 7
    %v2104 = vsub.s32 7, %v2103
    %v2105 = vrot.slane %v2072, %v2104
    %v2114 = vmul.f32 %v2068, %v2077
    %v2115 = vmul.f32 %v2053, %v2081
    %v2116 = vmul.f32 %v2054, %v2085
    %v2117 = vmul.f32 %v2055, %v2089
    %v2118 = vmul.f32 %v2056, %v2093
    %v2119 = vmul.f32 %v2057, %v2097
    %v2120 = vmul.f32 %v2058, %v2101
    %v2121 = vmul.f32 %v2059, %v2105
    %2122 = vrot.lane.b32.xlu0 %v573, 7
    %v2123 = vpop.permute.xlu0 %2122
    %2125 = vrot.lane.b32.xlu0 %v566, 7
    %v2126 = vpop.permute.xlu0 %2125
    %2127 = vrot.lane.b32.xlu0 %v567, 7
    %v2128 = vpop.permute.xlu0 %2127
    %2129 = vrot.lane.b32.xlu0 %v568, 7
    %v2130 = vpop.permute.xlu0 %2129
    %2131 = vrot.lane.b32.xlu0 %v569, 7
    %v2132 = vpop.permute.xlu0 %2131
    %2133 = vrot.lane.b32.xlu0 %v570, 7
    %v2134 = vpop.permute.xlu0 %2133
    %2135 = vrot.lane.b32.xlu0 %v571, 7
    %v2136 = vpop.permute.xlu0 %2135
    %2137 = vrot.lane.b32.xlu0 %v572, 7
    %v2138 = vpop.permute.xlu0 %2137
    %vm2139 = vcmask 56320
    %v2140 = vsel %vm2139, %v2126, %v2128
    %v2141 = vsel %vm2139, %v2128, %v2130
    %v2142 = vsel %vm2139, %v2130, %v2132
    %v2143 = vsel %vm2139, %v2132, %v2134
    %v2144 = vsel %vm2139, %v2134, %v2136
    %v2145 = vsel %vm2139, %v2136, %v2138
    %v2146 = vsel %vm2139, %v2138, %v2123
    %v2155 = vsel %vm2139, %v2123, %v2126
    %s2156 = scalar_lea.vmem %s4, 67
    %v2157 = vld [vmem:[%s2156] ss:$8 sm:$0xf]
    %v2158 = vld [vmem:[%s2156] ss:$8 sm:$0xf0]
    %v2159 = vor.u32 %v2157, %v2158
    %v2161 = vlaneseq
    %v2162 = vshrl.u32 %v2161, 7
    %v2163 = vsub.s32 0, %v2162
    %v2164 = vrot.slane %v2159, %v2163
    %v2165 = vlaneseq
    %v2166 = vshrl.u32 %v2165, 7
    %v2167 = vsub.s32 1, %v2166
    %v2168 = vrot.slane %v2159, %v2167
    %v2169 = vlaneseq
    %v2170 = vshrl.u32 %v2169, 7
    %v2171 = vsub.s32 2, %v2170
    %v2172 = vrot.slane %v2159, %v2171
    %v2173 = vlaneseq
    %v2174 = vshrl.u32 %v2173, 7
    %v2175 = vsub.s32 3, %v2174
    %v2176 = vrot.slane %v2159, %v2175
    %v2177 = vlaneseq
    %v2178 = vshrl.u32 %v2177, 7
    %v2179 = vsub.s32 4, %v2178
    %v2180 = vrot.slane %v2159, %v2179
    %v2181 = vlaneseq
    %v2182 = vshrl.u32 %v2181, 7
    %v2183 = vsub.s32 5, %v2182
    %v2184 = vrot.slane %v2159, %v2183
    %v2185 = vlaneseq
    %v2186 = vshrl.u32 %v2185, 7
    %v2187 = vsub.s32 6, %v2186
    %v2188 = vrot.slane %v2159, %v2187
    %v2189 = vlaneseq
    %v2190 = vshrl.u32 %v2189, 7
    %v2191 = vsub.s32 7, %v2190
    %v2192 = vrot.slane %v2159, %v2191
    %v2201 = vmul.f32 %v2155, %v2164
    %v2202 = vmul.f32 %v2140, %v2168
    %v2203 = vmul.f32 %v2141, %v2172
    %v2204 = vmul.f32 %v2142, %v2176
    %v2205 = vmul.f32 %v2143, %v2180
    %v2206 = vmul.f32 %v2144, %v2184
    %v2207 = vmul.f32 %v2145, %v2188
    %v2208 = vmul.f32 %v2146, %v2192
    %v2209 = vpack.c.bf16 %v2201, %v2114
    %v2210 = vpack.c.bf16 %v2202, %v2115
    %v2211 = vpack.c.bf16 %v2203, %v2116
    %v2212 = vpack.c.bf16 %v2204, %v2117
    %v2213 = vpack.c.bf16 %v2205, %v2118
    %v2214 = vpack.c.bf16 %v2206, %v2119
    %v2215 = vpack.c.bf16 %v2207, %v2120
    %v2216 = vpack.c.bf16 %v2208, %v2121
    %v2225 = vunpack.c.l.b16 %v2209
    %v2226 = vunpack.c.l.b16 %v2210
    %v2227 = vunpack.c.l.b16 %v2211
    %v2228 = vunpack.c.l.b16 %v2212
    %v2229 = vunpack.c.l.b16 %v2213
    %v2230 = vunpack.c.l.b16 %v2214
    %v2231 = vunpack.c.l.b16 %v2215
    %v2232 = vunpack.c.l.b16 %v2216
    %v2233 = vunpack.c.h.b16 %v2209
    %v2234 = vunpack.c.h.b16 %v2210
    %v2235 = vunpack.c.h.b16 %v2211
    %v2236 = vunpack.c.h.b16 %v2212
    %v2237 = vunpack.c.h.b16 %v2213
    %v2238 = vunpack.c.h.b16 %v2214
    %v2239 = vunpack.c.h.b16 %v2215
    %v2240 = vunpack.c.h.b16 %v2216
    %v2241 = vpack.c.b16 %v2226, %v2225
    %v2242 = vpack.c.b16 %v2228, %v2227
    %v2243 = vpack.c.b16 %v2230, %v2229
    %v2244 = vpack.c.b16 %v2232, %v2231
    %v2245 = vpack.c.b16 %v2234, %v2233
    %v2246 = vpack.c.b16 %v2236, %v2235
    %v2247 = vpack.c.b16 %v2238, %v2237
    %v2248 = vpack.c.b16 %v2240, %v2239
    %2257 = vst [vmem:[#allocation2 + $0x140] sm:$0xff] %v2241
    %2258 = vst [vmem:[#allocation2 + $0x148] sm:$0xff] %v2242
    %2259 = vst [vmem:[#allocation2 + $0x150] sm:$0xff] %v2243
    %2260 = vst [vmem:[#allocation2 + $0x158] sm:$0xff] %v2244
    %2261 = vst [vmem:[#allocation2 + $0x160] sm:$0xff] %v2245
    %2262 = vst [vmem:[#allocation2 + $0x168] sm:$0xff] %v2246
    %2263 = vst [vmem:[#allocation2 + $0x170] sm:$0xff] %v2247
    %2264 = vst [vmem:[#allocation2 + $0x178] sm:$0xff] %v2248
    %2265 = vrot.lane.b32.xlu0 %v573, 1
    %v2266 = vpop.permute.xlu0 %2265
    %2268 = vrot.lane.b32.xlu0 %v566, 1
    %v2269 = vpop.permute.xlu0 %2268
    %2270 = vrot.lane.b32.xlu0 %v567, 1
    %v2271 = vpop.permute.xlu0 %2270
    %2272 = vrot.lane.b32.xlu0 %v568, 1
    %v2273 = vpop.permute.xlu0 %2272
    %2274 = vrot.lane.b32.xlu0 %v569, 1
    %v2275 = vpop.permute.xlu0 %2274
    %2276 = vrot.lane.b32.xlu0 %v570, 1
    %v2277 = vpop.permute.xlu0 %2276
    %2278 = vrot.lane.b32.xlu0 %v571, 1
    %v2279 = vpop.permute.xlu0 %2278
    %2280 = vrot.lane.b32.xlu0 %v572, 1
    %v2281 = vpop.permute.xlu0 %2280
    %vm2282 = vcmask 7168
    %v2283 = vsel %vm2282, %v2269, %v2271
    %v2284 = vsel %vm2282, %v2271, %v2273
    %v2285 = vsel %vm2282, %v2273, %v2275
    %v2286 = vsel %vm2282, %v2275, %v2277
    %v2287 = vsel %vm2282, %v2277, %v2279
    %v2288 = vsel %vm2282, %v2279, %v2281
    %v2289 = vsel %vm2282, %v2281, %v2266
    %v2298 = vsel %vm2282, %v2266, %v2269
    %s2299 = scalar_lea.vmem %s4, 68
    %v2300 = vld [vmem:[%s2299] ss:$8 sm:$0xf]
    %v2301 = vld [vmem:[%s2299] ss:$8 sm:$0xf0]
    %v2302 = vor.u32 %v2300, %v2301
    %v2304 = vlaneseq
    %v2305 = vshrl.u32 %v2304, 7
    %v2306 = vsub.s32 0, %v2305
    %v2307 = vrot.slane %v2302, %v2306
    %v2308 = vlaneseq
    %v2309 = vshrl.u32 %v2308, 7
    %v2310 = vsub.s32 1, %v2309
    %v2311 = vrot.slane %v2302, %v2310
    %v2312 = vlaneseq
    %v2313 = vshrl.u32 %v2312, 7
    %v2314 = vsub.s32 2, %v2313
    %v2315 = vrot.slane %v2302, %v2314
    %v2316 = vlaneseq
    %v2317 = vshrl.u32 %v2316, 7
    %v2318 = vsub.s32 3, %v2317
    %v2319 = vrot.slane %v2302, %v2318
    %v2320 = vlaneseq
    %v2321 = vshrl.u32 %v2320, 7
    %v2322 = vsub.s32 4, %v2321
    %v2323 = vrot.slane %v2302, %v2322
    %v2324 = vlaneseq
    %v2325 = vshrl.u32 %v2324, 7
    %v2326 = vsub.s32 5, %v2325
    %v2327 = vrot.slane %v2302, %v2326
    %v2328 = vlaneseq
    %v2329 = vshrl.u32 %v2328, 7
    %v2330 = vsub.s32 6, %v2329
    %v2331 = vrot.slane %v2302, %v2330
    %v2332 = vlaneseq
    %v2333 = vshrl.u32 %v2332, 7
    %v2334 = vsub.s32 7, %v2333
    %v2335 = vrot.slane %v2302, %v2334
    %v2344 = vmul.f32 %v2298, %v2307
    %v2345 = vmul.f32 %v2283, %v2311
    %v2346 = vmul.f32 %v2284, %v2315
    %v2347 = vmul.f32 %v2285, %v2319
    %v2348 = vmul.f32 %v2286, %v2323
    %v2349 = vmul.f32 %v2287, %v2327
    %v2350 = vmul.f32 %v2288, %v2331
    %v2351 = vmul.f32 %v2289, %v2335
    %s2352 = scalar_lea.vmem %s4, 69
    %v2353 = vld [vmem:[%s2352] ss:$8 sm:$0xf]
    %v2354 = vld [vmem:[%s2352] ss:$8 sm:$0xf0]
    %v2355 = vor.u32 %v2353, %v2354
    %v2357 = vlaneseq
    %v2358 = vshrl.u32 %v2357, 7
    %v2359 = vsub.s32 0, %v2358
    %v2360 = vrot.slane %v2355, %v2359
    %v2361 = vlaneseq
    %v2362 = vshrl.u32 %v2361, 7
    %v2363 = vsub.s32 1, %v2362
    %v2364 = vrot.slane %v2355, %v2363
    %v2365 = vlaneseq
    %v2366 = vshrl.u32 %v2365, 7
    %v2367 = vsub.s32 2, %v2366
    %v2368 = vrot.slane %v2355, %v2367
    %v2369 = vlaneseq
    %v2370 = vshrl.u32 %v2369, 7
    %v2371 = vsub.s32 3, %v2370
    %v2372 = vrot.slane %v2355, %v2371
    %v2373 = vlaneseq
    %v2374 = vshrl.u32 %v2373, 7
    %v2375 = vsub.s32 4, %v2374
    %v2376 = vrot.slane %v2355, %v2375
    %v2377 = vlaneseq
    %v2378 = vshrl.u32 %v2377, 7
    %v2379 = vsub.s32 5, %v2378
    %v2380 = vrot.slane %v2355, %v2379
    %v2381 = vlaneseq
    %v2382 = vshrl.u32 %v2381, 7
    %v2383 = vsub.s32 6, %v2382
    %v2384 = vrot.slane %v2355, %v2383
    %v2385 = vlaneseq
    %v2386 = vshrl.u32 %v2385, 7
    %v2387 = vsub.s32 7, %v2386
    %v2388 = vrot.slane %v2355, %v2387
    %v2397 = vmul.f32 %v566, %v2360
    %v2398 = vmul.f32 %v567, %v2364
    %v2399 = vmul.f32 %v568, %v2368
    %v2400 = vmul.f32 %v569, %v2372
    %v2401 = vmul.f32 %v570, %v2376
    %v2402 = vmul.f32 %v571, %v2380
    %v2403 = vmul.f32 %v572, %v2384
    %v2404 = vmul.f32 %v573, %v2388
    %v2405 = vpack.c.bf16 %v2397, %v2344
    %v2406 = vpack.c.bf16 %v2398, %v2345
    %v2407 = vpack.c.bf16 %v2399, %v2346
    %v2408 = vpack.c.bf16 %v2400, %v2347
    %v2409 = vpack.c.bf16 %v2401, %v2348
    %v2410 = vpack.c.bf16 %v2402, %v2349
    %v2411 = vpack.c.bf16 %v2403, %v2350
    %v2412 = vpack.c.bf16 %v2404, %v2351
    %v2421 = vunpack.c.l.b16 %v2405
    %v2422 = vunpack.c.l.b16 %v2406
    %v2423 = vunpack.c.l.b16 %v2407
    %v2424 = vunpack.c.l.b16 %v2408
    %v2425 = vunpack.c.l.b16 %v2409
    %v2426 = vunpack.c.l.b16 %v2410
    %v2427 = vunpack.c.l.b16 %v2411
    %v2428 = vunpack.c.l.b16 %v2412
    %v2429 = vunpack.c.h.b16 %v2405
    %v2430 = vunpack.c.h.b16 %v2406
    %v2431 = vunpack.c.h.b16 %v2407
    %v2432 = vunpack.c.h.b16 %v2408
    %v2433 = vunpack.c.h.b16 %v2409
    %v2434 = vunpack.c.h.b16 %v2410
    %v2435 = vunpack.c.h.b16 %v2411
    %v2436 = vunpack.c.h.b16 %v2412
    %v2437 = vpack.c.b16 %v2422, %v2421
    %v2438 = vpack.c.b16 %v2424, %v2423
    %v2439 = vpack.c.b16 %v2426, %v2425
    %v2440 = vpack.c.b16 %v2428, %v2427
    %v2441 = vpack.c.b16 %v2430, %v2429
    %v2442 = vpack.c.b16 %v2432, %v2431
    %v2443 = vpack.c.b16 %v2434, %v2433
    %v2444 = vpack.c.b16 %v2436, %v2435
    %2453 = vst [vmem:[#allocation2 + $0x180] sm:$0xff] %v2437
    %2454 = vst [vmem:[#allocation2 + $0x188] sm:$0xff] %v2438
    %2455 = vst [vmem:[#allocation2 + $0x190] sm:$0xff] %v2439
    %2456 = vst [vmem:[#allocation2 + $0x198] sm:$0xff] %v2440
    %2457 = vst [vmem:[#allocation2 + $0x1a0] sm:$0xff] %v2441
    %2458 = vst [vmem:[#allocation2 + $0x1a8] sm:$0xff] %v2442
    %2459 = vst [vmem:[#allocation2 + $0x1b0] sm:$0xff] %v2443
    %2460 = vst [vmem:[#allocation2 + $0x1b8] sm:$0xff] %v2444
    %2461 = vrot.lane.b32.xlu0 %v566, 127
    %v2462 = vpop.permute.xlu0 %2461
    %2463 = vrot.lane.b32.xlu0 %v567, 127
    %v2464 = vpop.permute.xlu0 %2463
    %2465 = vrot.lane.b32.xlu0 %v568, 127
    %v2466 = vpop.permute.xlu0 %2465
    %2467 = vrot.lane.b32.xlu0 %v569, 127
    %v2468 = vpop.permute.xlu0 %2467
    %2469 = vrot.lane.b32.xlu0 %v570, 127
    %v2470 = vpop.permute.xlu0 %2469
    %2471 = vrot.lane.b32.xlu0 %v571, 127
    %v2472 = vpop.permute.xlu0 %2471
    %2473 = vrot.lane.b32.xlu0 %v572, 127
    %v2474 = vpop.permute.xlu0 %2473
    %2475 = vrot.lane.b32.xlu0 %v573, 127
    %v2476 = vpop.permute.xlu0 %2475
    %vm2477 = vcmask 1039360
    %v2478 = vsel %vm2477, %v2462, %v2464
    %v2479 = vsel %vm2477, %v2464, %v2466
    %v2480 = vsel %vm2477, %v2466, %v2468
    %v2481 = vsel %vm2477, %v2468, %v2470
    %v2482 = vsel %vm2477, %v2470, %v2472
    %v2483 = vsel %vm2477, %v2472, %v2474
    %v2484 = vsel %vm2477, %v2474, %v2476
    %v2494 = vsel %vm2477, %v2476, %v2462
    %s2495 = scalar_lea.vmem %s4, 70
    %v2496 = vld [vmem:[%s2495] ss:$8 sm:$0xf]
    %v2497 = vld [vmem:[%s2495] ss:$8 sm:$0xf0]
    %v2498 = vor.u32 %v2496, %v2497
    %v2500 = vlaneseq
    %v2501 = vshrl.u32 %v2500, 7
    %v2502 = vsub.s32 0, %v2501
    %v2503 = vrot.slane %v2498, %v2502
    %v2504 = vlaneseq
    %v2505 = vshrl.u32 %v2504, 7
    %v2506 = vsub.s32 1, %v2505
    %v2507 = vrot.slane %v2498, %v2506
    %v2508 = vlaneseq
    %v2509 = vshrl.u32 %v2508, 7
    %v2510 = vsub.s32 2, %v2509
    %v2511 = vrot.slane %v2498, %v2510
    %v2512 = vlaneseq
    %v2513 = vshrl.u32 %v2512, 7
    %v2514 = vsub.s32 3, %v2513
    %v2515 = vrot.slane %v2498, %v2514
    %v2516 = vlaneseq
    %v2517 = vshrl.u32 %v2516, 7
    %v2518 = vsub.s32 4, %v2517
    %v2519 = vrot.slane %v2498, %v2518
    %v2520 = vlaneseq
    %v2521 = vshrl.u32 %v2520, 7
    %v2522 = vsub.s32 5, %v2521
    %v2523 = vrot.slane %v2498, %v2522
    %v2524 = vlaneseq
    %v2525 = vshrl.u32 %v2524, 7
    %v2526 = vsub.s32 6, %v2525
    %v2527 = vrot.slane %v2498, %v2526
    %v2528 = vlaneseq
    %v2529 = vshrl.u32 %v2528, 7
    %v2530 = vsub.s32 7, %v2529
    %v2531 = vrot.slane %v2498, %v2530
    %v2540 = vmul.f32 %v2478, %v2503
    %v2541 = vmul.f32 %v2479, %v2507
    %v2542 = vmul.f32 %v2480, %v2511
    %v2543 = vmul.f32 %v2481, %v2515
    %v2544 = vmul.f32 %v2482, %v2519
    %v2545 = vmul.f32 %v2483, %v2523
    %v2546 = vmul.f32 %v2484, %v2527
    %v2547 = vmul.f32 %v2494, %v2531
    %2548 = vrot.lane.b32.xlu0 %v566, 121
    %v2549 = vpop.permute.xlu0 %2548
    %2550 = vrot.lane.b32.xlu0 %v567, 121
    %v2551 = vpop.permute.xlu0 %2550
    %2552 = vrot.lane.b32.xlu0 %v568, 121
    %v2553 = vpop.permute.xlu0 %2552
    %2554 = vrot.lane.b32.xlu0 %v569, 121
    %v2555 = vpop.permute.xlu0 %2554
    %2556 = vrot.lane.b32.xlu0 %v570, 121
    %v2557 = vpop.permute.xlu0 %2556
    %2558 = vrot.lane.b32.xlu0 %v571, 121
    %v2559 = vpop.permute.xlu0 %2558
    %2560 = vrot.lane.b32.xlu0 %v572, 121
    %v2561 = vpop.permute.xlu0 %2560
    %2562 = vrot.lane.b32.xlu0 %v573, 121
    %v2563 = vpop.permute.xlu0 %2562
    %vm2564 = vcmask 990208
    %v2565 = vsel %vm2564, %v2549, %v2551
    %v2566 = vsel %vm2564, %v2551, %v2553
    %v2567 = vsel %vm2564, %v2553, %v2555
    %v2568 = vsel %vm2564, %v2555, %v2557
    %v2569 = vsel %vm2564, %v2557, %v2559
    %v2570 = vsel %vm2564, %v2559, %v2561
    %v2571 = vsel %vm2564, %v2561, %v2563
    %v2581 = vsel %vm2564, %v2563, %v2549
    %s2582 = scalar_lea.vmem %s4, 71
    %v2583 = vld [vmem:[%s2582] ss:$8 sm:$0xf]
    %v2584 = vld [vmem:[%s2582] ss:$8 sm:$0xf0]
    %v2585 = vor.u32 %v2583, %v2584
    %v2587 = vlaneseq
    %v2588 = vshrl.u32 %v2587, 7
    %v2589 = vsub.s32 0, %v2588
    %v2590 = vrot.slane %v2585, %v2589
    %v2591 = vlaneseq
    %v2592 = vshrl.u32 %v2591, 7
    %v2593 = vsub.s32 1, %v2592
    %v2594 = vrot.slane %v2585, %v2593
    %v2595 = vlaneseq
    %v2596 = vshrl.u32 %v2595, 7
    %v2597 = vsub.s32 2, %v2596
    %v2598 = vrot.slane %v2585, %v2597
    %v2599 = vlaneseq
    %v2600 = vshrl.u32 %v2599, 7
    %v2601 = vsub.s32 3, %v2600
    %v2602 = vrot.slane %v2585, %v2601
    %v2603 = vlaneseq
    %v2604 = vshrl.u32 %v2603, 7
    %v2605 = vsub.s32 4, %v2604
    %v2606 = vrot.slane %v2585, %v2605
    %v2607 = vlaneseq
    %v2608 = vshrl.u32 %v2607, 7
    %v2609 = vsub.s32 5, %v2608
    %v2610 = vrot.slane %v2585, %v2609
    %v2611 = vlaneseq
    %v2612 = vshrl.u32 %v2611, 7
    %v2613 = vsub.s32 6, %v2612
    %v2614 = vrot.slane %v2585, %v2613
    %v2615 = vlaneseq
    %v2616 = vshrl.u32 %v2615, 7
    %v2617 = vsub.s32 7, %v2616
    %v2618 = vrot.slane %v2585, %v2617
    %v2627 = vmul.f32 %v2565, %v2590
    %v2628 = vmul.f32 %v2566, %v2594
    %v2629 = vmul.f32 %v2567, %v2598
    %v2630 = vmul.f32 %v2568, %v2602
    %v2631 = vmul.f32 %v2569, %v2606
    %v2632 = vmul.f32 %v2570, %v2610
    %v2633 = vmul.f32 %v2571, %v2614
    %v2634 = vmul.f32 %v2581, %v2618
    %v2635 = vpack.c.bf16 %v2627, %v2540
    %v2636 = vpack.c.bf16 %v2628, %v2541
    %v2637 = vpack.c.bf16 %v2629, %v2542
    %v2638 = vpack.c.bf16 %v2630, %v2543
    %v2639 = vpack.c.bf16 %v2631, %v2544
    %v2640 = vpack.c.bf16 %v2632, %v2545
    %v2641 = vpack.c.bf16 %v2633, %v2546
    %v2642 = vpack.c.bf16 %v2634, %v2547
    %v2651 = vunpack.c.l.b16 %v2635
    %v2652 = vunpack.c.l.b16 %v2636
    %v2653 = vunpack.c.l.b16 %v2637
    %v2654 = vunpack.c.l.b16 %v2638
    %v2655 = vunpack.c.l.b16 %v2639
    %v2656 = vunpack.c.l.b16 %v2640
    %v2657 = vunpack.c.l.b16 %v2641
    %v2658 = vunpack.c.l.b16 %v2642
    %v2659 = vunpack.c.h.b16 %v2635
    %v2660 = vunpack.c.h.b16 %v2636
    %v2661 = vunpack.c.h.b16 %v2637
    %v2662 = vunpack.c.h.b16 %v2638
    %v2663 = vunpack.c.h.b16 %v2639
    %v2664 = vunpack.c.h.b16 %v2640
    %v2665 = vunpack.c.h.b16 %v2641
    %v2666 = vunpack.c.h.b16 %v2642
    %v2667 = vpack.c.b16 %v2652, %v2651
    %v2668 = vpack.c.b16 %v2654, %v2653
    %v2669 = vpack.c.b16 %v2656, %v2655
    %v2670 = vpack.c.b16 %v2658, %v2657
    %v2671 = vpack.c.b16 %v2660, %v2659
    %v2672 = vpack.c.b16 %v2662, %v2661
    %v2673 = vpack.c.b16 %v2664, %v2663
    %v2674 = vpack.c.b16 %v2666, %v2665
    %2683 = vst [vmem:[#allocation2 + $0x1c0] sm:$0xff] %v2667
    %2684 = vst [vmem:[#allocation2 + $0x1c8] sm:$0xff] %v2668
    %2685 = vst [vmem:[#allocation2 + $0x1d0] sm:$0xff] %v2669
    %2686 = vst [vmem:[#allocation2 + $0x1d8] sm:$0xff] %v2670
    %2687 = vst [vmem:[#allocation2 + $0x1e0] sm:$0xff] %v2671
    %2688 = vst [vmem:[#allocation2 + $0x1e8] sm:$0xff] %v2672
    %2689 = vst [vmem:[#allocation2 + $0x1f0] sm:$0xff] %v2673
    %2690 = vst [vmem:[#allocation2 + $0x1f8] sm:$0xff] %v2674
    %2691 = vrot.lane.b32.xlu0 %v566, 120
    %v2692 = vpop.permute.xlu0 %2691
    %2693 = vrot.lane.b32.xlu0 %v567, 120
    %v2694 = vpop.permute.xlu0 %2693
    %2695 = vrot.lane.b32.xlu0 %v568, 120
    %v2696 = vpop.permute.xlu0 %2695
    %2697 = vrot.lane.b32.xlu0 %v569, 120
    %v2698 = vpop.permute.xlu0 %2697
    %2699 = vrot.lane.b32.xlu0 %v570, 120
    %v2700 = vpop.permute.xlu0 %2699
    %2701 = vrot.lane.b32.xlu0 %v571, 120
    %v2702 = vpop.permute.xlu0 %2701
    %2703 = vrot.lane.b32.xlu0 %v572, 120
    %v2704 = vpop.permute.xlu0 %2703
    %2705 = vrot.lane.b32.xlu0 %v573, 120
    %v2706 = vpop.permute.xlu0 %2705
    %vm2707 = vcmask 982016
    %v2708 = vsel %vm2707, %v2692, %v2694
    %v2709 = vsel %vm2707, %v2694, %v2696
    %v2710 = vsel %vm2707, %v2696, %v2698
    %v2711 = vsel %vm2707, %v2698, %v2700
    %v2712 = vsel %vm2707, %v2700, %v2702
    %v2713 = vsel %vm2707, %v2702, %v2704
    %v2714 = vsel %vm2707, %v2704, %v2706
    %v2724 = vsel %vm2707, %v2706, %v2692
    %s2725 = scalar_lea.vmem %s4, 128
    %v2726 = vld [vmem:[%s2725] ss:$8 sm:$0xf]
    %v2727 = vld [vmem:[%s2725] ss:$8 sm:$0xf0]
    %v2728 = vor.u32 %v2726, %v2727
    %v2730 = vlaneseq
    %v2731 = vshrl.u32 %v2730, 7
    %v2732 = vsub.s32 0, %v2731
    %v2733 = vrot.slane %v2728, %v2732
    %v2734 = vlaneseq
    %v2735 = vshrl.u32 %v2734, 7
    %v2736 = vsub.s32 1, %v2735
    %v2737 = vrot.slane %v2728, %v2736
    %v2738 = vlaneseq
    %v2739 = vshrl.u32 %v2738, 7
    %v2740 = vsub.s32 2, %v2739
    %v2741 = vrot.slane %v2728, %v2740
    %v2742 = vlaneseq
    %v2743 = vshrl.u32 %v2742, 7
    %v2744 = vsub.s32 3, %v2743
    %v2745 = vrot.slane %v2728, %v2744
    %v2746 = vlaneseq
    %v2747 = vshrl.u32 %v2746, 7
    %v2748 = vsub.s32 4, %v2747
    %v2749 = vrot.slane %v2728, %v2748
    %v2750 = vlaneseq
    %v2751 = vshrl.u32 %v2750, 7
    %v2752 = vsub.s32 5, %v2751
    %v2753 = vrot.slane %v2728, %v2752
    %v2754 = vlaneseq
    %v2755 = vshrl.u32 %v2754, 7
    %v2756 = vsub.s32 6, %v2755
    %v2757 = vrot.slane %v2728, %v2756
    %v2758 = vlaneseq
    %v2759 = vshrl.u32 %v2758, 7
    %v2760 = vsub.s32 7, %v2759
    %v2761 = vrot.slane %v2728, %v2760
    %v2770 = vmul.f32 %v2708, %v2733
    %v2771 = vmul.f32 %v2709, %v2737
    %v2772 = vmul.f32 %v2710, %v2741
    %v2773 = vmul.f32 %v2711, %v2745
    %v2774 = vmul.f32 %v2712, %v2749
    %v2775 = vmul.f32 %v2713, %v2753
    %v2776 = vmul.f32 %v2714, %v2757
    %v2777 = vmul.f32 %v2724, %v2761
    %2778 = vrot.lane.b32.xlu0 %v566, 119
    %v2779 = vpop.permute.xlu0 %2778
    %2780 = vrot.lane.b32.xlu0 %v567, 119
    %v2781 = vpop.permute.xlu0 %2780
    %2782 = vrot.lane.b32.xlu0 %v568, 119
    %v2783 = vpop.permute.xlu0 %2782
    %2784 = vrot.lane.b32.xlu0 %v569, 119
    %v2785 = vpop.permute.xlu0 %2784
    %2786 = vrot.lane.b32.xlu0 %v570, 119
    %v2787 = vpop.permute.xlu0 %2786
    %2788 = vrot.lane.b32.xlu0 %v571, 119
    %v2789 = vpop.permute.xlu0 %2788
    %2790 = vrot.lane.b32.xlu0 %v572, 119
    %v2791 = vpop.permute.xlu0 %2790
    %2792 = vrot.lane.b32.xlu0 %v573, 119
    %v2793 = vpop.permute.xlu0 %2792
    %vm2794 = vcmask 973824
    %v2795 = vsel %vm2794, %v2779, %v2781
    %v2796 = vsel %vm2794, %v2781, %v2783
    %v2797 = vsel %vm2794, %v2783, %v2785
    %v2798 = vsel %vm2794, %v2785, %v2787
    %v2799 = vsel %vm2794, %v2787, %v2789
    %v2800 = vsel %vm2794, %v2789, %v2791
    %v2801 = vsel %vm2794, %v2791, %v2793
    %v2811 = vsel %vm2794, %v2793, %v2779
    %s2812 = scalar_lea.vmem %s4, 129
    %v2813 = vld [vmem:[%s2812] ss:$8 sm:$0xf]
    %v2814 = vld [vmem:[%s2812] ss:$8 sm:$0xf0]
    %v2815 = vor.u32 %v2813, %v2814
    %v2817 = vlaneseq
    %v2818 = vshrl.u32 %v2817, 7
    %v2819 = vsub.s32 0, %v2818
    %v2820 = vrot.slane %v2815, %v2819
    %v2821 = vlaneseq
    %v2822 = vshrl.u32 %v2821, 7
    %v2823 = vsub.s32 1, %v2822
    %v2824 = vrot.slane %v2815, %v2823
    %v2825 = vlaneseq
    %v2826 = vshrl.u32 %v2825, 7
    %v2827 = vsub.s32 2, %v2826
    %v2828 = vrot.slane %v2815, %v2827
    %v2829 = vlaneseq
    %v2830 = vshrl.u32 %v2829, 7
    %v2831 = vsub.s32 3, %v2830
    %v2832 = vrot.slane %v2815, %v2831
    %v2833 = vlaneseq
    %v2834 = vshrl.u32 %v2833, 7
    %v2835 = vsub.s32 4, %v2834
    %v2836 = vrot.slane %v2815, %v2835
    %v2837 = vlaneseq
    %v2838 = vshrl.u32 %v2837, 7
    %v2839 = vsub.s32 5, %v2838
    %v2840 = vrot.slane %v2815, %v2839
    %v2841 = vlaneseq
    %v2842 = vshrl.u32 %v2841, 7
    %v2843 = vsub.s32 6, %v2842
    %v2844 = vrot.slane %v2815, %v2843
    %v2845 = vlaneseq
    %v2846 = vshrl.u32 %v2845, 7
    %v2847 = vsub.s32 7, %v2846
    %v2848 = vrot.slane %v2815, %v2847
    %v2857 = vmul.f32 %v2795, %v2820
    %v2858 = vmul.f32 %v2796, %v2824
    %v2859 = vmul.f32 %v2797, %v2828
    %v2860 = vmul.f32 %v2798, %v2832
    %v2861 = vmul.f32 %v2799, %v2836
    %v2862 = vmul.f32 %v2800, %v2840
    %v2863 = vmul.f32 %v2801, %v2844
    %v2864 = vmul.f32 %v2811, %v2848
    %v2865 = vpack.c.bf16 %v2857, %v2770
    %v2866 = vpack.c.bf16 %v2858, %v2771
    %v2867 = vpack.c.bf16 %v2859, %v2772
    %v2868 = vpack.c.bf16 %v2860, %v2773
    %v2869 = vpack.c.bf16 %v2861, %v2774
    %v2870 = vpack.c.bf16 %v2862, %v2775
    %v2871 = vpack.c.bf16 %v2863, %v2776
    %v2872 = vpack.c.bf16 %v2864, %v2777
    %v2881 = vunpack.c.l.b16 %v2865
    %v2882 = vunpack.c.l.b16 %v2866
    %v2883 = vunpack.c.l.b16 %v2867
    %v2884 = vunpack.c.l.b16 %v2868
    %v2885 = vunpack.c.l.b16 %v2869
    %v2886 = vunpack.c.l.b16 %v2870
    %v2887 = vunpack.c.l.b16 %v2871
    %v2888 = vunpack.c.l.b16 %v2872
    %v2889 = vunpack.c.h.b16 %v2865
    %v2890 = vunpack.c.h.b16 %v2866
    %v2891 = vunpack.c.h.b16 %v2867
    %v2892 = vunpack.c.h.b16 %v2868
    %v2893 = vunpack.c.h.b16 %v2869
    %v2894 = vunpack.c.h.b16 %v2870
    %v2895 = vunpack.c.h.b16 %v2871
    %v2896 = vunpack.c.h.b16 %v2872
    %v2897 = vpack.c.b16 %v2882, %v2881
    %v2898 = vpack.c.b16 %v2884, %v2883
    %v2899 = vpack.c.b16 %v2886, %v2885
    %v2900 = vpack.c.b16 %v2888, %v2887
    %v2901 = vpack.c.b16 %v2890, %v2889
    %v2902 = vpack.c.b16 %v2892, %v2891
    %v2903 = vpack.c.b16 %v2894, %v2893
    %v2904 = vpack.c.b16 %v2896, %v2895
    %2913 = vst [vmem:[#allocation2 + $0x200] sm:$0xff] %v2897
    %2914 = vst [vmem:[#allocation2 + $0x208] sm:$0xff] %v2898
    %2915 = vst [vmem:[#allocation2 + $0x210] sm:$0xff] %v2899
    %2916 = vst [vmem:[#allocation2 + $0x218] sm:$0xff] %v2900
    %2917 = vst [vmem:[#allocation2 + $0x220] sm:$0xff] %v2901
    %2918 = vst [vmem:[#allocation2 + $0x228] sm:$0xff] %v2902
    %2919 = vst [vmem:[#allocation2 + $0x230] sm:$0xff] %v2903
    %2920 = vst [vmem:[#allocation2 + $0x238] sm:$0xff] %v2904
    %s2921 = scalar_lea.vmem %s4, 130
    %v2922 = vld [vmem:[%s2921] ss:$8 sm:$0xf]
    %v2923 = vld [vmem:[%s2921] ss:$8 sm:$0xf0]
    %v2924 = vor.u32 %v2922, %v2923
    %v2926 = vlaneseq
    %v2927 = vshrl.u32 %v2926, 7
    %v2928 = vsub.s32 0, %v2927
    %v2929 = vrot.slane %v2924, %v2928
    %v2930 = vlaneseq
    %v2931 = vshrl.u32 %v2930, 7
    %v2932 = vsub.s32 1, %v2931
    %v2933 = vrot.slane %v2924, %v2932
    %v2934 = vlaneseq
    %v2935 = vshrl.u32 %v2934, 7
    %v2936 = vsub.s32 2, %v2935
    %v2937 = vrot.slane %v2924, %v2936
    %v2938 = vlaneseq
    %v2939 = vshrl.u32 %v2938, 7
    %v2940 = vsub.s32 3, %v2939
    %v2941 = vrot.slane %v2924, %v2940
    %v2942 = vlaneseq
    %v2943 = vshrl.u32 %v2942, 7
    %v2944 = vsub.s32 4, %v2943
    %v2945 = vrot.slane %v2924, %v2944
    %v2946 = vlaneseq
    %v2947 = vshrl.u32 %v2946, 7
    %v2948 = vsub.s32 5, %v2947
    %v2949 = vrot.slane %v2924, %v2948
    %v2950 = vlaneseq
    %v2951 = vshrl.u32 %v2950, 7
    %v2952 = vsub.s32 6, %v2951
    %v2953 = vrot.slane %v2924, %v2952
    %v2954 = vlaneseq
    %v2955 = vshrl.u32 %v2954, 7
    %v2956 = vsub.s32 7, %v2955
    %v2957 = vrot.slane %v2924, %v2956
    %v2966 = vmul.f32 %v904, %v2929
    %v2967 = vmul.f32 %v905, %v2933
    %v2968 = vmul.f32 %v906, %v2937
    %v2969 = vmul.f32 %v907, %v2941
    %v2970 = vmul.f32 %v908, %v2945
    %v2971 = vmul.f32 %v909, %v2949
    %v2972 = vmul.f32 %v910, %v2953
    %v2973 = vmul.f32 %v919, %v2957
    %s2974 = scalar_lea.vmem %s4, 131
    %v2975 = vld [vmem:[%s2974] ss:$8 sm:$0xf]
    %v2976 = vld [vmem:[%s2974] ss:$8 sm:$0xf0]
    %v2977 = vor.u32 %v2975, %v2976
    %v2979 = vlaneseq
    %v2980 = vshrl.u32 %v2979, 7
    %v2981 = vsub.s32 0, %v2980
    %v2982 = vrot.slane %v2977, %v2981
    %v2983 = vlaneseq
    %v2984 = vshrl.u32 %v2983, 7
    %v2985 = vsub.s32 1, %v2984
    %v2986 = vrot.slane %v2977, %v2985
    %v2987 = vlaneseq
    %v2988 = vshrl.u32 %v2987, 7
    %v2989 = vsub.s32 2, %v2988
    %v2990 = vrot.slane %v2977, %v2989
    %v2991 = vlaneseq
    %v2992 = vshrl.u32 %v2991, 7
    %v2993 = vsub.s32 3, %v2992
    %v2994 = vrot.slane %v2977, %v2993
    %v2995 = vlaneseq
    %v2996 = vshrl.u32 %v2995, 7
    %v2997 = vsub.s32 4, %v2996
    %v2998 = vrot.slane %v2977, %v2997
    %v2999 = vlaneseq
    %v3000 = vshrl.u32 %v2999, 7
    %v3001 = vsub.s32 5, %v3000
    %v3002 = vrot.slane %v2977, %v3001
    %v3003 = vlaneseq
    %v3004 = vshrl.u32 %v3003, 7
    %v3005 = vsub.s32 6, %v3004
    %v3006 = vrot.slane %v2977, %v3005
    %v3007 = vlaneseq
    %v3008 = vshrl.u32 %v3007, 7
    %v3009 = vsub.s32 7, %v3008
    %v3010 = vrot.slane %v2977, %v3009
    %v3019 = vmul.f32 %v990, %v2982
    %v3020 = vmul.f32 %v991, %v2986
    %v3021 = vmul.f32 %v992, %v2990
    %v3022 = vmul.f32 %v993, %v2994
    %v3023 = vmul.f32 %v994, %v2998
    %v3024 = vmul.f32 %v995, %v3002
    %v3025 = vmul.f32 %v996, %v3006
    %v3026 = vmul.f32 %v1005, %v3010
    %v3027 = vpack.c.bf16 %v3019, %v2966
    %v3028 = vpack.c.bf16 %v3020, %v2967
    %v3029 = vpack.c.bf16 %v3021, %v2968
    %v3030 = vpack.c.bf16 %v3022, %v2969
    %v3031 = vpack.c.bf16 %v3023, %v2970
    %v3032 = vpack.c.bf16 %v3024, %v2971
    %v3033 = vpack.c.bf16 %v3025, %v2972
    %v3034 = vpack.c.bf16 %v3026, %v2973
    %v3043 = vunpack.c.l.b16 %v3027
    %v3044 = vunpack.c.l.b16 %v3028
    %v3045 = vunpack.c.l.b16 %v3029
    %v3046 = vunpack.c.l.b16 %v3030
    %v3047 = vunpack.c.l.b16 %v3031
    %v3048 = vunpack.c.l.b16 %v3032
    %v3049 = vunpack.c.l.b16 %v3033
    %v3050 = vunpack.c.l.b16 %v3034
    %v3051 = vunpack.c.h.b16 %v3027
    %v3052 = vunpack.c.h.b16 %v3028
    %v3053 = vunpack.c.h.b16 %v3029
    %v3054 = vunpack.c.h.b16 %v3030
    %v3055 = vunpack.c.h.b16 %v3031
    %v3056 = vunpack.c.h.b16 %v3032
    %v3057 = vunpack.c.h.b16 %v3033
    %v3058 = vunpack.c.h.b16 %v3034
    %v3059 = vpack.c.b16 %v3044, %v3043
    %v3060 = vpack.c.b16 %v3046, %v3045
    %v3061 = vpack.c.b16 %v3048, %v3047
    %v3062 = vpack.c.b16 %v3050, %v3049
    %v3063 = vpack.c.b16 %v3052, %v3051
    %v3064 = vpack.c.b16 %v3054, %v3053
    %v3065 = vpack.c.b16 %v3056, %v3055
    %v3066 = vpack.c.b16 %v3058, %v3057
    %3075 = vst [vmem:[#allocation2 + $0x240] sm:$0xff] %v3059
    %3076 = vst [vmem:[#allocation2 + $0x248] sm:$0xff] %v3060
    %3077 = vst [vmem:[#allocation2 + $0x250] sm:$0xff] %v3061
    %3078 = vst [vmem:[#allocation2 + $0x258] sm:$0xff] %v3062
    %3079 = vst [vmem:[#allocation2 + $0x260] sm:$0xff] %v3063
    %3080 = vst [vmem:[#allocation2 + $0x268] sm:$0xff] %v3064
    %3081 = vst [vmem:[#allocation2 + $0x270] sm:$0xff] %v3065
    %3082 = vst [vmem:[#allocation2 + $0x278] sm:$0xff] %v3066
    %s3083 = scalar_lea.vmem %s4, 132
    %v3084 = vld [vmem:[%s3083] ss:$8 sm:$0xf]
    %v3085 = vld [vmem:[%s3083] ss:$8 sm:$0xf0]
    %v3086 = vor.u32 %v3084, %v3085
    %v3088 = vlaneseq
    %v3089 = vshrl.u32 %v3088, 7
    %v3090 = vsub.s32 0, %v3089
    %v3091 = vrot.slane %v3086, %v3090
    %v3092 = vlaneseq
    %v3093 = vshrl.u32 %v3092, 7
    %v3094 = vsub.s32 1, %v3093
    %v3095 = vrot.slane %v3086, %v3094
    %v3096 = vlaneseq
    %v3097 = vshrl.u32 %v3096, 7
    %v3098 = vsub.s32 2, %v3097
    %v3099 = vrot.slane %v3086, %v3098
    %v3100 = vlaneseq
    %v3101 = vshrl.u32 %v3100, 7
    %v3102 = vsub.s32 3, %v3101
    %v3103 = vrot.slane %v3086, %v3102
    %v3104 = vlaneseq
    %v3105 = vshrl.u32 %v3104, 7
    %v3106 = vsub.s32 4, %v3105
    %v3107 = vrot.slane %v3086, %v3106
    %v3108 = vlaneseq
    %v3109 = vshrl.u32 %v3108, 7
    %v3110 = vsub.s32 5, %v3109
    %v3111 = vrot.slane %v3086, %v3110
    %v3112 = vlaneseq
    %v3113 = vshrl.u32 %v3112, 7
    %v3114 = vsub.s32 6, %v3113
    %v3115 = vrot.slane %v3086, %v3114
    %v3116 = vlaneseq
    %v3117 = vshrl.u32 %v3116, 7
    %v3118 = vsub.s32 7, %v3117
    %v3119 = vrot.slane %v3086, %v3118
    %v3128 = vmul.f32 %v1133, %v3091
    %v3129 = vmul.f32 %v1134, %v3095
    %v3130 = vmul.f32 %v1135, %v3099
    %v3131 = vmul.f32 %v1136, %v3103
    %v3132 = vmul.f32 %v1137, %v3107
    %v3133 = vmul.f32 %v1138, %v3111
    %v3134 = vmul.f32 %v1139, %v3115
    %v3135 = vmul.f32 %v1148, %v3119
    %s3136 = scalar_lea.vmem %s4, 133
    %v3137 = vld [vmem:[%s3136] ss:$8 sm:$0xf]
    %v3138 = vld [vmem:[%s3136] ss:$8 sm:$0xf0]
    %v3139 = vor.u32 %v3137, %v3138
    %v3141 = vlaneseq
    %v3142 = vshrl.u32 %v3141, 7
    %v3143 = vsub.s32 0, %v3142
    %v3144 = vrot.slane %v3139, %v3143
    %v3145 = vlaneseq
    %v3146 = vshrl.u32 %v3145, 7
    %v3147 = vsub.s32 1, %v3146
    %v3148 = vrot.slane %v3139, %v3147
    %v3149 = vlaneseq
    %v3150 = vshrl.u32 %v3149, 7
    %v3151 = vsub.s32 2, %v3150
    %v3152 = vrot.slane %v3139, %v3151
    %v3153 = vlaneseq
    %v3154 = vshrl.u32 %v3153, 7
    %v3155 = vsub.s32 3, %v3154
    %v3156 = vrot.slane %v3139, %v3155
    %v3157 = vlaneseq
    %v3158 = vshrl.u32 %v3157, 7
    %v3159 = vsub.s32 4, %v3158
    %v3160 = vrot.slane %v3139, %v3159
    %v3161 = vlaneseq
    %v3162 = vshrl.u32 %v3161, 7
    %v3163 = vsub.s32 5, %v3162
    %v3164 = vrot.slane %v3139, %v3163
    %v3165 = vlaneseq
    %v3166 = vshrl.u32 %v3165, 7
    %v3167 = vsub.s32 6, %v3166
    %v3168 = vrot.slane %v3139, %v3167
    %v3169 = vlaneseq
    %v3170 = vshrl.u32 %v3169, 7
    %v3171 = vsub.s32 7, %v3170
    %v3172 = vrot.slane %v3139, %v3171
    %v3181 = vmul.f32 %v1220, %v3144
    %v3182 = vmul.f32 %v1221, %v3148
    %v3183 = vmul.f32 %v1222, %v3152
    %v3184 = vmul.f32 %v1223, %v3156
    %v3185 = vmul.f32 %v1224, %v3160
    %v3186 = vmul.f32 %v1225, %v3164
    %v3187 = vmul.f32 %v1226, %v3168
    %v3188 = vmul.f32 %v1235, %v3172
    %v3189 = vpack.c.bf16 %v3181, %v3128
    %v3190 = vpack.c.bf16 %v3182, %v3129
    %v3191 = vpack.c.bf16 %v3183, %v3130
    %v3192 = vpack.c.bf16 %v3184, %v3131
    %v3193 = vpack.c.bf16 %v3185, %v3132
    %v3194 = vpack.c.bf16 %v3186, %v3133
    %v3195 = vpack.c.bf16 %v3187, %v3134
    %v3196 = vpack.c.bf16 %v3188, %v3135
    %v3205 = vunpack.c.l.b16 %v3189
    %v3206 = vunpack.c.l.b16 %v3190
    %v3207 = vunpack.c.l.b16 %v3191
    %v3208 = vunpack.c.l.b16 %v3192
    %v3209 = vunpack.c.l.b16 %v3193
    %v3210 = vunpack.c.l.b16 %v3194
    %v3211 = vunpack.c.l.b16 %v3195
    %v3212 = vunpack.c.l.b16 %v3196
    %v3213 = vunpack.c.h.b16 %v3189
    %v3214 = vunpack.c.h.b16 %v3190
    %v3215 = vunpack.c.h.b16 %v3191
    %v3216 = vunpack.c.h.b16 %v3192
    %v3217 = vunpack.c.h.b16 %v3193
    %v3218 = vunpack.c.h.b16 %v3194
    %v3219 = vunpack.c.h.b16 %v3195
    %v3220 = vunpack.c.h.b16 %v3196
    %v3221 = vpack.c.b16 %v3206, %v3205
    %v3222 = vpack.c.b16 %v3208, %v3207
    %v3223 = vpack.c.b16 %v3210, %v3209
    %v3224 = vpack.c.b16 %v3212, %v3211
    %v3225 = vpack.c.b16 %v3214, %v3213
    %v3226 = vpack.c.b16 %v3216, %v3215
    %v3227 = vpack.c.b16 %v3218, %v3217
    %v3228 = vpack.c.b16 %v3220, %v3219
    %3237 = vst [vmem:[#allocation2 + $0x280] sm:$0xff] %v3221
    %3238 = vst [vmem:[#allocation2 + $0x288] sm:$0xff] %v3222
    %3239 = vst [vmem:[#allocation2 + $0x290] sm:$0xff] %v3223
    %3240 = vst [vmem:[#allocation2 + $0x298] sm:$0xff] %v3224
    %3241 = vst [vmem:[#allocation2 + $0x2a0] sm:$0xff] %v3225
    %3242 = vst [vmem:[#allocation2 + $0x2a8] sm:$0xff] %v3226
    %3243 = vst [vmem:[#allocation2 + $0x2b0] sm:$0xff] %v3227
    %3244 = vst [vmem:[#allocation2 + $0x2b8] sm:$0xff] %v3228
    %s3245 = scalar_lea.vmem %s4, 134
    %v3246 = vld [vmem:[%s3245] ss:$8 sm:$0xf]
    %v3247 = vld [vmem:[%s3245] ss:$8 sm:$0xf0]
    %v3248 = vor.u32 %v3246, %v3247
    %v3250 = vlaneseq
    %v3251 = vshrl.u32 %v3250, 7
    %v3252 = vsub.s32 0, %v3251
    %v3253 = vrot.slane %v3248, %v3252
    %v3254 = vlaneseq
    %v3255 = vshrl.u32 %v3254, 7
    %v3256 = vsub.s32 1, %v3255
    %v3257 = vrot.slane %v3248, %v3256
    %v3258 = vlaneseq
    %v3259 = vshrl.u32 %v3258, 7
    %v3260 = vsub.s32 2, %v3259
    %v3261 = vrot.slane %v3248, %v3260
    %v3262 = vlaneseq
    %v3263 = vshrl.u32 %v3262, 7
    %v3264 = vsub.s32 3, %v3263
    %v3265 = vrot.slane %v3248, %v3264
    %v3266 = vlaneseq
    %v3267 = vshrl.u32 %v3266, 7
    %v3268 = vsub.s32 4, %v3267
    %v3269 = vrot.slane %v3248, %v3268
    %v3270 = vlaneseq
    %v3271 = vshrl.u32 %v3270, 7
    %v3272 = vsub.s32 5, %v3271
    %v3273 = vrot.slane %v3248, %v3272
    %v3274 = vlaneseq
    %v3275 = vshrl.u32 %v3274, 7
    %v3276 = vsub.s32 6, %v3275
    %v3277 = vrot.slane %v3248, %v3276
    %v3278 = vlaneseq
    %v3279 = vshrl.u32 %v3278, 7
    %v3280 = vsub.s32 7, %v3279
    %v3281 = vrot.slane %v3248, %v3280
    %v3290 = vmul.f32 %v1363, %v3253
    %v3291 = vmul.f32 %v1364, %v3257
    %v3292 = vmul.f32 %v1365, %v3261
    %v3293 = vmul.f32 %v1366, %v3265
    %v3294 = vmul.f32 %v1367, %v3269
    %v3295 = vmul.f32 %v1368, %v3273
    %v3296 = vmul.f32 %v1369, %v3277
    %v3297 = vmul.f32 %v1378, %v3281
    %s3298 = scalar_lea.vmem %s4, 135
    %v3299 = vld [vmem:[%s3298] ss:$8 sm:$0xf]
    %v3300 = vld [vmem:[%s3298] ss:$8 sm:$0xf0]
    %v3301 = vor.u32 %v3299, %v3300
    %v3303 = vlaneseq
    %v3304 = vshrl.u32 %v3303, 7
    %v3305 = vsub.s32 0, %v3304
    %v3306 = vrot.slane %v3301, %v3305
    %v3307 = vlaneseq
    %v3308 = vshrl.u32 %v3307, 7
    %v3309 = vsub.s32 1, %v3308
    %v3310 = vrot.slane %v3301, %v3309
    %v3311 = vlaneseq
    %v3312 = vshrl.u32 %v3311, 7
    %v3313 = vsub.s32 2, %v3312
    %v3314 = vrot.slane %v3301, %v3313
    %v3315 = vlaneseq
    %v3316 = vshrl.u32 %v3315, 7
    %v3317 = vsub.s32 3, %v3316
    %v3318 = vrot.slane %v3301, %v3317
    %v3319 = vlaneseq
    %v3320 = vshrl.u32 %v3319, 7
    %v3321 = vsub.s32 4, %v3320
    %v3322 = vrot.slane %v3301, %v3321
    %v3323 = vlaneseq
    %v3324 = vshrl.u32 %v3323, 7
    %v3325 = vsub.s32 5, %v3324
    %v3326 = vrot.slane %v3301, %v3325
    %v3327 = vlaneseq
    %v3328 = vshrl.u32 %v3327, 7
    %v3329 = vsub.s32 6, %v3328
    %v3330 = vrot.slane %v3301, %v3329
    %v3331 = vlaneseq
    %v3332 = vshrl.u32 %v3331, 7
    %v3333 = vsub.s32 7, %v3332
    %v3334 = vrot.slane %v3301, %v3333
    %v3343 = vmul.f32 %v1450, %v3306
    %v3344 = vmul.f32 %v1451, %v3310
    %v3345 = vmul.f32 %v1452, %v3314
    %v3346 = vmul.f32 %v1453, %v3318
    %v3347 = vmul.f32 %v1454, %v3322
    %v3348 = vmul.f32 %v1455, %v3326
    %v3349 = vmul.f32 %v1456, %v3330
    %v3350 = vmul.f32 %v1465, %v3334
    %v3351 = vpack.c.bf16 %v3343, %v3290
    %v3352 = vpack.c.bf16 %v3344, %v3291
    %v3353 = vpack.c.bf16 %v3345, %v3292
    %v3354 = vpack.c.bf16 %v3346, %v3293
    %v3355 = vpack.c.bf16 %v3347, %v3294
    %v3356 = vpack.c.bf16 %v3348, %v3295
    %v3357 = vpack.c.bf16 %v3349, %v3296
    %v3358 = vpack.c.bf16 %v3350, %v3297
    %v3367 = vunpack.c.l.b16 %v3351
    %v3368 = vunpack.c.l.b16 %v3352
    %v3369 = vunpack.c.l.b16 %v3353
    %v3370 = vunpack.c.l.b16 %v3354
    %v3371 = vunpack.c.l.b16 %v3355
    %v3372 = vunpack.c.l.b16 %v3356
    %v3373 = vunpack.c.l.b16 %v3357
    %v3374 = vunpack.c.l.b16 %v3358
    %v3375 = vunpack.c.h.b16 %v3351
    %v3376 = vunpack.c.h.b16 %v3352
    %v3377 = vunpack.c.h.b16 %v3353
    %v3378 = vunpack.c.h.b16 %v3354
    %v3379 = vunpack.c.h.b16 %v3355
    %v3380 = vunpack.c.h.b16 %v3356
    %v3381 = vunpack.c.h.b16 %v3357
    %v3382 = vunpack.c.h.b16 %v3358
    %v3383 = vpack.c.b16 %v3368, %v3367
    %v3384 = vpack.c.b16 %v3370, %v3369
    %v3385 = vpack.c.b16 %v3372, %v3371
    %v3386 = vpack.c.b16 %v3374, %v3373
    %v3387 = vpack.c.b16 %v3376, %v3375
    %v3388 = vpack.c.b16 %v3378, %v3377
    %v3389 = vpack.c.b16 %v3380, %v3379
    %v3390 = vpack.c.b16 %v3382, %v3381
    %3399 = vst [vmem:[#allocation2 + $0x2c0] sm:$0xff] %v3383
    %3400 = vst [vmem:[#allocation2 + $0x2c8] sm:$0xff] %v3384
    %3401 = vst [vmem:[#allocation2 + $0x2d0] sm:$0xff] %v3385
    %3402 = vst [vmem:[#allocation2 + $0x2d8] sm:$0xff] %v3386
    %3403 = vst [vmem:[#allocation2 + $0x2e0] sm:$0xff] %v3387
    %3404 = vst [vmem:[#allocation2 + $0x2e8] sm:$0xff] %v3388
    %3405 = vst [vmem:[#allocation2 + $0x2f0] sm:$0xff] %v3389
    %3406 = vst [vmem:[#allocation2 + $0x2f8] sm:$0xff] %v3390
    %s3407 = scalar_lea.vmem %s4, 192
    %v3408 = vld [vmem:[%s3407] ss:$8 sm:$0xf]
    %v3409 = vld [vmem:[%s3407] ss:$8 sm:$0xf0]
    %v3410 = vor.u32 %v3408, %v3409
    %v3412 = vlaneseq
    %v3413 = vshrl.u32 %v3412, 7
    %v3414 = vsub.s32 0, %v3413
    %v3415 = vrot.slane %v3410, %v3414
    %v3416 = vlaneseq
    %v3417 = vshrl.u32 %v3416, 7
    %v3418 = vsub.s32 1, %v3417
    %v3419 = vrot.slane %v3410, %v3418
    %v3420 = vlaneseq
    %v3421 = vshrl.u32 %v3420, 7
    %v3422 = vsub.s32 2, %v3421
    %v3423 = vrot.slane %v3410, %v3422
    %v3424 = vlaneseq
    %v3425 = vshrl.u32 %v3424, 7
    %v3426 = vsub.s32 3, %v3425
    %v3427 = vrot.slane %v3410, %v3426
    %v3428 = vlaneseq
    %v3429 = vshrl.u32 %v3428, 7
    %v3430 = vsub.s32 4, %v3429
    %v3431 = vrot.slane %v3410, %v3430
    %v3432 = vlaneseq
    %v3433 = vshrl.u32 %v3432, 7
    %v3434 = vsub.s32 5, %v3433
    %v3435 = vrot.slane %v3410, %v3434
    %v3436 = vlaneseq
    %v3437 = vshrl.u32 %v3436, 7
    %v3438 = vsub.s32 6, %v3437
    %v3439 = vrot.slane %v3410, %v3438
    %v3440 = vlaneseq
    %v3441 = vshrl.u32 %v3440, 7
    %v3442 = vsub.s32 7, %v3441
    %v3443 = vrot.slane %v3410, %v3442
    %v3452 = vmul.f32 %v1593, %v3415
    %v3453 = vmul.f32 %v1594, %v3419
    %v3454 = vmul.f32 %v1595, %v3423
    %v3455 = vmul.f32 %v1596, %v3427
    %v3456 = vmul.f32 %v1597, %v3431
    %v3457 = vmul.f32 %v1598, %v3435
    %v3458 = vmul.f32 %v1599, %v3439
    %v3459 = vmul.f32 %v1608, %v3443
    %s3460 = scalar_lea.vmem %s4, 193
    %v3461 = vld [vmem:[%s3460] ss:$8 sm:$0xf]
    %v3462 = vld [vmem:[%s3460] ss:$8 sm:$0xf0]
    %v3463 = vor.u32 %v3461, %v3462
    %v3465 = vlaneseq
    %v3466 = vshrl.u32 %v3465, 7
    %v3467 = vsub.s32 0, %v3466
    %v3468 = vrot.slane %v3463, %v3467
    %v3469 = vlaneseq
    %v3470 = vshrl.u32 %v3469, 7
    %v3471 = vsub.s32 1, %v3470
    %v3472 = vrot.slane %v3463, %v3471
    %v3473 = vlaneseq
    %v3474 = vshrl.u32 %v3473, 7
    %v3475 = vsub.s32 2, %v3474
    %v3476 = vrot.slane %v3463, %v3475
    %v3477 = vlaneseq
    %v3478 = vshrl.u32 %v3477, 7
    %v3479 = vsub.s32 3, %v3478
    %v3480 = vrot.slane %v3463, %v3479
    %v3481 = vlaneseq
    %v3482 = vshrl.u32 %v3481, 7
    %v3483 = vsub.s32 4, %v3482
    %v3484 = vrot.slane %v3463, %v3483
    %v3485 = vlaneseq
    %v3486 = vshrl.u32 %v3485, 7
    %v3487 = vsub.s32 5, %v3486
    %v3488 = vrot.slane %v3463, %v3487
    %v3489 = vlaneseq
    %v3490 = vshrl.u32 %v3489, 7
    %v3491 = vsub.s32 6, %v3490
    %v3492 = vrot.slane %v3463, %v3491
    %v3493 = vlaneseq
    %v3494 = vshrl.u32 %v3493, 7
    %v3495 = vsub.s32 7, %v3494
    %v3496 = vrot.slane %v3463, %v3495
    %v3505 = vmul.f32 %v1680, %v3468
    %v3506 = vmul.f32 %v1681, %v3472
    %v3507 = vmul.f32 %v1682, %v3476
    %v3508 = vmul.f32 %v1683, %v3480
    %v3509 = vmul.f32 %v1684, %v3484
    %v3510 = vmul.f32 %v1685, %v3488
    %v3511 = vmul.f32 %v1686, %v3492
    %v3512 = vmul.f32 %v1695, %v3496
    %v3513 = vpack.c.bf16 %v3505, %v3452
    %v3514 = vpack.c.bf16 %v3506, %v3453
    %v3515 = vpack.c.bf16 %v3507, %v3454
    %v3516 = vpack.c.bf16 %v3508, %v3455
    %v3517 = vpack.c.bf16 %v3509, %v3456
    %v3518 = vpack.c.bf16 %v3510, %v3457
    %v3519 = vpack.c.bf16 %v3511, %v3458
    %v3520 = vpack.c.bf16 %v3512, %v3459
    %v3529 = vunpack.c.l.b16 %v3513
    %v3530 = vunpack.c.l.b16 %v3514
    %v3531 = vunpack.c.l.b16 %v3515
    %v3532 = vunpack.c.l.b16 %v3516
    %v3533 = vunpack.c.l.b16 %v3517
    %v3534 = vunpack.c.l.b16 %v3518
    %v3535 = vunpack.c.l.b16 %v3519
    %v3536 = vunpack.c.l.b16 %v3520
    %v3537 = vunpack.c.h.b16 %v3513
    %v3538 = vunpack.c.h.b16 %v3514
    %v3539 = vunpack.c.h.b16 %v3515
    %v3540 = vunpack.c.h.b16 %v3516
    %v3541 = vunpack.c.h.b16 %v3517
    %v3542 = vunpack.c.h.b16 %v3518
    %v3543 = vunpack.c.h.b16 %v3519
    %v3544 = vunpack.c.h.b16 %v3520
    %v3545 = vpack.c.b16 %v3530, %v3529
    %v3546 = vpack.c.b16 %v3532, %v3531
    %v3547 = vpack.c.b16 %v3534, %v3533
    %v3548 = vpack.c.b16 %v3536, %v3535
    %v3549 = vpack.c.b16 %v3538, %v3537
    %v3550 = vpack.c.b16 %v3540, %v3539
    %v3551 = vpack.c.b16 %v3542, %v3541
    %v3552 = vpack.c.b16 %v3544, %v3543
    %3561 = vst [vmem:[#allocation2 + $0x300] sm:$0xff] %v3545
    %3562 = vst [vmem:[#allocation2 + $0x308] sm:$0xff] %v3546
    %3563 = vst [vmem:[#allocation2 + $0x310] sm:$0xff] %v3547
    %3564 = vst [vmem:[#allocation2 + $0x318] sm:$0xff] %v3548
    %3565 = vst [vmem:[#allocation2 + $0x320] sm:$0xff] %v3549
    %3566 = vst [vmem:[#allocation2 + $0x328] sm:$0xff] %v3550
    %3567 = vst [vmem:[#allocation2 + $0x330] sm:$0xff] %v3551
    %3568 = vst [vmem:[#allocation2 + $0x338] sm:$0xff] %v3552
    %s3569 = scalar_lea.vmem %s4, 194
    %v3570 = vld [vmem:[%s3569] ss:$8 sm:$0xf]
    %v3571 = vld [vmem:[%s3569] ss:$8 sm:$0xf0]
    %v3572 = vor.u32 %v3570, %v3571
    %v3574 = vlaneseq
    %v3575 = vshrl.u32 %v3574, 7
    %v3576 = vsub.s32 0, %v3575
    %v3577 = vrot.slane %v3572, %v3576
    %v3578 = vlaneseq
    %v3579 = vshrl.u32 %v3578, 7
    %v3580 = vsub.s32 1, %v3579
    %v3581 = vrot.slane %v3572, %v3580
    %v3582 = vlaneseq
    %v3583 = vshrl.u32 %v3582, 7
    %v3584 = vsub.s32 2, %v3583
    %v3585 = vrot.slane %v3572, %v3584
    %v3586 = vlaneseq
    %v3587 = vshrl.u32 %v3586, 7
    %v3588 = vsub.s32 3, %v3587
    %v3589 = vrot.slane %v3572, %v3588
    %v3590 = vlaneseq
    %v3591 = vshrl.u32 %v3590, 7
    %v3592 = vsub.s32 4, %v3591
    %v3593 = vrot.slane %v3572, %v3592
    %v3594 = vlaneseq
    %v3595 = vshrl.u32 %v3594, 7
    %v3596 = vsub.s32 5, %v3595
    %v3597 = vrot.slane %v3572, %v3596
    %v3598 = vlaneseq
    %v3599 = vshrl.u32 %v3598, 7
    %v3600 = vsub.s32 6, %v3599
    %v3601 = vrot.slane %v3572, %v3600
    %v3602 = vlaneseq
    %v3603 = vshrl.u32 %v3602, 7
    %v3604 = vsub.s32 7, %v3603
    %v3605 = vrot.slane %v3572, %v3604
    %v3614 = vmul.f32 %v1823, %v3577
    %v3615 = vmul.f32 %v1824, %v3581
    %v3616 = vmul.f32 %v1825, %v3585
    %v3617 = vmul.f32 %v1826, %v3589
    %v3618 = vmul.f32 %v1827, %v3593
    %v3619 = vmul.f32 %v1828, %v3597
    %v3620 = vmul.f32 %v1829, %v3601
    %v3621 = vmul.f32 %v1838, %v3605
    %v3622 = vpack.c.bf16 0.0, %v3614
    %v3623 = vpack.c.bf16 0.0, %v3615
    %v3624 = vpack.c.bf16 0.0, %v3616
    %v3625 = vpack.c.bf16 0.0, %v3617
    %v3626 = vpack.c.bf16 0.0, %v3618
    %v3627 = vpack.c.bf16 0.0, %v3619
    %v3628 = vpack.c.bf16 0.0, %v3620
    %v3629 = vpack.c.bf16 0.0, %v3621
    %v3638 = vunpack.c.l.b16 %v3622
    %v3639 = vunpack.c.l.b16 %v3623
    %v3640 = vunpack.c.l.b16 %v3624
    %v3641 = vunpack.c.l.b16 %v3625
    %v3642 = vunpack.c.l.b16 %v3626
    %v3643 = vunpack.c.l.b16 %v3627
    %v3644 = vunpack.c.l.b16 %v3628
    %v3645 = vunpack.c.l.b16 %v3629
    %v3646 = vunpack.c.h.b16 %v3622
    %v3647 = vunpack.c.h.b16 %v3623
    %v3648 = vunpack.c.h.b16 %v3624
    %v3649 = vunpack.c.h.b16 %v3625
    %v3650 = vunpack.c.h.b16 %v3626
    %v3651 = vunpack.c.h.b16 %v3627
    %v3652 = vunpack.c.h.b16 %v3628
    %v3653 = vunpack.c.h.b16 %v3629
    %v3654 = vpack.c.b16 %v3639, %v3638
    %v3655 = vpack.c.b16 %v3641, %v3640
    %v3656 = vpack.c.b16 %v3643, %v3642
    %v3657 = vpack.c.b16 %v3645, %v3644
    %v3658 = vpack.c.b16 %v3647, %v3646
    %v3659 = vpack.c.b16 %v3649, %v3648
    %v3660 = vpack.c.b16 %v3651, %v3650
    %v3661 = vpack.c.b16 %v3653, %v3652
    %3670 = vst [vmem:[#allocation2 + $0x340] sm:$0xff] %v3654
    %3671 = vst [vmem:[#allocation2 + $0x348] sm:$0xff] %v3655
    %3672 = vst [vmem:[#allocation2 + $0x350] sm:$0xff] %v3656
    %3673 = vst [vmem:[#allocation2 + $0x358] sm:$0xff] %v3657
    %3674 = vst [vmem:[#allocation2 + $0x360] sm:$0xff] %v3658
    %3675 = vst [vmem:[#allocation2 + $0x368] sm:$0xff] %v3659
    %3676 = vst [vmem:[#allocation2 + $0x370] sm:$0xff] %v3660
    %3677 = vst [vmem:[#allocation2 + $0x378] sm:$0xff] %v3661
    %3678 = vst [vmem:[#allocation2 + $0x380] sm:$0xff] 0
    %3679 = vst [vmem:[#allocation2 + $0x388] sm:$0xff] 0
    %3680 = vst [vmem:[#allocation2 + $0x390] sm:$0xff] 0
    %3681 = vst [vmem:[#allocation2 + $0x398] sm:$0xff] 0
    %3682 = vst [vmem:[#allocation2 + $0x3a0] sm:$0xff] 0
    %3683 = vst [vmem:[#allocation2 + $0x3a8] sm:$0xff] 0
    %3684 = vst [vmem:[#allocation2 + $0x3b0] sm:$0xff] 0
    %3685 = vst [vmem:[#allocation2 + $0x3b8] sm:$0xff] 0
    %3686 = vst [vmem:[#allocation2 + $0x3c0] sm:$0xff] 0
    %3687 = vst [vmem:[#allocation2 + $0x3c8] sm:$0xff] 0
    %3688 = vst [vmem:[#allocation2 + $0x3d0] sm:$0xff] 0
    %3689 = vst [vmem:[#allocation2 + $0x3d8] sm:$0xff] 0
    %3690 = vst [vmem:[#allocation2 + $0x3e0] sm:$0xff] 0
    %3691 = vst [vmem:[#allocation2 + $0x3e8] sm:$0xff] 0
    %3692 = vst [vmem:[#allocation2 + $0x3f0] sm:$0xff] 0
    %3693 = vst [vmem:[#allocation2 + $0x3f8] sm:$0xff] 0
    %v3694 = vld [vmem:[#allocation6] sm:$0xff]
    %v3695 = vld [vmem:[#allocation6 + $0x8] sm:$0xff]
    %v3696 = vpack.c.bf16 %v3694, %v3694
    %v3697 = vpack.c.bf16 %v3695, %v3695
    %v3698 = vld [vmem:[#allocation2] sm:$0xff]
    %v3699 = vld [vmem:[#allocation2 + $0x8] sm:$0xff]
    %v3700 = vld [vmem:[#allocation2 + $0x10] sm:$0xff]
    %v3701 = vld [vmem:[#allocation2 + $0x18] sm:$0xff]
    %v3702 = vld [vmem:[#allocation2 + $0x20] sm:$0xff]
    %v3703 = vld [vmem:[#allocation2 + $0x28] sm:$0xff]
    %v3704 = vld [vmem:[#allocation2 + $0x30] sm:$0xff]
    %v3705 = vld [vmem:[#allocation2 + $0x38] sm:$0xff]
    %v3706 = vld [vmem:[#allocation2 + $0x40] sm:$0xff]
    %v3707 = vld [vmem:[#allocation2 + $0x48] sm:$0xff]
    %v3708 = vld [vmem:[#allocation2 + $0x50] sm:$0xff]
    %v3709 = vld [vmem:[#allocation2 + $0x58] sm:$0xff]
    %v3710 = vld [vmem:[#allocation2 + $0x60] sm:$0xff]
    %v3711 = vld [vmem:[#allocation2 + $0x68] sm:$0xff]
    %v3712 = vld [vmem:[#allocation2 + $0x70] sm:$0xff]
    %v3713 = vld [vmem:[#allocation2 + $0x78] sm:$0xff]
    %v3714 = vld [vmem:[#allocation2 + $0x80] sm:$0xff]
    %v3715 = vld [vmem:[#allocation2 + $0x88] sm:$0xff]
    %v3716 = vld [vmem:[#allocation2 + $0x90] sm:$0xff]
    %v3717 = vld [vmem:[#allocation2 + $0x98] sm:$0xff]
    %v3718 = vld [vmem:[#allocation2 + $0xa0] sm:$0xff]
    %v3719 = vld [vmem:[#allocation2 + $0xa8] sm:$0xff]
    %v3720 = vld [vmem:[#allocation2 + $0xb0] sm:$0xff]
    %v3721 = vld [vmem:[#allocation2 + $0xb8] sm:$0xff]
    %v3722 = vld [vmem:[#allocation2 + $0xc0] sm:$0xff]
    %v3723 = vld [vmem:[#allocation2 + $0xc8] sm:$0xff]
    %v3724 = vld [vmem:[#allocation2 + $0xd0] sm:$0xff]
    %v3725 = vld [vmem:[#allocation2 + $0xd8] sm:$0xff]
    %v3726 = vld [vmem:[#allocation2 + $0xe0] sm:$0xff]
    %v3727 = vld [vmem:[#allocation2 + $0xe8] sm:$0xff]
    %v3728 = vld [vmem:[#allocation2 + $0xf0] sm:$0xff]
    %v3729 = vld [vmem:[#allocation2 + $0xf8] sm:$0xff]
    %v3730 = vld [vmem:[#allocation2 + $0x100] sm:$0xff]
    %v3731 = vld [vmem:[#allocation2 + $0x108] sm:$0xff]
    %v3732 = vld [vmem:[#allocation2 + $0x110] sm:$0xff]
    %v3733 = vld [vmem:[#allocation2 + $0x118] sm:$0xff]
    %v3734 = vld [vmem:[#allocation2 + $0x120] sm:$0xff]
    %v3735 = vld [vmem:[#allocation2 + $0x128] sm:$0xff]
    %v3736 = vld [vmem:[#allocation2 + $0x130] sm:$0xff]
    %v3737 = vld [vmem:[#allocation2 + $0x138] sm:$0xff]
    %v3738 = vld [vmem:[#allocation2 + $0x140] sm:$0xff]
    %v3739 = vld [vmem:[#allocation2 + $0x148] sm:$0xff]
    %v3740 = vld [vmem:[#allocation2 + $0x150] sm:$0xff]
    %v3741 = vld [vmem:[#allocation2 + $0x158] sm:$0xff]
    %v3742 = vld [vmem:[#allocation2 + $0x160] sm:$0xff]
    %v3743 = vld [vmem:[#allocation2 + $0x168] sm:$0xff]
    %v3744 = vld [vmem:[#allocation2 + $0x170] sm:$0xff]
    %v3745 = vld [vmem:[#allocation2 + $0x178] sm:$0xff]
    %v3746 = vld [vmem:[#allocation2 + $0x180] sm:$0xff]
    %v3747 = vld [vmem:[#allocation2 + $0x188] sm:$0xff]
    %v3748 = vld [vmem:[#allocation2 + $0x190] sm:$0xff]
    %v3749 = vld [vmem:[#allocation2 + $0x198] sm:$0xff]
    %v3750 = vld [vmem:[#allocation2 + $0x1a0] sm:$0xff]
    %v3751 = vld [vmem:[#allocation2 + $0x1a8] sm:$0xff]
    %v3752 = vld [vmem:[#allocation2 + $0x1b0] sm:$0xff]
    %v3753 = vld [vmem:[#allocation2 + $0x1b8] sm:$0xff]
    %v3754 = vld [vmem:[#allocation2 + $0x1c0] sm:$0xff]
    %v3755 = vld [vmem:[#allocation2 + $0x1c8] sm:$0xff]
    %v3756 = vld [vmem:[#allocation2 + $0x1d0] sm:$0xff]
    %v3757 = vld [vmem:[#allocation2 + $0x1d8] sm:$0xff]
    %v3758 = vld [vmem:[#allocation2 + $0x1e0] sm:$0xff]
    %v3759 = vld [vmem:[#allocation2 + $0x1e8] sm:$0xff]
    %v3760 = vld [vmem:[#allocation2 + $0x1f0] sm:$0xff]
    %v3761 = vld [vmem:[#allocation2 + $0x1f8] sm:$0xff]
    %v3762 = vld [vmem:[#allocation2 + $0x200] sm:$0xff]
    %v3763 = vld [vmem:[#allocation2 + $0x208] sm:$0xff]
    %v3764 = vld [vmem:[#allocation2 + $0x210] sm:$0xff]
    %v3765 = vld [vmem:[#allocation2 + $0x218] sm:$0xff]
    %v3766 = vld [vmem:[#allocation2 + $0x220] sm:$0xff]
    %v3767 = vld [vmem:[#allocation2 + $0x228] sm:$0xff]
    %v3768 = vld [vmem:[#allocation2 + $0x230] sm:$0xff]
    %v3769 = vld [vmem:[#allocation2 + $0x238] sm:$0xff]
    %v3770 = vld [vmem:[#allocation2 + $0x240] sm:$0xff]
    %v3771 = vld [vmem:[#allocation2 + $0x248] sm:$0xff]
    %v3772 = vld [vmem:[#allocation2 + $0x250] sm:$0xff]
    %v3773 = vld [vmem:[#allocation2 + $0x258] sm:$0xff]
    %v3774 = vld [vmem:[#allocation2 + $0x260] sm:$0xff]
    %v3775 = vld [vmem:[#allocation2 + $0x268] sm:$0xff]
    %v3776 = vld [vmem:[#allocation2 + $0x270] sm:$0xff]
    %v3777 = vld [vmem:[#allocation2 + $0x278] sm:$0xff]
    %v3778 = vld [vmem:[#allocation2 + $0x280] sm:$0xff]
    %v3779 = vld [vmem:[#allocation2 + $0x288] sm:$0xff]
    %v3780 = vld [vmem:[#allocation2 + $0x290] sm:$0xff]
    %v3781 = vld [vmem:[#allocation2 + $0x298] sm:$0xff]
    %v3782 = vld [vmem:[#allocation2 + $0x2a0] sm:$0xff]
    %v3783 = vld [vmem:[#allocation2 + $0x2a8] sm:$0xff]
    %v3784 = vld [vmem:[#allocation2 + $0x2b0] sm:$0xff]
    %v3785 = vld [vmem:[#allocation2 + $0x2b8] sm:$0xff]
    %v3786 = vld [vmem:[#allocation2 + $0x2c0] sm:$0xff]
    %v3787 = vld [vmem:[#allocation2 + $0x2c8] sm:$0xff]
    %v3788 = vld [vmem:[#allocation2 + $0x2d0] sm:$0xff]
    %v3789 = vld [vmem:[#allocation2 + $0x2d8] sm:$0xff]
    %v3790 = vld [vmem:[#allocation2 + $0x2e0] sm:$0xff]
    %v3791 = vld [vmem:[#allocation2 + $0x2e8] sm:$0xff]
    %v3792 = vld [vmem:[#allocation2 + $0x2f0] sm:$0xff]
    %v3793 = vld [vmem:[#allocation2 + $0x2f8] sm:$0xff]
    %v3794 = vld [vmem:[#allocation2 + $0x300] sm:$0xff]
    %v3795 = vld [vmem:[#allocation2 + $0x308] sm:$0xff]
    %v3796 = vld [vmem:[#allocation2 + $0x310] sm:$0xff]
    %v3797 = vld [vmem:[#allocation2 + $0x318] sm:$0xff]
    %v3798 = vld [vmem:[#allocation2 + $0x320] sm:$0xff]
    %v3799 = vld [vmem:[#allocation2 + $0x328] sm:$0xff]
    %v3800 = vld [vmem:[#allocation2 + $0x330] sm:$0xff]
    %v3801 = vld [vmem:[#allocation2 + $0x338] sm:$0xff]
    %v3802 = vld [vmem:[#allocation2 + $0x340] sm:$0xff]
    %v3803 = vld [vmem:[#allocation2 + $0x348] sm:$0xff]
    %v3804 = vld [vmem:[#allocation2 + $0x350] sm:$0xff]
    %v3805 = vld [vmem:[#allocation2 + $0x358] sm:$0xff]
    %v3806 = vld [vmem:[#allocation2 + $0x360] sm:$0xff]
    %v3807 = vld [vmem:[#allocation2 + $0x368] sm:$0xff]
    %v3808 = vld [vmem:[#allocation2 + $0x370] sm:$0xff]
    %v3809 = vld [vmem:[#allocation2 + $0x378] sm:$0xff]
    %v3810 = vld [vmem:[#allocation2 + $0x380] sm:$0xff]
    %v3811 = vld [vmem:[#allocation2 + $0x388] sm:$0xff]
    %v3812 = vld [vmem:[#allocation2 + $0x390] sm:$0xff]
    %v3813 = vld [vmem:[#allocation2 + $0x398] sm:$0xff]
    %v3814 = vld [vmem:[#allocation2 + $0x3a0] sm:$0xff]
    %v3815 = vld [vmem:[#allocation2 + $0x3a8] sm:$0xff]
    %v3816 = vld [vmem:[#allocation2 + $0x3b0] sm:$0xff]
    %v3817 = vld [vmem:[#allocation2 + $0x3b8] sm:$0xff]
    %v3818 = vld [vmem:[#allocation2 + $0x3c0] sm:$0xff]
    %v3819 = vld [vmem:[#allocation2 + $0x3c8] sm:$0xff]
    %v3820 = vld [vmem:[#allocation2 + $0x3d0] sm:$0xff]
    %v3821 = vld [vmem:[#allocation2 + $0x3d8] sm:$0xff]
    %v3822 = vld [vmem:[#allocation2 + $0x3e0] sm:$0xff]
    %v3823 = vld [vmem:[#allocation2 + $0x3e8] sm:$0xff]
    %v3824 = vld [vmem:[#allocation2 + $0x3f0] sm:$0xff]
    %v3825 = vld [vmem:[#allocation2 + $0x3f8] sm:$0xff]
    %v3954 = vunpack.c.l.b16 %v3698
    %v3955 = vunpack.c.h.b16 %v3698
    %v3956 = vunpack.c.l.b16 %v3699
    %v3957 = vunpack.c.h.b16 %v3699
    %v3958 = vunpack.c.l.b16 %v3700
    %v3959 = vunpack.c.h.b16 %v3700
    %v3960 = vunpack.c.l.b16 %v3701
    %v3961 = vunpack.c.h.b16 %v3701
    %v3962 = vunpack.c.l.b16 %v3702
    %v3963 = vunpack.c.h.b16 %v3702
    %v3964 = vunpack.c.l.b16 %v3703
    %v3965 = vunpack.c.h.b16 %v3703
    %v3966 = vunpack.c.l.b16 %v3704
    %v3967 = vunpack.c.h.b16 %v3704
    %v3968 = vunpack.c.l.b16 %v3705
    %v3969 = vunpack.c.h.b16 %v3705
    %v3970 = vunpack.c.l.b16 %v3706
    %v3971 = vunpack.c.h.b16 %v3706
    %v3972 = vunpack.c.l.b16 %v3707
    %v3973 = vunpack.c.h.b16 %v3707
    %v3974 = vunpack.c.l.b16 %v3708
    %v3975 = vunpack.c.h.b16 %v3708
    %v3976 = vunpack.c.l.b16 %v3709
    %v3977 = vunpack.c.h.b16 %v3709
    %v3978 = vunpack.c.l.b16 %v3710
    %v3979 = vunpack.c.h.b16 %v3710
    %v3980 = vunpack.c.l.b16 %v3711
    %v3981 = vunpack.c.h.b16 %v3711
    %v3982 = vunpack.c.l.b16 %v3712
    %v3983 = vunpack.c.h.b16 %v3712
    %v3984 = vunpack.c.l.b16 %v3713
    %v3985 = vunpack.c.h.b16 %v3713
    %v3986 = vunpack.c.l.b16 %v3714
    %v3987 = vunpack.c.h.b16 %v3714
    %v3988 = vunpack.c.l.b16 %v3715
    %v3989 = vunpack.c.h.b16 %v3715
    %v3990 = vunpack.c.l.b16 %v3716
    %v3991 = vunpack.c.h.b16 %v3716
    %v3992 = vunpack.c.l.b16 %v3717
    %v3993 = vunpack.c.h.b16 %v3717
    %v3994 = vunpack.c.l.b16 %v3718
    %v3995 = vunpack.c.h.b16 %v3718
    %v3996 = vunpack.c.l.b16 %v3719
    %v3997 = vunpack.c.h.b16 %v3719
    %v3998 = vunpack.c.l.b16 %v3720
    %v3999 = vunpack.c.h.b16 %v3720
    %v4000 = vunpack.c.l.b16 %v3721
    %v4001 = vunpack.c.h.b16 %v3721
    %v4002 = vunpack.c.l.b16 %v3722
    %v4003 = vunpack.c.h.b16 %v3722
    %v4004 = vunpack.c.l.b16 %v3723
    %v4005 = vunpack.c.h.b16 %v3723
    %v4006 = vunpack.c.l.b16 %v3724
    %v4007 = vunpack.c.h.b16 %v3724
    %v4008 = vunpack.c.l.b16 %v3725
    %v4009 = vunpack.c.h.b16 %v3725
    %v4010 = vunpack.c.l.b16 %v3726
    %v4011 = vunpack.c.h.b16 %v3726
    %v4012 = vunpack.c.l.b16 %v3727
    %v4013 = vunpack.c.h.b16 %v3727
    %v4014 = vunpack.c.l.b16 %v3728
    %v4015 = vunpack.c.h.b16 %v3728
    %v4016 = vunpack.c.l.b16 %v3729
    %v4017 = vunpack.c.h.b16 %v3729
    %v4018 = vunpack.c.l.b16 %v3730
    %v4019 = vunpack.c.h.b16 %v3730
    %v4020 = vunpack.c.l.b16 %v3731
    %v4021 = vunpack.c.h.b16 %v3731
    %v4022 = vunpack.c.l.b16 %v3732
    %v4023 = vunpack.c.h.b16 %v3732
    %v4024 = vunpack.c.l.b16 %v3733
    %v4025 = vunpack.c.h.b16 %v3733
    %v4026 = vunpack.c.l.b16 %v3734
    %v4027 = vunpack.c.h.b16 %v3734
    %v4028 = vunpack.c.l.b16 %v3735
    %v4029 = vunpack.c.h.b16 %v3735
    %v4030 = vunpack.c.l.b16 %v3736
    %v4031 = vunpack.c.h.b16 %v3736
    %v4032 = vunpack.c.l.b16 %v3737
    %v4033 = vunpack.c.h.b16 %v3737
    %v4034 = vunpack.c.l.b16 %v3738
    %v4035 = vunpack.c.h.b16 %v3738
    %v4036 = vunpack.c.l.b16 %v3739
    %v4037 = vunpack.c.h.b16 %v3739
    %v4038 = vunpack.c.l.b16 %v3740
    %v4039 = vunpack.c.h.b16 %v3740
    %v4040 = vunpack.c.l.b16 %v3741
    %v4041 = vunpack.c.h.b16 %v3741
    %v4042 = vunpack.c.l.b16 %v3742
    %v4043 = vunpack.c.h.b16 %v3742
    %v4044 = vunpack.c.l.b16 %v3743
    %v4045 = vunpack.c.h.b16 %v3743
    %v4046 = vunpack.c.l.b16 %v3744
    %v4047 = vunpack.c.h.b16 %v3744
    %v4048 = vunpack.c.l.b16 %v3745
    %v4049 = vunpack.c.h.b16 %v3745
    %v4050 = vunpack.c.l.b16 %v3746
    %v4051 = vunpack.c.h.b16 %v3746
    %v4052 = vunpack.c.l.b16 %v3747
    %v4053 = vunpack.c.h.b16 %v3747
    %v4054 = vunpack.c.l.b16 %v3748
    %v4055 = vunpack.c.h.b16 %v3748
    %v4056 = vunpack.c.l.b16 %v3749
    %v4057 = vunpack.c.h.b16 %v3749
    %v4058 = vunpack.c.l.b16 %v3750
    %v4059 = vunpack.c.h.b16 %v3750
    %v4060 = vunpack.c.l.b16 %v3751
    %v4061 = vunpack.c.h.b16 %v3751
    %v4062 = vunpack.c.l.b16 %v3752
    %v4063 = vunpack.c.h.b16 %v3752
    %v4064 = vunpack.c.l.b16 %v3753
    %v4065 = vunpack.c.h.b16 %v3753
    %v4066 = vunpack.c.l.b16 %v3754
    %v4067 = vunpack.c.h.b16 %v3754
    %v4068 = vunpack.c.l.b16 %v3755
    %v4069 = vunpack.c.h.b16 %v3755
    %v4070 = vunpack.c.l.b16 %v3756
    %v4071 = vunpack.c.h.b16 %v3756
    %v4072 = vunpack.c.l.b16 %v3757
    %v4073 = vunpack.c.h.b16 %v3757
    %v4074 = vunpack.c.l.b16 %v3758
    %v4075 = vunpack.c.h.b16 %v3758
    %v4076 = vunpack.c.l.b16 %v3759
    %v4077 = vunpack.c.h.b16 %v3759
    %v4078 = vunpack.c.l.b16 %v3760
    %v4079 = vunpack.c.h.b16 %v3760
    %v4080 = vunpack.c.l.b16 %v3761
    %v4081 = vunpack.c.h.b16 %v3761
    %v4082 = vunpack.c.l.b16 %v3762
    %v4083 = vunpack.c.h.b16 %v3762
    %v4084 = vunpack.c.l.b16 %v3763
    %v4085 = vunpack.c.h.b16 %v3763
    %v4086 = vunpack.c.l.b16 %v3764
    %v4087 = vunpack.c.h.b16 %v3764
    %v4088 = vunpack.c.l.b16 %v3765
    %v4089 = vunpack.c.h.b16 %v3765
    %v4090 = vunpack.c.l.b16 %v3766
    %v4091 = vunpack.c.h.b16 %v3766
    %v4092 = vunpack.c.l.b16 %v3767
    %v4093 = vunpack.c.h.b16 %v3767
    %v4094 = vunpack.c.l.b16 %v3768
    %v4095 = vunpack.c.h.b16 %v3768
    %v4096 = vunpack.c.l.b16 %v3769
    %v4097 = vunpack.c.h.b16 %v3769
    %v4098 = vunpack.c.l.b16 %v3770
    %v4099 = vunpack.c.h.b16 %v3770
    %v4100 = vunpack.c.l.b16 %v3771
    %v4101 = vunpack.c.h.b16 %v3771
    %v4102 = vunpack.c.l.b16 %v3772
    %v4103 = vunpack.c.h.b16 %v3772
    %v4104 = vunpack.c.l.b16 %v3773
    %v4105 = vunpack.c.h.b16 %v3773
    %v4106 = vunpack.c.l.b16 %v3774
    %v4107 = vunpack.c.h.b16 %v3774
    %v4108 = vunpack.c.l.b16 %v3775
    %v4109 = vunpack.c.h.b16 %v3775
    %v4110 = vunpack.c.l.b16 %v3776
    %v4111 = vunpack.c.h.b16 %v3776
    %v4112 = vunpack.c.l.b16 %v3777
    %v4113 = vunpack.c.h.b16 %v3777
    %v4114 = vunpack.c.l.b16 %v3778
    %v4115 = vunpack.c.h.b16 %v3778
    %v4116 = vunpack.c.l.b16 %v3779
    %v4117 = vunpack.c.h.b16 %v3779
    %v4118 = vunpack.c.l.b16 %v3780
    %v4119 = vunpack.c.h.b16 %v3780
    %v4120 = vunpack.c.l.b16 %v3781
    %v4121 = vunpack.c.h.b16 %v3781
    %v4122 = vunpack.c.l.b16 %v3782
    %v4123 = vunpack.c.h.b16 %v3782
    %v4124 = vunpack.c.l.b16 %v3783
    %v4125 = vunpack.c.h.b16 %v3783
    %v4126 = vunpack.c.l.b16 %v3784
    %v4127 = vunpack.c.h.b16 %v3784
    %v4128 = vunpack.c.l.b16 %v3785
    %v4129 = vunpack.c.h.b16 %v3785
    %v4130 = vunpack.c.l.b16 %v3786
    %v4131 = vunpack.c.h.b16 %v3786
    %v4132 = vunpack.c.l.b16 %v3787
    %v4133 = vunpack.c.h.b16 %v3787
    %v4134 = vunpack.c.l.b16 %v3788
    %v4135 = vunpack.c.h.b16 %v3788
    %v4136 = vunpack.c.l.b16 %v3789
    %v4137 = vunpack.c.h.b16 %v3789
    %v4138 = vunpack.c.l.b16 %v3790
    %v4139 = vunpack.c.h.b16 %v3790
    %v4140 = vunpack.c.l.b16 %v3791
    %v4141 = vunpack.c.h.b16 %v3791
    %v4142 = vunpack.c.l.b16 %v3792
    %v4143 = vunpack.c.h.b16 %v3792
    %v4144 = vunpack.c.l.b16 %v3793
    %v4145 = vunpack.c.h.b16 %v3793
    %v4146 = vunpack.c.l.b16 %v3794
    %v4147 = vunpack.c.h.b16 %v3794
    %v4148 = vunpack.c.l.b16 %v3795
    %v4149 = vunpack.c.h.b16 %v3795
    %v4150 = vunpack.c.l.b16 %v3796
    %v4151 = vunpack.c.h.b16 %v3796
    %v4152 = vunpack.c.l.b16 %v3797
    %v4153 = vunpack.c.h.b16 %v3797
    %v4154 = vunpack.c.l.b16 %v3798
    %v4155 = vunpack.c.h.b16 %v3798
    %v4156 = vunpack.c.l.b16 %v3799
    %v4157 = vunpack.c.h.b16 %v3799
    %v4158 = vunpack.c.l.b16 %v3800
    %v4159 = vunpack.c.h.b16 %v3800
    %v4160 = vunpack.c.l.b16 %v3801
    %v4161 = vunpack.c.h.b16 %v3801
    %v4162 = vunpack.c.l.b16 %v3802
    %v4163 = vunpack.c.h.b16 %v3802
    %v4164 = vunpack.c.l.b16 %v3803
    %v4165 = vunpack.c.h.b16 %v3803
    %v4166 = vunpack.c.l.b16 %v3804
    %v4167 = vunpack.c.h.b16 %v3804
    %v4168 = vunpack.c.l.b16 %v3805
    %v4169 = vunpack.c.h.b16 %v3805
    %v4170 = vunpack.c.l.b16 %v3806
    %v4171 = vunpack.c.h.b16 %v3806
    %v4172 = vunpack.c.l.b16 %v3807
    %v4173 = vunpack.c.h.b16 %v3807
    %v4174 = vunpack.c.l.b16 %v3808
    %v4175 = vunpack.c.h.b16 %v3808
    %v4176 = vunpack.c.l.b16 %v3809
    %v4177 = vunpack.c.h.b16 %v3809
    %v4178 = vunpack.c.l.b16 %v3810
    %v4179 = vunpack.c.h.b16 %v3810
    %v4180 = vunpack.c.l.b16 %v3811
    %v4181 = vunpack.c.h.b16 %v3811
    %v4182 = vunpack.c.l.b16 %v3812
    %v4183 = vunpack.c.h.b16 %v3812
    %v4184 = vunpack.c.l.b16 %v3813
    %v4185 = vunpack.c.h.b16 %v3813
    %v4186 = vunpack.c.l.b16 %v3814
    %v4187 = vunpack.c.h.b16 %v3814
    %v4188 = vunpack.c.l.b16 %v3815
    %v4189 = vunpack.c.h.b16 %v3815
    %v4190 = vunpack.c.l.b16 %v3816
    %v4191 = vunpack.c.h.b16 %v3816
    %v4192 = vunpack.c.l.b16 %v3817
    %v4193 = vunpack.c.h.b16 %v3817
    %v4194 = vunpack.c.l.b16 %v3818
    %v4195 = vunpack.c.h.b16 %v3818
    %v4196 = vunpack.c.l.b16 %v3819
    %v4197 = vunpack.c.h.b16 %v3819
    %v4198 = vunpack.c.l.b16 %v3820
    %v4199 = vunpack.c.h.b16 %v3820
    %v4200 = vunpack.c.l.b16 %v3821
    %v4201 = vunpack.c.h.b16 %v3821
    %v4202 = vunpack.c.l.b16 %v3822
    %v4203 = vunpack.c.h.b16 %v3822
    %v4204 = vunpack.c.l.b16 %v3823
    %v4205 = vunpack.c.h.b16 %v3823
    %v4206 = vunpack.c.l.b16 %v3824
    %v4207 = vunpack.c.h.b16 %v3824
    %v4208 = vunpack.c.l.b16 %v3825
    %v4209 = vunpack.c.h.b16 %v3825
    %v4210 = vpack.c.b16 %v3962, %v3954
    %v4211 = vpack.c.b16 %v3963, %v3955
    %v4212 = vpack.c.b16 %v3964, %v3956
    %v4213 = vpack.c.b16 %v3965, %v3957
    %v4214 = vpack.c.b16 %v3966, %v3958
    %v4215 = vpack.c.b16 %v3967, %v3959
    %v4216 = vpack.c.b16 %v3968, %v3960
    %v4217 = vpack.c.b16 %v3969, %v3961
    %v4218 = vpack.c.b16 %v3978, %v3970
    %v4219 = vpack.c.b16 %v3979, %v3971
    %v4220 = vpack.c.b16 %v3980, %v3972
    %v4221 = vpack.c.b16 %v3981, %v3973
    %v4222 = vpack.c.b16 %v3982, %v3974
    %v4223 = vpack.c.b16 %v3983, %v3975
    %v4224 = vpack.c.b16 %v3984, %v3976
    %v4225 = vpack.c.b16 %v3985, %v3977
    %v4226 = vpack.c.b16 %v3994, %v3986
    %v4227 = vpack.c.b16 %v3995, %v3987
    %v4228 = vpack.c.b16 %v3996, %v3988
    %v4229 = vpack.c.b16 %v3997, %v3989
    %v4230 = vpack.c.b16 %v3998, %v3990
    %v4231 = vpack.c.b16 %v3999, %v3991
    %v4232 = vpack.c.b16 %v4000, %v3992
    %v4233 = vpack.c.b16 %v4001, %v3993
    %v4234 = vpack.c.b16 %v4010, %v4002
    %v4235 = vpack.c.b16 %v4011, %v4003
    %v4236 = vpack.c.b16 %v4012, %v4004
    %v4237 = vpack.c.b16 %v4013, %v4005
    %v4238 = vpack.c.b16 %v4014, %v4006
    %v4239 = vpack.c.b16 %v4015, %v4007
    %v4240 = vpack.c.b16 %v4016, %v4008
    %v4241 = vpack.c.b16 %v4017, %v4009
    %v4242 = vpack.c.b16 %v4026, %v4018
    %v4243 = vpack.c.b16 %v4027, %v4019
    %v4244 = vpack.c.b16 %v4028, %v4020
    %v4245 = vpack.c.b16 %v4029, %v4021
    %v4246 = vpack.c.b16 %v4030, %v4022
    %v4247 = vpack.c.b16 %v4031, %v4023
    %v4248 = vpack.c.b16 %v4032, %v4024
    %v4249 = vpack.c.b16 %v4033, %v4025
    %v4250 = vpack.c.b16 %v4042, %v4034
    %v4251 = vpack.c.b16 %v4043, %v4035
    %v4252 = vpack.c.b16 %v4044, %v4036
    %v4253 = vpack.c.b16 %v4045, %v4037
    %v4254 = vpack.c.b16 %v4046, %v4038
    %v4255 = vpack.c.b16 %v4047, %v4039
    %v4256 = vpack.c.b16 %v4048, %v4040
    %v4257 = vpack.c.b16 %v4049, %v4041
    %v4258 = vpack.c.b16 %v4058, %v4050
    %v4259 = vpack.c.b16 %v4059, %v4051
    %v4260 = vpack.c.b16 %v4060, %v4052
    %v4261 = vpack.c.b16 %v4061, %v4053
    %v4262 = vpack.c.b16 %v4062, %v4054
    %v4263 = vpack.c.b16 %v4063, %v4055
    %v4264 = vpack.c.b16 %v4064, %v4056
    %v4265 = vpack.c.b16 %v4065, %v4057
    %v4266 = vpack.c.b16 %v4074, %v4066
    %v4267 = vpack.c.b16 %v4075, %v4067
    %v4268 = vpack.c.b16 %v4076, %v4068
    %v4269 = vpack.c.b16 %v4077, %v4069
    %v4270 = vpack.c.b16 %v4078, %v4070
    %v4271 = vpack.c.b16 %v4079, %v4071
    %v4272 = vpack.c.b16 %v4080, %v4072
    %v4273 = vpack.c.b16 %v4081, %v4073
    %v4274 = vpack.c.b16 %v4090, %v4082
    %v4275 = vpack.c.b16 %v4091, %v4083
    %v4276 = vpack.c.b16 %v4092, %v4084
    %v4277 = vpack.c.b16 %v4093, %v4085
    %v4278 = vpack.c.b16 %v4094, %v4086
    %v4279 = vpack.c.b16 %v4095, %v4087
    %v4280 = vpack.c.b16 %v4096, %v4088
    %v4281 = vpack.c.b16 %v4097, %v4089
    %v4282 = vpack.c.b16 %v4106, %v4098
    %v4283 = vpack.c.b16 %v4107, %v4099
    %v4284 = vpack.c.b16 %v4108, %v4100
    %v4285 = vpack.c.b16 %v4109, %v4101
    %v4286 = vpack.c.b16 %v4110, %v4102
    %v4287 = vpack.c.b16 %v4111, %v4103
    %v4288 = vpack.c.b16 %v4112, %v4104
    %v4289 = vpack.c.b16 %v4113, %v4105
    %v4290 = vpack.c.b16 %v4122, %v4114
    %v4291 = vpack.c.b16 %v4123, %v4115
    %v4292 = vpack.c.b16 %v4124, %v4116
    %v4293 = vpack.c.b16 %v4125, %v4117
    %v4294 = vpack.c.b16 %v4126, %v4118
    %v4295 = vpack.c.b16 %v4127, %v4119
    %v4296 = vpack.c.b16 %v4128, %v4120
    %v4297 = vpack.c.b16 %v4129, %v4121
    %v4298 = vpack.c.b16 %v4138, %v4130
    %v4299 = vpack.c.b16 %v4139, %v4131
    %v4300 = vpack.c.b16 %v4140, %v4132
    %v4301 = vpack.c.b16 %v4141, %v4133
    %v4302 = vpack.c.b16 %v4142, %v4134
    %v4303 = vpack.c.b16 %v4143, %v4135
    %v4304 = vpack.c.b16 %v4144, %v4136
    %v4305 = vpack.c.b16 %v4145, %v4137
    %v4306 = vpack.c.b16 %v4154, %v4146
    %v4307 = vpack.c.b16 %v4155, %v4147
    %v4308 = vpack.c.b16 %v4156, %v4148
    %v4309 = vpack.c.b16 %v4157, %v4149
    %v4310 = vpack.c.b16 %v4158, %v4150
    %v4311 = vpack.c.b16 %v4159, %v4151
    %v4312 = vpack.c.b16 %v4160, %v4152
    %v4313 = vpack.c.b16 %v4161, %v4153
    %v4314 = vpack.c.b16 %v4170, %v4162
    %v4315 = vpack.c.b16 %v4171, %v4163
    %v4316 = vpack.c.b16 %v4172, %v4164
    %v4317 = vpack.c.b16 %v4173, %v4165
    %v4318 = vpack.c.b16 %v4174, %v4166
    %v4319 = vpack.c.b16 %v4175, %v4167
    %v4320 = vpack.c.b16 %v4176, %v4168
    %v4321 = vpack.c.b16 %v4177, %v4169
    %v4322 = vpack.c.b16 %v4186, %v4178
    %v4323 = vpack.c.b16 %v4187, %v4179
    %v4324 = vpack.c.b16 %v4188, %v4180
    %v4325 = vpack.c.b16 %v4189, %v4181
    %v4326 = vpack.c.b16 %v4190, %v4182
    %v4327 = vpack.c.b16 %v4191, %v4183
    %v4328 = vpack.c.b16 %v4192, %v4184
    %v4329 = vpack.c.b16 %v4193, %v4185
    %v4330 = vpack.c.b16 %v4202, %v4194
    %v4331 = vpack.c.b16 %v4203, %v4195
    %v4332 = vpack.c.b16 %v4204, %v4196
    %v4333 = vpack.c.b16 %v4205, %v4197
    %v4334 = vpack.c.b16 %v4206, %v4198
    %v4335 = vpack.c.b16 %v4207, %v4199
    %v4336 = vpack.c.b16 %v4208, %v4200
    %v4337 = vpack.c.b16 %v4209, %v4201
    %4466 = vmatprep.subr.bf16.mxu0 %v4267
    %4467 = vmatpush1.bf16.msra.mxu0 %v4266
    %4468 = vmatprep.subr.bf16.mxu0 %v4259
    %4469 = vmatpush1.bf16.msra.mxu0 %v4258
    %4470 = vmatprep.subr.bf16.mxu0 %v4251
    %4471 = vmatpush1.bf16.msra.mxu0 %v4250
    %4472 = vmatprep.subr.bf16.mxu0 %v4243
    %4473 = vmatpush1.bf16.msra.mxu0 %v4242
    %4474 = vmatprep.subr.bf16.mxu0 %v4235
    %4475 = vmatpush1.bf16.msra.mxu0 %v4234
    %4476 = vmatprep.subr.bf16.mxu0 %v4227
    %4477 = vmatpush1.bf16.msra.mxu0 %v4226
    %4478 = vmatprep.subr.bf16.mxu0 %v4219
    %4479 = vmatpush1.bf16.msra.mxu0 %v4218
    %4480 = vmatprep.subr.bf16.mxu0 %v4211
    %4481 = vmatpush1.bf16.msra.mxu0 %v4210
    %4482 = vmatprep.subr.bf16.mxu0 %v4331
    %4483 = vmatpush2.bf16.msra.mxu0 %v4330
    %4484 = vmatprep.subr.bf16.mxu0 %v4323
    %4485 = vmatpush2.bf16.msra.mxu0 %v4322
    %4486 = vmatprep.subr.bf16.mxu0 %v4315
    %4487 = vmatpush2.bf16.msra.mxu0 %v4314
    %4488 = vmatprep.subr.bf16.mxu0 %v4307
    %4489 = vmatpush2.bf16.msra.mxu0 %v4306
    %4490 = vmatprep.subr.bf16.mxu0 %v4299
    %4491 = vmatpush2.bf16.msra.mxu0 %v4298
    %4492 = vmatprep.subr.bf16.mxu0 %v4291
    %4493 = vmatpush2.bf16.msra.mxu0 %v4290
    %4494 = vmatprep.subr.bf16.mxu0 %v4283
    %4495 = vmatpush2.bf16.msra.mxu0 %v4282
    %4496 = vmatprep.subr.bf16.mxu0 %v4275
    %4497 = vmatpush2.bf16.msra.mxu0 %v4274
    %4498 = vmatprep.mubr.bf16.mxu0 %v3697
    %4499 = vmatmul.mubr.bf16.gmra.mxu0 %v3696
    %v4500 = vpop.f32.mrf.mxu0
    %v4501 = vadd.f32 0.0, %v4500
    %v4502 = vpop.f32.mrf.mxu0
    %v4503 = vadd.f32 0.0, %v4502
    %v4504 = vpop.f32.mrf.mxu0
    %v4505 = vpop.f32.mrf.mxu0
    %4506 = vdwg.mxu0
    %4507 = vmatprep.subr.bf16.mxu0 %v4269
    %4508 = vmatpush1.bf16.msra.mxu0 %v4268
    %4509 = vmatprep.subr.bf16.mxu0 %v4261
    %4510 = vmatpush1.bf16.msra.mxu0 %v4260
    %4511 = vmatprep.subr.bf16.mxu0 %v4253
    %4512 = vmatpush1.bf16.msra.mxu0 %v4252
    %4513 = vmatprep.subr.bf16.mxu0 %v4245
    %4514 = vmatpush1.bf16.msra.mxu0 %v4244
    %4515 = vmatprep.subr.bf16.mxu0 %v4237
    %4516 = vmatpush1.bf16.msra.mxu0 %v4236
    %4517 = vmatprep.subr.bf16.mxu0 %v4229
    %4518 = vmatpush1.bf16.msra.mxu0 %v4228
    %4519 = vmatprep.subr.bf16.mxu0 %v4221
    %4520 = vmatpush1.bf16.msra.mxu0 %v4220
    %4521 = vmatprep.subr.bf16.mxu0 %v4213
    %4522 = vmatpush1.bf16.msra.mxu0 %v4212
    %4523 = vmatprep.subr.bf16.mxu0 %v4333
    %4524 = vmatpush2.bf16.msra.mxu0 %v4332
    %4525 = vmatprep.subr.bf16.mxu0 %v4325
    %4526 = vmatpush2.bf16.msra.mxu0 %v4324
    %4527 = vmatprep.subr.bf16.mxu0 %v4317
    %4528 = vmatpush2.bf16.msra.mxu0 %v4316
    %4529 = vmatprep.subr.bf16.mxu0 %v4309
    %4530 = vmatpush2.bf16.msra.mxu0 %v4308
    %4531 = vmatprep.subr.bf16.mxu0 %v4301
    %4532 = vmatpush2.bf16.msra.mxu0 %v4300
    %4533 = vmatprep.subr.bf16.mxu0 %v4293
    %4534 = vmatpush2.bf16.msra.mxu0 %v4292
    %4535 = vmatprep.subr.bf16.mxu0 %v4285
    %4536 = vmatpush2.bf16.msra.mxu0 %v4284
    %4537 = vmatprep.subr.bf16.mxu0 %v4277
    %4538 = vmatpush2.bf16.msra.mxu0 %v4276
    %4539 = vmatprep.mubr.bf16.mxu0 %v3697
    %4540 = vmatmul.mubr.bf16.gmra.mxu0 %v3696
    %v4541 = vpop.f32.mrf.mxu0
    %v4542 = vadd.f32 0.0, %v4541
    %v4543 = vpop.f32.mrf.mxu0
    %v4544 = vadd.f32 0.0, %v4543
    %v4545 = vpop.f32.mrf.mxu0
    %v4546 = vpop.f32.mrf.mxu0
    %4547 = vdwg.mxu0
    %4548 = vmatprep.subr.bf16.mxu0 %v4271
    %4549 = vmatpush1.bf16.msra.mxu0 %v4270
    %4550 = vmatprep.subr.bf16.mxu0 %v4263
    %4551 = vmatpush1.bf16.msra.mxu0 %v4262
    %4552 = vmatprep.subr.bf16.mxu0 %v4255
    %4553 = vmatpush1.bf16.msra.mxu0 %v4254
    %4554 = vmatprep.subr.bf16.mxu0 %v4247
    %4555 = vmatpush1.bf16.msra.mxu0 %v4246
    %4556 = vmatprep.subr.bf16.mxu0 %v4239
    %4557 = vmatpush1.bf16.msra.mxu0 %v4238
    %4558 = vmatprep.subr.bf16.mxu0 %v4231
    %4559 = vmatpush1.bf16.msra.mxu0 %v4230
    %4560 = vmatprep.subr.bf16.mxu0 %v4223
    %4561 = vmatpush1.bf16.msra.mxu0 %v4222
    %4562 = vmatprep.subr.bf16.mxu0 %v4215
    %4563 = vmatpush1.bf16.msra.mxu0 %v4214
    %4564 = vmatprep.subr.bf16.mxu0 %v4335
    %4565 = vmatpush2.bf16.msra.mxu0 %v4334
    %4566 = vmatprep.subr.bf16.mxu0 %v4327
    %4567 = vmatpush2.bf16.msra.mxu0 %v4326
    %4568 = vmatprep.subr.bf16.mxu0 %v4319
    %4569 = vmatpush2.bf16.msra.mxu0 %v4318
    %4570 = vmatprep.subr.bf16.mxu0 %v4311
    %4571 = vmatpush2.bf16.msra.mxu0 %v4310
    %4572 = vmatprep.subr.bf16.mxu0 %v4303
    %4573 = vmatpush2.bf16.msra.mxu0 %v4302
    %4574 = vmatprep.subr.bf16.mxu0 %v4295
    %4575 = vmatpush2.bf16.msra.mxu0 %v4294
    %4576 = vmatprep.subr.bf16.mxu0 %v4287
    %4577 = vmatpush2.bf16.msra.mxu0 %v4286
    %4578 = vmatprep.subr.bf16.mxu0 %v4279
    %4579 = vmatpush2.bf16.msra.mxu0 %v4278
    %4580 = vmatprep.mubr.bf16.mxu0 %v3697
    %4581 = vmatmul.mubr.bf16.gmra.mxu0 %v3696
    %v4582 = vpop.f32.mrf.mxu0
    %v4583 = vadd.f32 0.0, %v4582
    %v4584 = vpop.f32.mrf.mxu0
    %v4585 = vadd.f32 0.0, %v4584
    %v4586 = vpop.f32.mrf.mxu0
    %v4587 = vpop.f32.mrf.mxu0
    %4588 = vdwg.mxu0
    %4589 = vmatprep.subr.bf16.mxu0 %v4273
    %4590 = vmatpush1.bf16.msra.mxu0 %v4272
    %4591 = vmatprep.subr.bf16.mxu0 %v4265
    %4592 = vmatpush1.bf16.msra.mxu0 %v4264
    %4593 = vmatprep.subr.bf16.mxu0 %v4257
    %4594 = vmatpush1.bf16.msra.mxu0 %v4256
    %4595 = vmatprep.subr.bf16.mxu0 %v4249
    %4596 = vmatpush1.bf16.msra.mxu0 %v4248
    %4597 = vmatprep.subr.bf16.mxu0 %v4241
    %4598 = vmatpush1.bf16.msra.mxu0 %v4240
    %4599 = vmatprep.subr.bf16.mxu0 %v4233
    %4600 = vmatpush1.bf16.msra.mxu0 %v4232
    %4601 = vmatprep.subr.bf16.mxu0 %v4225
    %4602 = vmatpush1.bf16.msra.mxu0 %v4224
    %4603 = vmatprep.subr.bf16.mxu0 %v4217
    %4604 = vmatpush1.bf16.msra.mxu0 %v4216
    %4605 = vmatprep.subr.bf16.mxu0 %v4337
    %4606 = vmatpush2.bf16.msra.mxu0 %v4336
    %4607 = vmatprep.subr.bf16.mxu0 %v4329
    %4608 = vmatpush2.bf16.msra.mxu0 %v4328
    %4609 = vmatprep.subr.bf16.mxu0 %v4321
    %4610 = vmatpush2.bf16.msra.mxu0 %v4320
    %4611 = vmatprep.subr.bf16.mxu0 %v4313
    %4612 = vmatpush2.bf16.msra.mxu0 %v4312
    %4613 = vmatprep.subr.bf16.mxu0 %v4305
    %4614 = vmatpush2.bf16.msra.mxu0 %v4304
    %4615 = vmatprep.subr.bf16.mxu0 %v4297
    %4616 = vmatpush2.bf16.msra.mxu0 %v4296
    %4617 = vmatprep.subr.bf16.mxu0 %v4289
    %4618 = vmatpush2.bf16.msra.mxu0 %v4288
    %4619 = vmatprep.subr.bf16.mxu0 %v4281
    %4620 = vmatpush2.bf16.msra.mxu0 %v4280
    %4621 = vmatprep.mubr.bf16.mxu0 %v3697
    %4622 = vmatmul.mubr.bf16.gmra.mxu0 %v3696
    %v4623 = vpop.f32.mrf.mxu0
    %v4624 = vadd.f32 0.0, %v4623
    %v4625 = vpop.f32.mrf.mxu0
    %v4626 = vadd.f32 0.0, %v4625
    %v4627 = vpop.f32.mrf.mxu0
    %v4628 = vpop.f32.mrf.mxu0
    %4629 = vdwg.mxu0
    %v4630 = vld [vmem:[%s7] sm:$0xff]
    %v4631 = vld [vmem:[%s8] sm:$0xff]
    %v4632 = vadd.f32 %v4501, %v4503
    %v4633 = vadd.f32 %v4632, %v4542
    %v4634 = vadd.f32 %v4633, %v4544
    %v4635 = vadd.f32 %v4634, %v4583
    %v4636 = vadd.f32 %v4635, %v4585
    %v4637 = vadd.f32 %v4636, %v4624
    %v4638 = vadd.f32 %v4637, %v4626
    %4639 = vadd.xlane.f32.xlu0 %v4638
    %v4640 = vpop.xlane.xlu0 %4639
    %v4641 = vmul.f32 %v4640, %v500
    %v4642 = vmul.f32 %v4501, %v4501
    %v4643 = vmul.f32 %v4503, %v4503
    %v4644 = vmul.f32 %v4542, %v4542
    %v4645 = vmul.f32 %v4544, %v4544
    %v4646 = vmul.f32 %v4583, %v4583
    %v4647 = vmul.f32 %v4585, %v4585
    %v4648 = vmul.f32 %v4624, %v4624
    %v4649 = vmul.f32 %v4626, %v4626
    %v4650 = vadd.f32 %v4642, %v4643
    %v4651 = vadd.f32 %v4650, %v4644
    %v4652 = vadd.f32 %v4651, %v4645
    %v4653 = vadd.f32 %v4652, %v4646
    %v4654 = vadd.f32 %v4653, %v4647
    %v4655 = vadd.f32 %v4654, %v4648
    %v4656 = vadd.f32 %v4655, %v4649
    %4657 = vadd.xlane.f32.xlu0 %v4656
    %v4658 = vpop.xlane.xlu0 %4657
    %v4659 = vmul.f32 %v4658, %v500
    %v4660 = vmul.f32 %v4641, %v4641
    %v4661 = vsub.f32 %v4659, %v4660
    %v4662 = vsub.f32 %v4501, %v4641
    %v4663 = vsub.f32 %v4503, %v4641
    %v4664 = vsub.f32 %v4542, %v4641
    %v4665 = vsub.f32 %v4544, %v4641
    %v4666 = vsub.f32 %v4583, %v4641
    %v4667 = vsub.f32 %v4585, %v4641
    %v4668 = vsub.f32 %v4624, %v4641
    %v4669 = vsub.f32 %v4626, %v4641
    %v4670 = vadd.f32 %v4661, 1e-05
    %v4671 = vrsqrt.pop %v4670
    %v4672 = vmul.f32 %v4662, %v4671
    %v4673 = vmul.f32 %v4663, %v4671
    %v4674 = vmul.f32 %v4664, %v4671
    %v4675 = vmul.f32 %v4665, %v4671
    %v4676 = vmul.f32 %v4666, %v4671
    %v4677 = vmul.f32 %v4667, %v4671
    %v4678 = vmul.f32 %v4668, %v4671
    %v4679 = vmul.f32 %v4669, %v4671
    %4681 = vset.pattern.permute.xlu0 0
    %4682 = vperm.xlu0 %4681, %v4630
    %v4683 = vpop.permute.xlu0 %4682
    %v4685 = vmul.f32 %v4672, %v4683
    %v4686 = vmul.f32 %v4673, %v4683
    %v4687 = vmul.f32 %v4674, %v4683
    %v4688 = vmul.f32 %v4675, %v4683
    %v4689 = vmul.f32 %v4676, %v4683
    %v4690 = vmul.f32 %v4677, %v4683
    %v4691 = vmul.f32 %v4678, %v4683
    %v4692 = vmul.f32 %v4679, %v4683
    %4694 = vset.pattern.permute.xlu0 0
    %4695 = vperm.xlu0 %4694, %v4631
    %v4696 = vpop.permute.xlu0 %4695
    %v4698 = vadd.f32 %v4685, %v4696
    %v4699 = vadd.f32 %v4686, %v4696
    %v4700 = vadd.f32 %v4687, %v4696
    %v4701 = vadd.f32 %v4688, %v4696
    %v4702 = vadd.f32 %v4689, %v4696
    %v4703 = vadd.f32 %v4690, %v4696
    %v4704 = vadd.f32 %v4691, %v4696
    %v4705 = vadd.f32 %v4692, %v4696
    %v4706 = vmax.f32 %v4698, 0.0
    %v4707 = vmax.f32 %v4699, 0.0
    %v4708 = vmax.f32 %v4700, 0.0
    %v4709 = vmax.f32 %v4701, 0.0
    %v4710 = vmax.f32 %v4702, 0.0
    %v4711 = vmax.f32 %v4703, 0.0
    %v4712 = vmax.f32 %v4704, 0.0
    %v4713 = vmax.f32 %v4705, 0.0
    %v4714 = vld [vmem:[%s3] sm:$0xff]
    %v4715 = vld [vmem:[%s3 + $0x8] sm:$0xff]
    %v4716 = vld [vmem:[%s3 + $0x10] sm:$0xff]
    %v4717 = vld [vmem:[%s3 + $0x18] sm:$0xff]
    %v4719 = vsel %vm2052, %v4714, 0
    %v4722 = vsel %vm2052, %v4715, 0
    %v4725 = vsel %vm2052, %v4716, 0
    %v4728 = vsel %vm2052, %v4717, 0
    %4730 = vmatprep.subr.mxu0 0.0
    %4731 = vmatpush1.msra.mxu0 0.0
    %4732 = vmatprep.subr.mxu0 0.0
    %4733 = vmatpush1.msra.mxu0 0.0
    %4734 = vmatprep.subr.mxu0 0.0
    %4735 = vmatpush1.msra.mxu0 0.0
    %4736 = vmatprep.subr.mxu0 0.0
    %4737 = vmatpush1.msra.mxu0 0.0
    %4738 = vmatprep.subr.mxu0 0.0
    %4739 = vmatpush1.msra.mxu0 0.0
    %4740 = vmatprep.subr.mxu0 0.0
    %4741 = vmatpush1.msra.mxu0 0.0
    %4742 = vmatprep.subr.mxu0 0.0
    %4743 = vmatpush1.msra.mxu0 0.0
    %4744 = vmatprep.subr.mxu0 0.0
    %4745 = vmatpush1.msra.mxu0 0.0
    %4746 = vmatprep.subr.mxu0 0.0
    %4747 = vmatpush1.msra.mxu0 0.0
    %4748 = vmatprep.subr.mxu0 0.0
    %4749 = vmatpush1.msra.mxu0 0.0
    %4750 = vmatprep.subr.mxu0 0.0
    %4751 = vmatpush1.msra.mxu0 0.0
    %4752 = vmatprep.subr.mxu0 0.0
    %4753 = vmatpush1.msra.mxu0 0.0
    %4754 = vmatprep.subr.mxu0 0.0
    %4755 = vmatpush1.msra.mxu0 0.0
    %4756 = vmatprep.subr.mxu0 0.0
    %4757 = vmatpush1.msra.mxu0 0.0
    %4758 = vmatprep.subr.mxu0 0.0
    %4759 = vmatpush1.msra.mxu0 0.0
    %4760 = vmatprep.subr.mxu0 %v4707
    %4761 = vmatpush1.msra.mxu0 %v4706
    %4762 = vmatprep.subr.mxu0 0.0
    %4763 = vmatpush2.msra.mxu0 0.0
    %4764 = vmatprep.subr.mxu0 0.0
    %4765 = vmatpush2.msra.mxu0 0.0
    %4766 = vmatprep.subr.mxu0 0.0
    %4767 = vmatpush2.msra.mxu0 0.0
    %4768 = vmatprep.subr.mxu0 0.0
    %4769 = vmatpush2.msra.mxu0 0.0
    %4770 = vmatprep.subr.mxu0 0.0
    %4771 = vmatpush2.msra.mxu0 0.0
    %4772 = vmatprep.subr.mxu0 0.0
    %4773 = vmatpush2.msra.mxu0 0.0
    %4774 = vmatprep.subr.mxu0 0.0
    %4775 = vmatpush2.msra.mxu0 0.0
    %4776 = vmatprep.subr.mxu0 0.0
    %4777 = vmatpush2.msra.mxu0 0.0
    %4778 = vmatprep.subr.mxu0 0.0
    %4779 = vmatpush2.msra.mxu0 0.0
    %4780 = vmatprep.subr.mxu0 0.0
    %4781 = vmatpush2.msra.mxu0 0.0
    %4782 = vmatprep.subr.mxu0 0.0
    %4783 = vmatpush2.msra.mxu0 0.0
    %4784 = vmatprep.subr.mxu0 0.0
    %4785 = vmatpush2.msra.mxu0 0.0
    %4786 = vmatprep.subr.mxu0 0.0
    %4787 = vmatpush2.msra.mxu0 0.0
    %4788 = vmatprep.subr.mxu0 0.0
    %4789 = vmatpush2.msra.mxu0 0.0
    %4790 = vmatprep.subr.mxu0 0.0
    %4791 = vmatpush2.msra.mxu0 0.0
    %4792 = vmatprep.subr.mxu0 0.0
    %4793 = vmatpush2.msra.mxu0 0.0
    %4794 = vmatprep.mubr.f32.mxu0 0.0
    %4795 = vmatmul.mubr.f32.gmra.mxu0 %v4719
    %v4796 = vpop.f32.mrf.mxu0
    %v4797 = vadd.f32 0.0, %v4796
    %v4798 = vpop.f32.mrf.mxu0
    %v4799 = vadd.f32 0.0, %v4798
    %4800 = vmatprep.mubr.f32.mxu0 0.0
    %4801 = vmatmul.mubr.f32.gmra.mxu0 %v4722
    %v4802 = vpop.f32.mrf.mxu0
    %v4803 = vadd.f32 0.0, %v4802
    %v4804 = vpop.f32.mrf.mxu0
    %v4805 = vadd.f32 0.0, %v4804
    %4806 = vmatprep.mubr.f32.mxu0 0.0
    %4807 = vmatmul.mubr.f32.gmra.mxu0 %v4725
    %v4808 = vpop.f32.mrf.mxu0
    %v4809 = vadd.f32 0.0, %v4808
    %v4810 = vpop.f32.mrf.mxu0
    %v4811 = vadd.f32 0.0, %v4810
    %4812 = vmatprep.mubr.f32.mxu0 0.0
    %4813 = vmatmul.mubr.f32.gmra.mxu0 %v4728
    %v4814 = vpop.f32.mrf.mxu0
    %v4815 = vadd.f32 0.0, %v4814
    %v4816 = vpop.f32.mrf.mxu0
    %v4817 = vadd.f32 0.0, %v4816
    %4818 = vdwg.mxu0
    %4819 = vmatprep.subr.mxu0 0.0
    %4820 = vmatpush1.msra.mxu0 0.0
    %4821 = vmatprep.subr.mxu0 0.0
    %4822 = vmatpush1.msra.mxu0 0.0
    %4823 = vmatprep.subr.mxu0 0.0
    %4824 = vmatpush1.msra.mxu0 0.0
    %4825 = vmatprep.subr.mxu0 0.0
    %4826 = vmatpush1.msra.mxu0 0.0
    %4827 = vmatprep.subr.mxu0 0.0
    %4828 = vmatpush1.msra.mxu0 0.0
    %4829 = vmatprep.subr.mxu0 0.0
    %4830 = vmatpush1.msra.mxu0 0.0
    %4831 = vmatprep.subr.mxu0 0.0
    %4832 = vmatpush1.msra.mxu0 0.0
    %4833 = vmatprep.subr.mxu0 0.0
    %4834 = vmatpush1.msra.mxu0 0.0
    %4835 = vmatprep.subr.mxu0 0.0
    %4836 = vmatpush1.msra.mxu0 0.0
    %4837 = vmatprep.subr.mxu0 0.0
    %4838 = vmatpush1.msra.mxu0 0.0
    %4839 = vmatprep.subr.mxu0 0.0
    %4840 = vmatpush1.msra.mxu0 0.0
    %4841 = vmatprep.subr.mxu0 0.0
    %4842 = vmatpush1.msra.mxu0 0.0
    %4843 = vmatprep.subr.mxu0 0.0
    %4844 = vmatpush1.msra.mxu0 0.0
    %4845 = vmatprep.subr.mxu0 0.0
    %4846 = vmatpush1.msra.mxu0 0.0
    %4847 = vmatprep.subr.mxu0 0.0
    %4848 = vmatpush1.msra.mxu0 0.0
    %4849 = vmatprep.subr.mxu0 %v4709
    %4850 = vmatpush1.msra.mxu0 %v4708
    %4851 = vmatprep.subr.mxu0 0.0
    %4852 = vmatpush2.msra.mxu0 0.0
    %4853 = vmatprep.subr.mxu0 0.0
    %4854 = vmatpush2.msra.mxu0 0.0
    %4855 = vmatprep.subr.mxu0 0.0
    %4856 = vmatpush2.msra.mxu0 0.0
    %4857 = vmatprep.subr.mxu0 0.0
    %4858 = vmatpush2.msra.mxu0 0.0
    %4859 = vmatprep.subr.mxu0 0.0
    %4860 = vmatpush2.msra.mxu0 0.0
    %4861 = vmatprep.subr.mxu0 0.0
    %4862 = vmatpush2.msra.mxu0 0.0
    %4863 = vmatprep.subr.mxu0 0.0
    %4864 = vmatpush2.msra.mxu0 0.0
    %4865 = vmatprep.subr.mxu0 0.0
    %4866 = vmatpush2.msra.mxu0 0.0
    %4867 = vmatprep.subr.mxu0 0.0
    %4868 = vmatpush2.msra.mxu0 0.0
    %4869 = vmatprep.subr.mxu0 0.0
    %4870 = vmatpush2.msra.mxu0 0.0
    %4871 = vmatprep.subr.mxu0 0.0
    %4872 = vmatpush2.msra.mxu0 0.0
    %4873 = vmatprep.subr.mxu0 0.0
    %4874 = vmatpush2.msra.mxu0 0.0
    %4875 = vmatprep.subr.mxu0 0.0
    %4876 = vmatpush2.msra.mxu0 0.0
    %4877 = vmatprep.subr.mxu0 0.0
    %4878 = vmatpush2.msra.mxu0 0.0
    %4879 = vmatprep.subr.mxu0 0.0
    %4880 = vmatpush2.msra.mxu0 0.0
    %4881 = vmatprep.subr.mxu0 0.0
    %4882 = vmatpush2.msra.mxu0 0.0
    %4883 = vmatprep.mubr.f32.mxu0 0.0
    %4884 = vmatmul.mubr.f32.gmra.mxu0 %v4719
    %v4885 = vpop.f32.mrf.mxu0
    %v4886 = vadd.f32 0.0, %v4885
    %v4887 = vpop.f32.mrf.mxu0
    %v4888 = vadd.f32 0.0, %v4887
    %4889 = vmatprep.mubr.f32.mxu0 0.0
    %4890 = vmatmul.mubr.f32.gmra.mxu0 %v4722
    %v4891 = vpop.f32.mrf.mxu0
    %v4892 = vadd.f32 0.0, %v4891
    %v4893 = vpop.f32.mrf.mxu0
    %v4894 = vadd.f32 0.0, %v4893
    %4895 = vmatprep.mubr.f32.mxu0 0.0
    %4896 = vmatmul.mubr.f32.gmra.mxu0 %v4725
    %v4897 = vpop.f32.mrf.mxu0
    %v4898 = vadd.f32 0.0, %v4897
    %v4899 = vpop.f32.mrf.mxu0
    %v4900 = vadd.f32 0.0, %v4899
    %4901 = vmatprep.mubr.f32.mxu0 0.0
    %4902 = vmatmul.mubr.f32.gmra.mxu0 %v4728
    %v4903 = vpop.f32.mrf.mxu0
    %v4904 = vadd.f32 0.0, %v4903
    %v4905 = vpop.f32.mrf.mxu0
    %v4906 = vadd.f32 0.0, %v4905
    %4907 = vdwg.mxu0
    %4908 = vmatprep.subr.mxu0 0.0
    %4909 = vmatpush1.msra.mxu0 0.0
    %4910 = vmatprep.subr.mxu0 0.0
    %4911 = vmatpush1.msra.mxu0 0.0
    %4912 = vmatprep.subr.mxu0 0.0
    %4913 = vmatpush1.msra.mxu0 0.0
    %4914 = vmatprep.subr.mxu0 0.0
    %4915 = vmatpush1.msra.mxu0 0.0
    %4916 = vmatprep.subr.mxu0 0.0
    %4917 = vmatpush1.msra.mxu0 0.0
    %4918 = vmatprep.subr.mxu0 0.0
    %4919 = vmatpush1.msra.mxu0 0.0
    %4920 = vmatprep.subr.mxu0 0.0
    %4921 = vmatpush1.msra.mxu0 0.0
    %4922 = vmatprep.subr.mxu0 0.0
    %4923 = vmatpush1.msra.mxu0 0.0
    %4924 = vmatprep.subr.mxu0 0.0
    %4925 = vmatpush1.msra.mxu0 0.0
    %4926 = vmatprep.subr.mxu0 0.0
    %4927 = vmatpush1.msra.mxu0 0.0
    %4928 = vmatprep.subr.mxu0 0.0
    %4929 = vmatpush1.msra.mxu0 0.0
    %4930 = vmatprep.subr.mxu0 0.0
    %4931 = vmatpush1.msra.mxu0 0.0
    %4932 = vmatprep.subr.mxu0 0.0
    %4933 = vmatpush1.msra.mxu0 0.0
    %4934 = vmatprep.subr.mxu0 0.0
    %4935 = vmatpush1.msra.mxu0 0.0
    %4936 = vmatprep.subr.mxu0 0.0
    %4937 = vmatpush1.msra.mxu0 0.0
    %4938 = vmatprep.subr.mxu0 %v4711
    %4939 = vmatpush1.msra.mxu0 %v4710
    %4940 = vmatprep.subr.mxu0 0.0
    %4941 = vmatpush2.msra.mxu0 0.0
    %4942 = vmatprep.subr.mxu0 0.0
    %4943 = vmatpush2.msra.mxu0 0.0
    %4944 = vmatprep.subr.mxu0 0.0
    %4945 = vmatpush2.msra.mxu0 0.0
    %4946 = vmatprep.subr.mxu0 0.0
    %4947 = vmatpush2.msra.mxu0 0.0
    %4948 = vmatprep.subr.mxu0 0.0
    %4949 = vmatpush2.msra.mxu0 0.0
    %4950 = vmatprep.subr.mxu0 0.0
    %4951 = vmatpush2.msra.mxu0 0.0
    %4952 = vmatprep.subr.mxu0 0.0
    %4953 = vmatpush2.msra.mxu0 0.0
    %4954 = vmatprep.subr.mxu0 0.0
    %4955 = vmatpush2.msra.mxu0 0.0
    %4956 = vmatprep.subr.mxu0 0.0
    %4957 = vmatpush2.msra.mxu0 0.0
    %4958 = vmatprep.subr.mxu0 0.0
    %4959 = vmatpush2.msra.mxu0 0.0
    %4960 = vmatprep.subr.mxu0 0.0
    %4961 = vmatpush2.msra.mxu0 0.0
    %4962 = vmatprep.subr.mxu0 0.0
    %4963 = vmatpush2.msra.mxu0 0.0
    %4964 = vmatprep.subr.mxu0 0.0
    %4965 = vmatpush2.msra.mxu0 0.0
    %4966 = vmatprep.subr.mxu0 0.0
    %4967 = vmatpush2.msra.mxu0 0.0
    %4968 = vmatprep.subr.mxu0 0.0
    %4969 = vmatpush2.msra.mxu0 0.0
    %4970 = vmatprep.subr.mxu0 0.0
    %4971 = vmatpush2.msra.mxu0 0.0
    %4972 = vmatprep.mubr.f32.mxu0 0.0
    %4973 = vmatmul.mubr.f32.gmra.mxu0 %v4719
    %v4974 = vpop.f32.mrf.mxu0
    %v4975 = vadd.f32 0.0, %v4974
    %v4976 = vpop.f32.mrf.mxu0
    %v4977 = vadd.f32 0.0, %v4976
    %4978 = vmatprep.mubr.f32.mxu0 0.0
    %4979 = vmatmul.mubr.f32.gmra.mxu0 %v4722
    %v4980 = vpop.f32.mrf.mxu0
    %v4981 = vadd.f32 0.0, %v4980
    %v4982 = vpop.f32.mrf.mxu0
    %v4983 = vadd.f32 0.0, %v4982
    %4984 = vmatprep.mubr.f32.mxu0 0.0
    %4985 = vmatmul.mubr.f32.gmra.mxu0 %v4725
    %v4986 = vpop.f32.mrf.mxu0
    %v4987 = vadd.f32 0.0, %v4986
    %v4988 = vpop.f32.mrf.mxu0
    %v4989 = vadd.f32 0.0, %v4988
    %4990 = vmatprep.mubr.f32.mxu0 0.0
    %4991 = vmatmul.mubr.f32.gmra.mxu0 %v4728
    %v4992 = vpop.f32.mrf.mxu0
    %v4993 = vadd.f32 0.0, %v4992
    %v4994 = vpop.f32.mrf.mxu0
    %v4995 = vadd.f32 0.0, %v4994
    %4996 = vdwg.mxu0
    %4997 = vmatprep.subr.mxu0 0.0
    %4998 = vmatpush1.msra.mxu0 0.0
    %4999 = vmatprep.subr.mxu0 0.0
    %5000 = vmatpush1.msra.mxu0 0.0
    %5001 = vmatprep.subr.mxu0 0.0
    %5002 = vmatpush1.msra.mxu0 0.0
    %5003 = vmatprep.subr.mxu0 0.0
    %5004 = vmatpush1.msra.mxu0 0.0
    %5005 = vmatprep.subr.mxu0 0.0
    %5006 = vmatpush1.msra.mxu0 0.0
    %5007 = vmatprep.subr.mxu0 0.0
    %5008 = vmatpush1.msra.mxu0 0.0
    %5009 = vmatprep.subr.mxu0 0.0
    %5010 = vmatpush1.msra.mxu0 0.0
    %5011 = vmatprep.subr.mxu0 0.0
    %5012 = vmatpush1.msra.mxu0 0.0
    %5013 = vmatprep.subr.mxu0 0.0
    %5014 = vmatpush1.msra.mxu0 0.0
    %5015 = vmatprep.subr.mxu0 0.0
    %5016 = vmatpush1.msra.mxu0 0.0
    %5017 = vmatprep.subr.mxu0 0.0
    %5018 = vmatpush1.msra.mxu0 0.0
    %5019 = vmatprep.subr.mxu0 0.0
    %5020 = vmatpush1.msra.mxu0 0.0
    %5021 = vmatprep.subr.mxu0 0.0
    %5022 = vmatpush1.msra.mxu0 0.0
    %5023 = vmatprep.subr.mxu0 0.0
    %5024 = vmatpush1.msra.mxu0 0.0
    %5025 = vmatprep.subr.mxu0 0.0
    %5026 = vmatpush1.msra.mxu0 0.0
    %5027 = vmatprep.subr.mxu0 %v4713
    %5028 = vmatpush1.msra.mxu0 %v4712
    %5029 = vmatprep.subr.mxu0 0.0
    %5030 = vmatpush2.msra.mxu0 0.0
    %5031 = vmatprep.subr.mxu0 0.0
    %5032 = vmatpush2.msra.mxu0 0.0
    %5033 = vmatprep.subr.mxu0 0.0
    %5034 = vmatpush2.msra.mxu0 0.0
    %5035 = vmatprep.subr.mxu0 0.0
    %5036 = vmatpush2.msra.mxu0 0.0
    %5037 = vmatprep.subr.mxu0 0.0
    %5038 = vmatpush2.msra.mxu0 0.0
    %5039 = vmatprep.subr.mxu0 0.0
    %5040 = vmatpush2.msra.mxu0 0.0
    %5041 = vmatprep.subr.mxu0 0.0
    %5042 = vmatpush2.msra.mxu0 0.0
    %5043 = vmatprep.subr.mxu0 0.0
    %5044 = vmatpush2.msra.mxu0 0.0
    %5045 = vmatprep.subr.mxu0 0.0
    %5046 = vmatpush2.msra.mxu0 0.0
    %5047 = vmatprep.subr.mxu0 0.0
    %5048 = vmatpush2.msra.mxu0 0.0
    %5049 = vmatprep.subr.mxu0 0.0
    %5050 = vmatpush2.msra.mxu0 0.0
    %5051 = vmatprep.subr.mxu0 0.0
    %5052 = vmatpush2.msra.mxu0 0.0
    %5053 = vmatprep.subr.mxu0 0.0
    %5054 = vmatpush2.msra.mxu0 0.0
    %5055 = vmatprep.subr.mxu0 0.0
    %5056 = vmatpush2.msra.mxu0 0.0
    %5057 = vmatprep.subr.mxu0 0.0
    %5058 = vmatpush2.msra.mxu0 0.0
    %5059 = vmatprep.subr.mxu0 0.0
    %5060 = vmatpush2.msra.mxu0 0.0
    %5061 = vmatprep.mubr.f32.mxu0 0.0
    %5062 = vmatmul.mubr.f32.gmra.mxu0 %v4719
    %v5063 = vpop.f32.mrf.mxu0
    %v5064 = vadd.f32 0.0, %v5063
    %v5065 = vpop.f32.mrf.mxu0
    %v5066 = vadd.f32 0.0, %v5065
    %5067 = vmatprep.mubr.f32.mxu0 0.0
    %5068 = vmatmul.mubr.f32.gmra.mxu0 %v4722
    %v5069 = vpop.f32.mrf.mxu0
    %v5070 = vadd.f32 0.0, %v5069
    %v5071 = vpop.f32.mrf.mxu0
    %v5072 = vadd.f32 0.0, %v5071
    %5073 = vmatprep.mubr.f32.mxu0 0.0
    %5074 = vmatmul.mubr.f32.gmra.mxu0 %v4725
    %v5075 = vpop.f32.mrf.mxu0
    %v5076 = vadd.f32 0.0, %v5075
    %v5077 = vpop.f32.mrf.mxu0
    %v5078 = vadd.f32 0.0, %v5077
    %5079 = vmatprep.mubr.f32.mxu0 0.0
    %5080 = vmatmul.mubr.f32.gmra.mxu0 %v4728
    %v5081 = vpop.f32.mrf.mxu0
    %v5082 = vadd.f32 0.0, %v5081
    %v5083 = vpop.f32.mrf.mxu0
    %v5084 = vadd.f32 0.0, %v5083
    %5085 = vdwg.mxu0
    %v5086 = vld [vmem:[%s9] sm:$0xff]
    %v5087 = vld [vmem:[%s9 + $0x8] sm:$0xff]
    %v5088 = vld [vmem:[%s9 + $0x10] sm:$0xff]
    %v5089 = vld [vmem:[%s9 + $0x18] sm:$0xff]
    %v5090 = vld [vmem:[%s10] sm:$0xff]
    %v5091 = vld [vmem:[%s10 + $0x8] sm:$0xff]
    %v5092 = vld [vmem:[%s10 + $0x10] sm:$0xff]
    %v5093 = vld [vmem:[%s10 + $0x18] sm:$0xff]
    %v5094 = vadd.f32 %v4797, %v4799
    %v5095 = vadd.f32 %v5094, %v4886
    %v5096 = vadd.f32 %v5095, %v4888
    %v5097 = vadd.f32 %v5096, %v4975
    %v5098 = vadd.f32 %v5097, %v4977
    %v5099 = vadd.f32 %v5098, %v5064
    %v5100 = vadd.f32 %v5099, %v5066
    %5101 = vadd.xlane.f32.xlu0 %v5100
    %v5102 = vpop.xlane.xlu0 %5101
    %v5103 = vadd.f32 %v4803, %v4805
    %v5104 = vadd.f32 %v5103, %v4892
    %v5105 = vadd.f32 %v5104, %v4894
    %v5106 = vadd.f32 %v5105, %v4981
    %v5107 = vadd.f32 %v5106, %v4983
    %v5108 = vadd.f32 %v5107, %v5070
    %v5109 = vadd.f32 %v5108, %v5072
    %5110 = vadd.xlane.f32.xlu0 %v5109
    %v5111 = vpop.xlane.xlu0 %5110
    %v5112 = vadd.f32 %v4809, %v4811
    %v5113 = vadd.f32 %v5112, %v4898
    %v5114 = vadd.f32 %v5113, %v4900
    %v5115 = vadd.f32 %v5114, %v4987
    %v5116 = vadd.f32 %v5115, %v4989
    %v5117 = vadd.f32 %v5116, %v5076
    %v5118 = vadd.f32 %v5117, %v5078
    %5119 = vadd.xlane.f32.xlu0 %v5118
    %v5120 = vpop.xlane.xlu0 %5119
    %v5121 = vadd.f32 %v4815, %v4817
    %v5122 = vadd.f32 %v5121, %v4904
    %v5123 = vadd.f32 %v5122, %v4906
    %v5124 = vadd.f32 %v5123, %v4993
    %v5125 = vadd.f32 %v5124, %v4995
    %v5126 = vadd.f32 %v5125, %v5082
    %v5127 = vadd.f32 %v5126, %v5084
    %5128 = vadd.xlane.f32.xlu0 %v5127
    %v5129 = vpop.xlane.xlu0 %5128
    %v5130 = vmul.f32 %v5102, %v500
    %v5131 = vmul.f32 %v5111, %v500
    %v5132 = vmul.f32 %v5120, %v500
    %v5133 = vmul.f32 %v5129, %v500
    %v5134 = vmul.f32 %v4797, %v4797
    %v5135 = vmul.f32 %v4799, %v4799
    %v5136 = vmul.f32 %v4886, %v4886
    %v5137 = vmul.f32 %v4888, %v4888
    %v5138 = vmul.f32 %v4975, %v4975
    %v5139 = vmul.f32 %v4977, %v4977
    %v5140 = vmul.f32 %v5064, %v5064
    %v5141 = vmul.f32 %v5066, %v5066
    %v5142 = vmul.f32 %v4803, %v4803
    %v5143 = vmul.f32 %v4805, %v4805
    %v5144 = vmul.f32 %v4892, %v4892
    %v5145 = vmul.f32 %v4894, %v4894
    %v5146 = vmul.f32 %v4981, %v4981
    %v5147 = vmul.f32 %v4983, %v4983
    %v5148 = vmul.f32 %v5070, %v5070
    %v5149 = vmul.f32 %v5072, %v5072
    %v5150 = vmul.f32 %v4809, %v4809
    %v5151 = vmul.f32 %v4811, %v4811
    %v5152 = vmul.f32 %v4898, %v4898
    %v5153 = vmul.f32 %v4900, %v4900
    %v5154 = vmul.f32 %v4987, %v4987
    %v5155 = vmul.f32 %v4989, %v4989
    %v5156 = vmul.f32 %v5076, %v5076
    %v5157 = vmul.f32 %v5078, %v5078
    %v5158 = vmul.f32 %v4815, %v4815
    %v5159 = vmul.f32 %v4817, %v4817
    %v5160 = vmul.f32 %v4904, %v4904
    %v5161 = vmul.f32 %v4906, %v4906
    %v5162 = vmul.f32 %v4993, %v4993
    %v5163 = vmul.f32 %v4995, %v4995
    %v5164 = vmul.f32 %v5082, %v5082
    %v5165 = vmul.f32 %v5084, %v5084
    %v5166 = vadd.f32 %v5134, %v5135
    %v5167 = vadd.f32 %v5166, %v5136
    %v5168 = vadd.f32 %v5167, %v5137
    %v5169 = vadd.f32 %v5168, %v5138
    %v5170 = vadd.f32 %v5169, %v5139
    %v5171 = vadd.f32 %v5170, %v5140
    %v5172 = vadd.f32 %v5171, %v5141
    %5173 = vadd.xlane.f32.xlu0 %v5172
    %v5174 = vpop.xlane.xlu0 %5173
    %v5175 = vadd.f32 %v5142, %v5143
    %v5176 = vadd.f32 %v5175, %v5144
    %v5177 = vadd.f32 %v5176, %v5145
    %v5178 = vadd.f32 %v5177, %v5146
    %v5179 = vadd.f32 %v5178, %v5147
    %v5180 = vadd.f32 %v5179, %v5148
    %v5181 = vadd.f32 %v5180, %v5149
    %5182 = vadd.xlane.f32.xlu0 %v5181
    %v5183 = vpop.xlane.xlu0 %5182
    %v5184 = vadd.f32 %v5150, %v5151
    %v5185 = vadd.f32 %v5184, %v5152
    %v5186 = vadd.f32 %v5185, %v5153
    %v5187 = vadd.f32 %v5186, %v5154
    %v5188 = vadd.f32 %v5187, %v5155
    %v5189 = vadd.f32 %v5188, %v5156
    %v5190 = vadd.f32 %v5189, %v5157
    %5191 = vadd.xlane.f32.xlu0 %v5190
    %v5192 = vpop.xlane.xlu0 %5191
    %v5193 = vadd.f32 %v5158, %v5159
    %v5194 = vadd.f32 %v5193, %v5160
    %v5195 = vadd.f32 %v5194, %v5161
    %v5196 = vadd.f32 %v5195, %v5162
    %v5197 = vadd.f32 %v5196, %v5163
    %v5198 = vadd.f32 %v5197, %v5164
    %v5199 = vadd.f32 %v5198, %v5165
    %5200 = vadd.xlane.f32.xlu0 %v5199
    %v5201 = vpop.xlane.xlu0 %5200
    %v5202 = vmul.f32 %v5174, %v500
    %v5203 = vmul.f32 %v5183, %v500
    %v5204 = vmul.f32 %v5192, %v500
    %v5205 = vmul.f32 %v5201, %v500
    %v5206 = vmul.f32 %v5130, %v5130
    %v5207 = vmul.f32 %v5131, %v5131
    %v5208 = vmul.f32 %v5132, %v5132
    %v5209 = vmul.f32 %v5133, %v5133
    %v5210 = vsub.f32 %v5202, %v5206
    %v5211 = vsub.f32 %v5203, %v5207
    %v5212 = vsub.f32 %v5204, %v5208
    %v5213 = vsub.f32 %v5205, %v5209
    %v5214 = vsub.f32 %v4797, %v5130
    %v5215 = vsub.f32 %v4799, %v5130
    %v5216 = vsub.f32 %v4886, %v5130
    %v5217 = vsub.f32 %v4888, %v5130
    %v5218 = vsub.f32 %v4975, %v5130
    %v5219 = vsub.f32 %v4977, %v5130
    %v5220 = vsub.f32 %v5064, %v5130
    %v5221 = vsub.f32 %v5066, %v5130
    %v5222 = vsub.f32 %v4803, %v5131
    %v5223 = vsub.f32 %v4805, %v5131
    %v5224 = vsub.f32 %v4892, %v5131
    %v5225 = vsub.f32 %v4894, %v5131
    %v5226 = vsub.f32 %v4981, %v5131
    %v5227 = vsub.f32 %v4983, %v5131
    %v5228 = vsub.f32 %v5070, %v5131
    %v5229 = vsub.f32 %v5072, %v5131
    %v5230 = vsub.f32 %v4809, %v5132
    %v5231 = vsub.f32 %v4811, %v5132
    %v5232 = vsub.f32 %v4898, %v5132
    %v5233 = vsub.f32 %v4900, %v5132
    %v5234 = vsub.f32 %v4987, %v5132
    %v5235 = vsub.f32 %v4989, %v5132
    %v5236 = vsub.f32 %v5076, %v5132
    %v5237 = vsub.f32 %v5078, %v5132
    %v5238 = vsub.f32 %v4815, %v5133
    %v5239 = vsub.f32 %v4817, %v5133
    %v5240 = vsub.f32 %v4904, %v5133
    %v5241 = vsub.f32 %v4906, %v5133
    %v5242 = vsub.f32 %v4993, %v5133
    %v5243 = vsub.f32 %v4995, %v5133
    %v5244 = vsub.f32 %v5082, %v5133
    %v5245 = vsub.f32 %v5084, %v5133
    %v5246 = vadd.f32 %v5210, 1e-05
    %v5247 = vadd.f32 %v5211, 1e-05
    %v5248 = vadd.f32 %v5212, 1e-05
    %v5249 = vadd.f32 %v5213, 1e-05
    %v5250 = vrsqrt.pop %v5246
    %v5251 = vrsqrt.pop %v5247
    %v5252 = vrsqrt.pop %v5248
    %v5253 = vrsqrt.pop %v5249
    %v5254 = vmul.f32 %v5214, %v5250
    %v5255 = vmul.f32 %v5215, %v5250
    %v5256 = vmul.f32 %v5216, %v5250
    %v5257 = vmul.f32 %v5217, %v5250
    %v5258 = vmul.f32 %v5218, %v5250
    %v5259 = vmul.f32 %v5219, %v5250
    %v5260 = vmul.f32 %v5220, %v5250
    %v5261 = vmul.f32 %v5221, %v5250
    %v5262 = vmul.f32 %v5222, %v5251
    %v5263 = vmul.f32 %v5223, %v5251
    %v5264 = vmul.f32 %v5224, %v5251
    %v5265 = vmul.f32 %v5225, %v5251
    %v5266 = vmul.f32 %v5226, %v5251
    %v5267 = vmul.f32 %v5227, %v5251
    %v5268 = vmul.f32 %v5228, %v5251
    %v5269 = vmul.f32 %v5229, %v5251
    %v5270 = vmul.f32 %v5230, %v5252
    %v5271 = vmul.f32 %v5231, %v5252
    %v5272 = vmul.f32 %v5232, %v5252
    %v5273 = vmul.f32 %v5233, %v5252
    %v5274 = vmul.f32 %v5234, %v5252
    %v5275 = vmul.f32 %v5235, %v5252
    %v5276 = vmul.f32 %v5236, %v5252
    %v5277 = vmul.f32 %v5237, %v5252
    %v5278 = vmul.f32 %v5238, %v5253
    %v5279 = vmul.f32 %v5239, %v5253
    %v5280 = vmul.f32 %v5240, %v5253
    %v5281 = vmul.f32 %v5241, %v5253
    %v5282 = vmul.f32 %v5242, %v5253
    %v5283 = vmul.f32 %v5243, %v5253
    %v5284 = vmul.f32 %v5244, %v5253
    %v5285 = vmul.f32 %v5245, %v5253
    %5287 = vset.pattern.permute.xlu0 0
    %5288 = vperm.xlu0 %5287, %v5086
    %v5289 = vpop.permute.xlu0 %5288
    %5292 = vset.pattern.permute.xlu0 0
    %5293 = vperm.xlu0 %5292, %v5087
    %v5294 = vpop.permute.xlu0 %5293
    %5297 = vset.pattern.permute.xlu0 0
    %5298 = vperm.xlu0 %5297, %v5088
    %v5299 = vpop.permute.xlu0 %5298
    %5302 = vset.pattern.permute.xlu0 0
    %5303 = vperm.xlu0 %5302, %v5089
    %v5304 = vpop.permute.xlu0 %5303
    %v5306 = vmul.f32 %v5254, %v5289
    %v5307 = vmul.f32 %v5255, %v5289
    %v5308 = vmul.f32 %v5256, %v5289
    %v5309 = vmul.f32 %v5257, %v5289
    %v5310 = vmul.f32 %v5258, %v5289
    %v5311 = vmul.f32 %v5259, %v5289
    %v5312 = vmul.f32 %v5260, %v5289
    %v5313 = vmul.f32 %v5261, %v5289
    %v5314 = vmul.f32 %v5262, %v5294
    %v5315 = vmul.f32 %v5263, %v5294
    %v5316 = vmul.f32 %v5264, %v5294
    %v5317 = vmul.f32 %v5265, %v5294
    %v5318 = vmul.f32 %v5266, %v5294
    %v5319 = vmul.f32 %v5267, %v5294
    %v5320 = vmul.f32 %v5268, %v5294
    %v5321 = vmul.f32 %v5269, %v5294
    %v5322 = vmul.f32 %v5270, %v5299
    %v5323 = vmul.f32 %v5271, %v5299
    %v5324 = vmul.f32 %v5272, %v5299
    %v5325 = vmul.f32 %v5273, %v5299
    %v5326 = vmul.f32 %v5274, %v5299
    %v5327 = vmul.f32 %v5275, %v5299
    %v5328 = vmul.f32 %v5276, %v5299
    %v5329 = vmul.f32 %v5277, %v5299
    %v5330 = vmul.f32 %v5278, %v5304
    %v5331 = vmul.f32 %v5279, %v5304
    %v5332 = vmul.f32 %v5280, %v5304
    %v5333 = vmul.f32 %v5281, %v5304
    %v5334 = vmul.f32 %v5282, %v5304
    %v5335 = vmul.f32 %v5283, %v5304
    %v5336 = vmul.f32 %v5284, %v5304
    %v5337 = vmul.f32 %v5285, %v5304
    %5339 = vset.pattern.permute.xlu0 0
    %5340 = vperm.xlu0 %5339, %v5090
    %v5341 = vpop.permute.xlu0 %5340
    %5344 = vset.pattern.permute.xlu0 0
    %5345 = vperm.xlu0 %5344, %v5091
    %v5346 = vpop.permute.xlu0 %5345
    %5349 = vset.pattern.permute.xlu0 0
    %5350 = vperm.xlu0 %5349, %v5092
    %v5351 = vpop.permute.xlu0 %5350
    %5354 = vset.pattern.permute.xlu0 0
    %5355 = vperm.xlu0 %5354, %v5093
    %v5356 = vpop.permute.xlu0 %5355
    %v5358 = vadd.f32 %v5306, %v5341
    %v5359 = vadd.f32 %v5307, %v5341
    %v5360 = vadd.f32 %v5308, %v5341
    %v5361 = vadd.f32 %v5309, %v5341
    %v5362 = vadd.f32 %v5310, %v5341
    %v5363 = vadd.f32 %v5311, %v5341
    %v5364 = vadd.f32 %v5312, %v5341
    %v5365 = vadd.f32 %v5313, %v5341
    %v5366 = vadd.f32 %v5314, %v5346
    %v5367 = vadd.f32 %v5315, %v5346
    %v5368 = vadd.f32 %v5316, %v5346
    %v5369 = vadd.f32 %v5317, %v5346
    %v5370 = vadd.f32 %v5318, %v5346
    %v5371 = vadd.f32 %v5319, %v5346
    %v5372 = vadd.f32 %v5320, %v5346
    %v5373 = vadd.f32 %v5321, %v5346
    %v5374 = vadd.f32 %v5322, %v5351
    %v5375 = vadd.f32 %v5323, %v5351
    %v5376 = vadd.f32 %v5324, %v5351
    %v5377 = vadd.f32 %v5325, %v5351
    %v5378 = vadd.f32 %v5326, %v5351
    %v5379 = vadd.f32 %v5327, %v5351
    %v5380 = vadd.f32 %v5328, %v5351
    %v5381 = vadd.f32 %v5329, %v5351
    %v5382 = vadd.f32 %v5330, %v5356
    %v5383 = vadd.f32 %v5331, %v5356
    %v5384 = vadd.f32 %v5332, %v5356
    %v5385 = vadd.f32 %v5333, %v5356
    %v5386 = vadd.f32 %v5334, %v5356
    %v5387 = vadd.f32 %v5335, %v5356
    %v5388 = vadd.f32 %v5336, %v5356
    %v5389 = vadd.f32 %v5337, %v5356
    %v5390 = vadd.f32 %v5358, %v846
    %v5391 = vadd.f32 %v5359, %v847
    %v5392 = vadd.f32 %v5360, %v848
    %v5393 = vadd.f32 %v5361, %v849
    %v5394 = vadd.f32 %v5362, %v850
    %v5395 = vadd.f32 %v5363, %v851
    %v5396 = vadd.f32 %v5364, %v852
    %v5397 = vadd.f32 %v5365, %v853
    %v5398 = vadd.f32 %v5366, %v854
    %v5399 = vadd.f32 %v5367, %v855
    %v5400 = vadd.f32 %v5368, %v856
    %v5401 = vadd.f32 %v5369, %v857
    %v5402 = vadd.f32 %v5370, %v858
    %v5403 = vadd.f32 %v5371, %v859
    %v5404 = vadd.f32 %v5372, %v860
    %v5405 = vadd.f32 %v5373, %v861
    %v5406 = vadd.f32 %v5374, %v862
    %v5407 = vadd.f32 %v5375, %v863
    %v5408 = vadd.f32 %v5376, %v864
    %v5409 = vadd.f32 %v5377, %v865
    %v5410 = vadd.f32 %v5378, %v866
    %v5411 = vadd.f32 %v5379, %v867
    %v5412 = vadd.f32 %v5380, %v868
    %v5413 = vadd.f32 %v5381, %v869
    %v5414 = vadd.f32 %v5382, %v870
    %v5415 = vadd.f32 %v5383, %v871
    %v5416 = vadd.f32 %v5384, %v872
    %v5417 = vadd.f32 %v5385, %v873
    %v5418 = vadd.f32 %v5386, %v874
    %v5419 = vadd.f32 %v5387, %v875
    %v5420 = vadd.f32 %v5388, %v876
    %v5421 = vadd.f32 %v5389, %v877
    %v5422 = vmax.f32 %v5390, 0.0
    %v5423 = vmax.f32 %v5391, 0.0
    %v5424 = vmax.f32 %v5392, 0.0
    %v5425 = vmax.f32 %v5393, 0.0
    %v5426 = vmax.f32 %v5394, 0.0
    %v5427 = vmax.f32 %v5395, 0.0
    %v5428 = vmax.f32 %v5396, 0.0
    %v5429 = vmax.f32 %v5397, 0.0
    %v5430 = vmax.f32 %v5398, 0.0
    %v5431 = vmax.f32 %v5399, 0.0
    %v5432 = vmax.f32 %v5400, 0.0
    %v5433 = vmax.f32 %v5401, 0.0
    %v5434 = vmax.f32 %v5402, 0.0
    %v5435 = vmax.f32 %v5403, 0.0
    %v5436 = vmax.f32 %v5404, 0.0
    %v5437 = vmax.f32 %v5405, 0.0
    %v5438 = vmax.f32 %v5406, 0.0
    %v5439 = vmax.f32 %v5407, 0.0
    %v5440 = vmax.f32 %v5408, 0.0
    %v5441 = vmax.f32 %v5409, 0.0
    %v5442 = vmax.f32 %v5410, 0.0
    %v5443 = vmax.f32 %v5411, 0.0
    %v5444 = vmax.f32 %v5412, 0.0
    %v5445 = vmax.f32 %v5413, 0.0
    %v5446 = vmax.f32 %v5414, 0.0
    %v5447 = vmax.f32 %v5415, 0.0
    %v5448 = vmax.f32 %v5416, 0.0
    %v5449 = vmax.f32 %v5417, 0.0
    %v5450 = vmax.f32 %v5418, 0.0
    %v5451 = vmax.f32 %v5419, 0.0
    %v5452 = vmax.f32 %v5420, 0.0
    %v5453 = vmax.f32 %v5421, 0.0
    %5454 = vst [vmem:[#allocation8] sm:$0xff] %v5422
    %5455 = vst [vmem:[#allocation8 + $0x8] sm:$0xff] %v5423
    %5456 = vst [vmem:[#allocation8 + $0x10] sm:$0xff] %v5424
    %5457 = vst [vmem:[#allocation8 + $0x18] sm:$0xff] %v5425
    %5458 = vst [vmem:[#allocation8 + $0x20] sm:$0xff] %v5426
    %5459 = vst [vmem:[#allocation8 + $0x28] sm:$0xff] %v5427
    %5460 = vst [vmem:[#allocation8 + $0x30] sm:$0xff] %v5428
    %5461 = vst [vmem:[#allocation8 + $0x38] sm:$0xff] %v5429
    %5462 = vst [vmem:[#allocation8 + $0x40] sm:$0xff] %v5430
    %5463 = vst [vmem:[#allocation8 + $0x48] sm:$0xff] %v5431
    %5464 = vst [vmem:[#allocation8 + $0x50] sm:$0xff] %v5432
    %5465 = vst [vmem:[#allocation8 + $0x58] sm:$0xff] %v5433
    %5466 = vst [vmem:[#allocation8 + $0x60] sm:$0xff] %v5434
    %5467 = vst [vmem:[#allocation8 + $0x68] sm:$0xff] %v5435
    %5468 = vst [vmem:[#allocation8 + $0x70] sm:$0xff] %v5436
    %5469 = vst [vmem:[#allocation8 + $0x78] sm:$0xff] %v5437
    %5470 = vst [vmem:[#allocation8 + $0x80] sm:$0xff] %v5438
    %5471 = vst [vmem:[#allocation8 + $0x88] sm:$0xff] %v5439
    %5472 = vst [vmem:[#allocation8 + $0x90] sm:$0xff] %v5440
    %5473 = vst [vmem:[#allocation8 + $0x98] sm:$0xff] %v5441
    %5474 = vst [vmem:[#allocation8 + $0xa0] sm:$0xff] %v5442
    %5475 = vst [vmem:[#allocation8 + $0xa8] sm:$0xff] %v5443
    %5476 = vst [vmem:[#allocation8 + $0xb0] sm:$0xff] %v5444
    %5477 = vst [vmem:[#allocation8 + $0xb8] sm:$0xff] %v5445
    %5478 = vst [vmem:[#allocation8 + $0xc0] sm:$0xff] %v5446
    %5479 = vst [vmem:[#allocation8 + $0xc8] sm:$0xff] %v5447
    %5480 = vst [vmem:[#allocation8 + $0xd0] sm:$0xff] %v5448
    %5481 = vst [vmem:[#allocation8 + $0xd8] sm:$0xff] %v5449
    %5482 = vst [vmem:[#allocation8 + $0xe0] sm:$0xff] %v5450
    %5483 = vst [vmem:[#allocation8 + $0xe8] sm:$0xff] %v5451
    %5484 = vst [vmem:[#allocation8 + $0xf0] sm:$0xff] %v5452
    %5485 = vst [vmem:[#allocation8 + $0xf8] sm:$0xff] %v5453
    // Predicated region
    $region62: #{tpu_custom_call.1} parent=1 // pred_check
      _
    $region63: #{tpu_custom_call.1} parent=1 // pred_check_branch
      %5487 = sbr.rel (0) target = $region65
    $region64: #{tpu_custom_call.1} parent=1 // pred_region
      %s5489 = ssub.s32 4096, 4096
      %5490 = vsyncadd [#allocation5], %s5489
      %s5491 = sshll.u32 [#allocation8], 4
      %s5492 = int_to_ptr.vmem [resolvable:$true] %s5491
      %5497 = dma.vmem_to_hbm [thread:$0]  %s5492, 4096, %s13, [#allocation5], 1024, 1024, 64
    $region65: #{tpu_custom_call.1} parent=1 // pred_fallthru
      _
    // Predicated region
    $region66: #{tpu_custom_call.1} parent=1 // pred_check
      _
    $region67: #{tpu_custom_call.1} parent=1 // pred_check_branch
      %5499 = sbr.rel (0) target = $region69
    $region68: #{tpu_custom_call.1} parent=1 // pred_region
      %5500 = dma.done [#allocation5], 4096
    $region69: #{tpu_custom_call.1} parent=1 // pred_fallthru
      _
    %5501 = vsyncpa [#allocation4], 1
    %5502 = vsyncpa [#allocation7], 1
    %5503 = vsyncpa [#allocation5], 1

</llo_original>
